<compile_context>
chip_gen: v5e
topology: v5e:2x2
jax: 0.10.0
libtpu: 0.0.40
codegen_flags: <defaults>
</compile_context>

<pallas_src>
from functools import partial

import jax
import jax.numpy as jnp
from jax.experimental import pallas as pl
from jax.experimental.pallas import tpu as pltpu

K_DIM = 3 + 12            # k of STNkd
C1, C2, C3 = 64, 128, 1024
BN_EPS = 1e-5


# ---------------------------------------------------------------------------
# Stage 1: conv1..conv3 (+BN+ReLU) and global max-pool, tiled over N.
# ---------------------------------------------------------------------------
def _conv_pool_kernel(x_ref, w1_ref, b1_ref, w2_ref, b2_ref, w3_ref, b3_ref,
                      out_ref, mx_ref, *, n_points):
    n = pl.program_id(1)

    @pl.when(n == 0)
    def _init():
        mx_ref[...] = jnp.full(mx_ref.shape, -jnp.inf, dtype=mx_ref.dtype)

    x = x_ref[0]                                                 # (k, TN) f32

    # conv1 + bn1 + relu  : (64, k) @ (k, TN)   -- f32 (tiny K=15 layer)
    h = jnp.dot(w1_ref[...], x, preferred_element_type=jnp.float32)
    h = jnp.maximum(h + b1_ref[...], 0.0)                        # (64, TN)

    # conv2 + bn2 + relu  : (128, 64) @ (64, TN) -- bf16 MXU, f32 accumulate
    h = jnp.dot(w2_ref[...], h.astype(jnp.bfloat16),
                preferred_element_type=jnp.float32)
    h = jnp.maximum(h + b2_ref[...], 0.0)                        # (128, TN)

    # conv3 + bn3 + relu  : (1024, 128) @ (128, TN)
    h = jnp.dot(w3_ref[...], h.astype(jnp.bfloat16),
                preferred_element_type=jnp.float32)
    h = jnp.maximum(h + b3_ref[...], 0.0)                        # (1024, TN)

    # Mask padded points of a partial final tile (static check).
    tn = x_ref.shape[2]
    if n_points % tn:
        idx = n * tn + jax.lax.broadcasted_iota(jnp.int32, (1, tn), 1)
        h = jnp.where(idx < n_points, h, -jnp.inf)

    # Running torch.max(x, 2) over the N tiles.
    mx_ref[...] = jnp.maximum(mx_ref[...], jnp.max(h, axis=1, keepdims=True))

    @pl.when(n == pl.num_programs(1) - 1)
    def _finalize():
        out_ref[0] = mx_ref[...]


# ---------------------------------------------------------------------------
# Stage 2: fc1/fc2/fc3 (+BN+ReLU) + identity bias, batched over B.
# ---------------------------------------------------------------------------
def _fc_head_kernel(g_ref, w4_ref, b4_ref, w5_ref, b5_ref, w6_ref, b6_ref,
                    iden_ref, out_ref):
    g = g_ref[...].astype(jnp.bfloat16)                          # (TB, 1024)

    f = jnp.dot(g, w4_ref[...], preferred_element_type=jnp.float32)
    f = jnp.maximum(f + b4_ref[...], 0.0)                        # (TB, 512)

    f = jnp.dot(f.astype(jnp.bfloat16), w5_ref[...],
                preferred_element_type=jnp.float32)
    f = jnp.maximum(f + b5_ref[...], 0.0)                        # (TB, 256)

    o = jnp.dot(f.astype(jnp.bfloat16), w6_ref[...],
                preferred_element_type=jnp.float32)
    out_ref[...] = o + b6_ref[...] + iden_ref[...]               # (TB, k*k)


# ---------------------------------------------------------------------------
# Wrapper
# ---------------------------------------------------------------------------
def stnkd_forward(x_nkw, conv_params, fc_params, *, tn=1024, tb=128):
    """x_nkw: (B, k, N) float32 in PyTorch NCW layout. Returns (B, k, k).

    tn: points-tile size. Default 1024 keeps the conv live set ~5-6 MB of
        VMEM (fits v7x's 32 MiB default scoped limit); v5e/v6e can use 2048.
    """
    B, k, N = x_nkw.shape
    tn = min(tn, N)
    assert tn == N or tn % 128 == 0, "tn must equal N or be a multiple of 128"
    nt = pl.cdiv(N, tn)

    w1t, b1, w2t, b2, w3t, b3 = conv_params
    w4, b4, w5, b5, w6, b6, iden = fc_params

    def rep2(a):                       # constant (weights/bias) full-block spec
        return pl.BlockSpec(a.shape, lambda b_, n_: (0, 0))

    pooled = pl.pallas_call(
        partial(_conv_pool_kernel, n_points=N),
        out_shape=jax.ShapeDtypeStruct((B, C3, 1), jnp.float32),
        grid=(B, nt),
        in_specs=[pl.BlockSpec((1, k, tn), lambda b_, n_: (b_, 0, n_)),
                  rep2(w1t), rep2(b1), rep2(w2t), rep2(b2), rep2(w3t), rep2(b3)],
        out_specs=pl.BlockSpec((1, C3, 1), lambda b_, n_: (b_, 0, 0)),
        scratch_shapes=[pltpu.VMEM((C3, 1), jnp.float32)],
        compiler_params=pltpu.CompilerParams(
            dimension_semantics=("parallel", "arbitrary")),
    )(x_nkw, w1t, b1, w2t, b2, w3t, b3)

    g = pooled.reshape(B, C3)                                    # (B, 1024)

    tb = min(tb, B)

    def rep1(a):
        return pl.BlockSpec(a.shape, lambda i: (0, 0))

    out = pl.pallas_call(
        _fc_head_kernel,
        out_shape=jax.ShapeDtypeStruct((B, k * k), jnp.float32),
        grid=(pl.cdiv(B, tb),),
        in_specs=[pl.BlockSpec((tb, C3), lambda i: (i, 0)),
                  rep1(w4), rep1(b4), rep1(w5), rep1(b5),
                  rep1(w6), rep1(b6), rep1(iden)],
        out_specs=pl.BlockSpec((tb, k * k), lambda i: (i, 0)),
        compiler_params=pltpu.CompilerParams(
            dimension_semantics=("parallel",)),
    )(g, w4, b4, w5, b5, w6, b6, iden)

    return out.reshape(B, k, k)


# ---------------------------------------------------------------------------
# Parameters: random conv/linear weights, eval-mode BN folded in.
# ---------------------------------------------------------------------------
def build_params(key, k):
    dims = [(k, C1), (C1, C2), (C2, C3),          # conv1..conv3 (kernel=1)
            (C3, 512), (512, 256), (256, k * k)]  # fc1..fc3
    keys = jax.random.split(key, 2 * len(dims))
    folded = []
    for i, (cin, cout) in enumerate(dims):
        w = jax.random.normal(keys[2 * i], (cin, cout), jnp.float32) \
            / jnp.sqrt(jnp.float32(cin))
        b = jax.random.normal(keys[2 * i + 1], (cout,), jnp.float32) * 0.01
        if i < 5:   # layers with BatchNorm (eval: gamma=1, beta=0, mean=0, var=1)
            gamma = jnp.ones((cout,), jnp.float32)
            beta = jnp.zeros((cout,), jnp.float32)
            mean = jnp.zeros((cout,), jnp.float32)
            var = jnp.ones((cout,), jnp.float32)
            scale = gamma / jnp.sqrt(var + BN_EPS)
            w = w * scale[None, :]                  # fold BN scale into weight
            b = (b - mean) * scale + beta           # fold BN into bias
        folded.append((w, b))

    (w1, b1), (w2, b2), (w3, b3), (w4, b4), (w5, b5), (w6, b6) = folded

    # Conv stage: weights pre-transposed to (Cout, Cin); biases as (Cout, 1).
    conv_params = (
        w1.T,                            b1.reshape(-1, 1),   # f32 (K=15 layer)
        w2.T.astype(jnp.bfloat16),       b2.reshape(-1, 1),
        w3.T.astype(jnp.bfloat16),       b3.reshape(-1, 1),
    )
    iden = jnp.eye(k, dtype=jnp.float32).reshape(1, k * k)
    fc_params = (
        w4.astype(jnp.bfloat16), b4.reshape(1, -1),
        w5.astype(jnp.bfloat16), b5.reshape(1, -1),
        w6.astype(jnp.bfloat16), b6.reshape(1, -1),
        iden,
    )
    return conv_params, fc_params


# ---------------------------------------------------------------------------
# Pure-JAX reference (mirrors the kernel's bf16-operand / f32-accum numerics).
# ---------------------------------------------------------------------------
def ref_forward(x_nkw, conv_params, fc_params):
    w1t, b1, w2t, b2, w3t, b3 = conv_params
    w4, b4, w5, b5, w6, b6, iden = fc_params
    B, k, N = x_nkw.shape

    def cmm(w, a):   # (Cout,Cin) @ (B,Cin,N) -> (B,Cout,N), f32 accumulation
        return jnp.einsum("oc,bcn->bon", w, a,
                          preferred_element_type=jnp.float32,
                          precision=jax.lax.Precision.HIGHEST)

    h = jax.nn.relu(cmm(w1t, x_nkw) + b1[None])
    h = jax.nn.relu(cmm(w2t, h.astype(jnp.bfloat16)) + b2[None])
    h = jax.nn.relu(cmm(w3t, h.astype(jnp.bfloat16)) + b3[None])
    g = jnp.max(h, axis=2)                                       # (B, 1024)

    def rmm(a, w):
        return jnp.dot(a.astype(jnp.bfloat16), w,
                       preferred_element_type=jnp.float32)

    f = jax.nn.relu(rmm(g, w4) + b4)
    f = jax.nn.relu(rmm(f, w5) + b5)
    o = rmm(f, w6) + b6 + iden
    return o.reshape(B, k, k)


if __name__ == "__main__":
    k = K_DIM
    B, N = 2, 320                       # small test shapes; N=320 with tn=128
    key = jax.random.PRNGKey(0)         # exercises multi-tile + edge masking
    kx, kp = jax.random.split(key)
    x = jax.random.normal(kx, (B, k, N), jnp.float32)   # PyTorch NCW input
    conv_params, fc_params = build_params(kp, k)

    out = jax.block_until_ready(
        stnkd_forward(x, conv_params, fc_params, tn=128))
    ref = ref_forward(x, conv_params, fc_params)

    assert out.shape == (B, k, k), out.shape
    err = float(jnp.max(jnp.abs(out - ref)))
    # bf16 matmul operands (f32 accumulation) -> bf16-aware tolerance.
    assert jnp.allclose(out, ref, atol=5e-2, rtol=2e-2), err
    print("KERNEL_OK")
</pallas_src>

<mosaic_0001>
module attributes {stable_mosaic.version = 11 : i64} {
  func.func @_conv_pool_kernel(%arg0: i32, %arg1: i32, %arg2: memref<1x15x128xf32, #tpu.memory_space<vmem>>, %arg3: memref<64x15xf32, #tpu.memory_space<vmem>>, %arg4: memref<64x1xf32, #tpu.memory_space<vmem>>, %arg5: memref<128x64xbf16, #tpu.memory_space<vmem>>, %arg6: memref<128x1xf32, #tpu.memory_space<vmem>>, %arg7: memref<1024x128xbf16, #tpu.memory_space<vmem>>, %arg8: memref<1024x1xf32, #tpu.memory_space<vmem>>, %arg9: memref<1x1024x1xf32, #tpu.memory_space<vmem>>, %arg10: memref<1024x1xf32, #tpu.memory_space<vmem>>) attributes {dimension_semantics = [#tpu.dimension_semantics<parallel>, #tpu.dimension_semantics<arbitrary>], iteration_bounds = array<i64: 2, 3>, scalar_prefetch = 0 : i64, scratch_operands = 1 : i64, tpu.core_type = #tpu.core_type<tc>, window_params = [{transform_indices = @transform_0, window_bounds = array<i64: 1, 15, 128>}, {pipeline_mode = #tpu.pipeline_mode<synchronous>, transform_indices = @transform_1, window_bounds = array<i64: 64, 15>}, {pipeline_mode = #tpu.pipeline_mode<synchronous>, transform_indices = @transform_2, window_bounds = array<i64: 64, 1>}, {pipeline_mode = #tpu.pipeline_mode<synchronous>, transform_indices = @transform_3, window_bounds = array<i64: 128, 64>}, {pipeline_mode = #tpu.pipeline_mode<synchronous>, transform_indices = @transform_4, window_bounds = array<i64: 128, 1>}, {pipeline_mode = #tpu.pipeline_mode<synchronous>, transform_indices = @transform_5, window_bounds = array<i64: 1024, 128>}, {pipeline_mode = #tpu.pipeline_mode<synchronous>, transform_indices = @transform_6, window_bounds = array<i64: 1024, 1>}, {transform_indices = @transform_7, window_bounds = array<i64: 1, 1024, 1>}]} {
    %c0_i32 = arith.constant 0 : i32
    %0 = arith.cmpi eq, %arg1, %c0_i32 : i32
    %1 = arith.extui %0 : i1 to i32
    %c0_i32_0 = arith.constant 0 : i32
    %2 = arith.cmpi ne, %1, %c0_i32_0 : i32
    scf.if %2 {
      %cst_27 = arith.constant 0xFF800000 : f32
      %46 = vector.broadcast %cst_27 : f32 to vector<1024x1xf32>
      %c0_28 = arith.constant 0 : index
      %c0_29 = arith.constant 0 : index
      %47 = vector.load %arg10[%c0_28, %c0_29] : memref<1024x1xf32, #tpu.memory_space<vmem>>, vector<1024x1xf32>
      tpu.vector_store %arg10[%c0_28, %c0_29], %46 {strides = array<i32>} : memref<1024x1xf32, #tpu.memory_space<vmem>>, vector<1024x1xf32>,
    } else {
    }
    %c0 = arith.constant 0 : index
    %c0_1 = arith.constant 0 : index
    %c0_2 = arith.constant 0 : index
    %3 = vector.load %arg2[%c0, %c0_1, %c0_2] : memref<1x15x128xf32, #tpu.memory_space<vmem>>, vector<1x15x128xf32>
    %4 = vector.shape_cast %3 : vector<1x15x128xf32> to vector<15x128xf32>
    %c0_3 = arith.constant 0 : index
    %c0_4 = arith.constant 0 : index
    %5 = vector.load %arg3[%c0_3, %c0_4] : memref<64x15xf32, #tpu.memory_space<vmem>>, vector<64x15xf32>
    %cst = arith.constant dense<0.000000e+00> : vector<64x128xf32>
    %6 = tpu.matmul %5, %4, %cst {dimension_numbers = #tpu.dot_dimension_numbers<[1], [0], [0], [1], [0, 0, 1, 1], [], []>} : vector<64x15xf32>, vector<15x128xf32>, vector<64x128xf32> -> vector<64x128xf32>
    %c0_5 = arith.constant 0 : index
    %c0_6 = arith.constant 0 : index
    %7 = vector.load %arg4[%c0_5, %c0_6] : memref<64x1xf32, #tpu.memory_space<vmem>>, vector<64x1xf32>
    %8 = vector.broadcast %7 : vector<64x1xf32> to vector<64x128xf32>
    %9 = arith.addf %6, %8 : vector<64x128xf32>
    %cst_7 = arith.constant 0.000000e+00 : f32
    %10 = vector.broadcast %cst_7 : f32 to vector<64x128xf32>
    %11 = arith.maximumf %9, %10 : vector<64x128xf32>
    %c0_8 = arith.constant 0 : index
    %c0_9 = arith.constant 0 : index
    %12 = vector.load %arg5[%c0_8, %c0_9] : memref<128x64xbf16, #tpu.memory_space<vmem>>, vector<128x64xbf16>
    %13 = arith.truncf %11 : vector<64x128xf32> to vector<64x128xbf16>
    %cst_10 = arith.constant dense<0.000000e+00> : vector<128x128xf32>
    %14 = tpu.matmul %12, %13, %cst_10 {dimension_numbers = #tpu.dot_dimension_numbers<[1], [0], [0], [1], [0, 0, 1, 1], [], []>} : vector<128x64xbf16>, vector<64x128xbf16>, vector<128x128xf32> -> vector<128x128xf32>
    %c0_11 = arith.constant 0 : index
    %c0_12 = arith.constant 0 : index
    %15 = vector.load %arg6[%c0_11, %c0_12] : memref<128x1xf32, #tpu.memory_space<vmem>>, vector<128x1xf32>
    %16 = vector.broadcast %15 : vector<128x1xf32> to vector<128x128xf32>
    %17 = arith.addf %14, %16 : vector<128x128xf32>
    %cst_13 = arith.constant 0.000000e+00 : f32
    %18 = vector.broadcast %cst_13 : f32 to vector<128x128xf32>
    %19 = arith.maximumf %17, %18 : vector<128x128xf32>
    %c0_14 = arith.constant 0 : index
    %c0_15 = arith.constant 0 : index
    %20 = vector.load %arg7[%c0_14, %c0_15] : memref<1024x128xbf16, #tpu.memory_space<vmem>>, vector<1024x128xbf16>
    %21 = arith.truncf %19 : vector<128x128xf32> to vector<128x128xbf16>
    %cst_16 = arith.constant dense<0.000000e+00> : vector<1024x128xf32>
    %22 = tpu.matmul %20, %21, %cst_16 {dimension_numbers = #tpu.dot_dimension_numbers<[1], [0], [0], [1], [0, 0, 1, 1], [], []>} : vector<1024x128xbf16>, vector<128x128xbf16>, vector<1024x128xf32> -> vector<1024x128xf32>
    %c0_17 = arith.constant 0 : index
    %c0_18 = arith.constant 0 : index
    %23 = vector.load %arg8[%c0_17, %c0_18] : memref<1024x1xf32, #tpu.memory_space<vmem>>, vector<1024x1xf32>
    %24 = vector.broadcast %23 : vector<1024x1xf32> to vector<1024x128xf32>
    %25 = arith.addf %22, %24 : vector<1024x128xf32>
    %cst_19 = arith.constant 0.000000e+00 : f32
    %26 = vector.broadcast %cst_19 : f32 to vector<1024x128xf32>
    %27 = arith.maximumf %25, %26 : vector<1024x128xf32>
    %c128_i32 = arith.constant 128 : i32
    %28 = arith.muli %arg1, %c128_i32 : i32
    %29 = tpu.iota {dimensions = array<i32: 1>} : vector<1x128xi32>
    %30 = vector.broadcast %28 : i32 to vector<1x128xi32>
    %31 = arith.addi %30, %29 : vector<1x128xi32>
    %c320_i32 = arith.constant 320 : i32
    %32 = vector.broadcast %c320_i32 : i32 to vector<1x128xi32>
    %33 = arith.cmpi slt, %31, %32 : vector<1x128xi32>
    %cst_20 = arith.constant 0xFF800000 : f32
    %34 = vector.shape_cast %33 : vector<1x128xi1> to vector<1x128xi1>
    %35 = vector.broadcast %34 : vector<1x128xi1> to vector<1024x128xi1>
    %36 = vector.broadcast %cst_20 : f32 to vector<1024x128xf32>
    %37 = arith.select %35, %27, %36 : vector<1024x128xi1>, vector<1024x128xf32>
    %c0_21 = arith.constant 0 : index
    %c0_22 = arith.constant 0 : index
    %38 = vector.load %arg10[%c0_21, %c0_22] : memref<1024x1xf32, #tpu.memory_space<vmem>>, vector<1024x1xf32>
    %cst_23 = arith.constant dense<0xFF800000> : vector<1024xf32>
    %39 = vector.multi_reduction <maximumf>, %37, %cst_23 [1] : vector<1024x128xf32> to vector<1024xf32>
    %40 = vector.shape_cast %39 : vector<1024xf32> to vector<1024x1xf32>
    %41 = arith.maximumf %38, %40 : vector<1024x1xf32>
    %c0_24 = arith.constant 0 : index
    %c0_25 = arith.constant 0 : index
    %42 = vector.load %arg10[%c0_24, %c0_25] : memref<1024x1xf32, #tpu.memory_space<vmem>>, vector<1024x1xf32>
    tpu.vector_store %arg10[%c0_24, %c0_25], %41 {strides = array<i32>} : memref<1024x1xf32, #tpu.memory_space<vmem>>, vector<1024x1xf32>,
    %c2_i32 = arith.constant 2 : i32
    %43 = arith.cmpi eq, %arg1, %c2_i32 : i32
    %44 = arith.extui %43 : i1 to i32
    %c0_i32_26 = arith.constant 0 : i32
    %45 = arith.cmpi ne, %44, %c0_i32_26 : i32
    scf.if %45 {
      %c0_27 = arith.constant 0 : index
      %c0_28 = arith.constant 0 : index
      %46 = vector.load %arg10[%c0_27, %c0_28] : memref<1024x1xf32, #tpu.memory_space<vmem>>, vector<1024x1xf32>
      %c0_29 = arith.constant 0 : index
      %c0_30 = arith.constant 0 : index
      %c0_31 = arith.constant 0 : index
      %47 = vector.load %arg9[%c0_29, %c0_30, %c0_31] : memref<1x1024x1xf32, #tpu.memory_space<vmem>>, vector<1x1024x1xf32>
      %48 = vector.shape_cast %47 : vector<1x1024x1xf32> to vector<1024x1xf32>
      %49 = vector.shape_cast %46 : vector<1024x1xf32> to vector<1x1024x1xf32>
      tpu.vector_store %arg9[%c0_29, %c0_30, %c0_31], %49 {strides = array<i32>} : memref<1x1024x1xf32, #tpu.memory_space<vmem>>, vector<1x1024x1xf32>,
    } else {
    }
    return
  }
  func.func @transform_0(%arg0: i32, %arg1: i32) -> (i32, i32, i32) {
    %c0_i32 = arith.constant 0 : i32
    %c0_i32_0 = arith.constant 0 : i32
    return %arg0, %c0_i32, %arg1 : i32, i32, i32
  }
  func.func @transform_1(%arg0: i32, %arg1: i32) -> (i32, i32) {
    %c0_i32 = arith.constant 0 : i32
    %c0_i32_0 = arith.constant 0 : i32
    %c0_i32_1 = arith.constant 0 : i32
    return %c0_i32, %c0_i32_0 : i32, i32
  }
  func.func @transform_2(%arg0: i32, %arg1: i32) -> (i32, i32) {
    %c0_i32 = arith.constant 0 : i32
    %c0_i32_0 = arith.constant 0 : i32
    %c0_i32_1 = arith.constant 0 : i32
    return %c0_i32, %c0_i32_0 : i32, i32
  }
  func.func @transform_3(%arg0: i32, %arg1: i32) -> (i32, i32) {
    %c0_i32 = arith.constant 0 : i32
    %c0_i32_0 = arith.constant 0 : i32
    %c0_i32_1 = arith.constant 0 : i32
    return %c0_i32, %c0_i32_0 : i32, i32
  }
  func.func @transform_4(%arg0: i32, %arg1: i32) -> (i32, i32) {
    %c0_i32 = arith.constant 0 : i32
    %c0_i32_0 = arith.constant 0 : i32
    %c0_i32_1 = arith.constant 0 : i32
    return %c0_i32, %c0_i32_0 : i32, i32
  }
  func.func @transform_5(%arg0: i32, %arg1: i32) -> (i32, i32) {
    %c0_i32 = arith.constant 0 : i32
    %c0_i32_0 = arith.constant 0 : i32
    %c0_i32_1 = arith.constant 0 : i32
    return %c0_i32, %c0_i32_0 : i32, i32
  }
  func.func @transform_6(%arg0: i32, %arg1: i32) -> (i32, i32) {
    %c0_i32 = arith.constant 0 : i32
    %c0_i32_0 = arith.constant 0 : i32
    %c0_i32_1 = arith.constant 0 : i32
    return %c0_i32, %c0_i32_0 : i32, i32
  }
  func.func @transform_7(%arg0: i32, %arg1: i32) -> (i32, i32, i32) {
    %c0_i32 = arith.constant 0 : i32
    %c0_i32_0 = arith.constant 0 : i32
    %c0_i32_1 = arith.constant 0 : i32
    return %arg0, %c0_i32, %c0_i32_0 : i32, i32, i32
  }
}

</mosaic_0001>

<llo_original>
// kernel: tpu_custom_call.1
$region0: #{tpu_custom_call.1}
  #allocation0 [shape = 'u32[]', space=smem, size = 0x4, offset = 0x4, fixed_abs, tag = 'smem constant byte address 0x4 - core index']
  #allocation1 [shape = 'u32[72,128]{1,0:T(1,128)}', space=vmem, size = 0x9000, scoped, tag = 'internal scratch']
  #allocation2 [shape = 'f32[1024,1]{1,0:T(8,128)}', space=vmem, size = 0x80000, scoped, tag = 'scratch operand']
  %s0 = inlined_call_operand.vmem [shape: f32[2,15,320], index: 0, kind: input, shape index: {}]
  %s1 = inlined_call_operand.vmem [shape: f32[64,15], index: 1, kind: input, shape index: {}]
  %s2 = inlined_call_operand.vmem [shape: f32[64,1], index: 2, kind: input, shape index: {}]
  %s3 = inlined_call_operand.vmem [shape: bf16[128,64], index: 3, kind: input, shape index: {}]
  %s4 = inlined_call_operand.vmem [shape: f32[128,1], index: 4, kind: input, shape index: {}]
  %s5 = inlined_call_operand.vmem [shape: bf16[1024,128], index: 5, kind: input, shape index: {}]
  %s6 = inlined_call_operand.vmem [shape: f32[1024,1], index: 6, kind: input, shape index: {}]
  %s7 = inlined_call_operand.vmem [shape: f32[2,1024,1], index: 7, kind: output, shape index: {}]
  %s8 = sld [smem:[#allocation0]]
  $region107: #{tpu_custom_call.1} parent=0
    _
  %s10 = ssub.s32 1, %s8
  %s11 = scalar_select 0, %s10, %s8
  $region1: #{tpu_custom_call.1} parent=0
    #allocation3 [shape = 'u8[16384]{0}', space=vmem, size = 0x4000, scoped, tag = 'input window, operand 0']
    loop: start=0, step=1, limit=8
    $region2: #{tpu_custom_call.1} parent=1 // loop_pre_header
      _
    $region3: #{tpu_custom_call.1} parent=1 // loop_header
      %s13 = sphi 0, %s17
      %p14 = scmp.ge.s32.totalorder %s13, 8
      %s20 = sphi 0, %s32
      %s21 = sphi 0, %s28
      %s22 = sphi 0, %s20
      %s23 = sphi 0, %s21
      %s24 = sphi 0, %s22
      %s25 = sphi 0, %s23
      %s37 = sphi 0, %s39
      %s40 = sphi 0, %s37
      %s41 = sphi 0, %s40
      %s57 = sphi 0, %s41
      %s61 = sphi 0, %s61
      %s63 = sphi 0, %s61
      %s64 = sphi 0, %s63
      %s78 = sphi 0, %s64
      %s82 = sphi 0, %s82
      %s84 = sphi 0, %s82
      %s85 = sphi 0, %s84
      %s99 = sphi 0, %s85
      %s103 = sphi 0, %s103
      %s105 = sphi 0, %s103
      %s106 = sphi 0, %s105
      %s120 = sphi 0, %s106
      %s124 = sphi 0, %s124
      %s126 = sphi 0, %s124
      %s127 = sphi 0, %s126
      %s141 = sphi 0, %s127
      %s145 = sphi 0, %s145
      %s147 = sphi 0, %s145
      %s148 = sphi 0, %s147
      %s162 = sphi 0, %s148
      %s166 = sphi 0, %s166
      %s168 = sphi 0, %s166
      %s169 = sphi 0, %s168
      %s183 = sphi 0, %s169
      %s189 = sphi 0, %s191
      %s192 = sphi 0, %s189
      %s193 = sphi 0, %s192
      %s209 = sphi 0, %s193
    $region4: #{tpu_custom_call.1} parent=1 // loop_header_branch
      %16 = sbr.rel (%p14) target = $region8
    $region5: #{tpu_custom_call.1} parent=1 // loop_body
      %s18 = ssub.s32 %s13, 1
      %s19 = ssub.s32 %s13, 2
      %s26 = sadd.s32 1, %s21
      %p27 = scmp.ge.s32.totalorder %s26, 3
      %s28 = scalar_select %p27, 0, %s26
      %s29 = sadd.s32 1, %s20
      %s30 = scalar_select %p27, %s29, %s20
      %p31 = scmp.ge.s32.totalorder %s30, 2
      %s32 = scalar_select %p31, 0, %s30
      %s33 = ssub.s32 %s20, %s32
      %s34 = ssub.s32 %s21, %s28
      %s35 = sor.u32 %s33, %s34
      %p36 = scmp.eq.s32.totalorder %s35, 0
      %s38 = sadd.s32 %s37, 1
      %s39 = scalar_select %p36, %s37, %s38
      %p42 = pneg %p36
      %p43 = scmp.eq.s32.totalorder %s13, 5
      %p44 = por %p42, %p43
      %p45 = scmp.ne.s32.totalorder %s37, %s40
      %p46 = scmp.eq.s32.totalorder %s13, 0
      %p47 = por %p45, %p46
      %p48 = scmp.ne.s32.totalorder %s37, %s40
      %p49 = scmp.eq.s32.totalorder %s18, 5
      %p50 = por %p48, %p49
      %p51 = scmp.ne.s32.totalorder %s40, %s41
      %p52 = scmp.eq.s32.totalorder %s18, 0
      %p53 = por %p51, %p52
      %p54 = scmp.ne.s32.totalorder %s40, %s41
      %p55 = scmp.eq.s32.totalorder %s19, 5
      %p56 = por %p54, %p55
      %p58 = scmp.ne.s32.totalorder %s41, %s57
      %p59 = scmp.eq.s32.totalorder %s19, 0
      %p60 = por %p58, %p59
      %s62 = sadd.s32 %s61, 1
      %p65 = scmp.eq.s32.totalorder %s13, 5
      %p66 = scmp.ne.s32.totalorder %s61, %s63
      %p67 = scmp.eq.s32.totalorder %s13, 0
      %p68 = por %p66, %p67
      %p69 = scmp.ne.s32.totalorder %s61, %s63
      %p70 = scmp.eq.s32.totalorder %s18, 5
      %p71 = por %p69, %p70
      %p72 = scmp.ne.s32.totalorder %s63, %s64
      %p73 = scmp.eq.s32.totalorder %s18, 0
      %p74 = por %p72, %p73
      %p75 = scmp.ne.s32.totalorder %s63, %s64
      %p76 = scmp.eq.s32.totalorder %s19, 5
      %p77 = por %p75, %p76
      %p79 = scmp.ne.s32.totalorder %s64, %s78
      %p80 = scmp.eq.s32.totalorder %s19, 0
      %p81 = por %p79, %p80
      %s83 = sadd.s32 %s82, 1
      %p86 = scmp.eq.s32.totalorder %s13, 5
      %p87 = scmp.ne.s32.totalorder %s82, %s84
      %p88 = scmp.eq.s32.totalorder %s13, 0
      %p89 = por %p87, %p88
      %p90 = scmp.ne.s32.totalorder %s82, %s84
      %p91 = scmp.eq.s32.totalorder %s18, 5
      %p92 = por %p90, %p91
      %p93 = scmp.ne.s32.totalorder %s84, %s85
      %p94 = scmp.eq.s32.totalorder %s18, 0
      %p95 = por %p93, %p94
      %p96 = scmp.ne.s32.totalorder %s84, %s85
      %p97 = scmp.eq.s32.totalorder %s19, 5
      %p98 = por %p96, %p97
      %p100 = scmp.ne.s32.totalorder %s85, %s99
      %p101 = scmp.eq.s32.totalorder %s19, 0
      %p102 = por %p100, %p101
      %s104 = sadd.s32 %s103, 1
      %p107 = scmp.eq.s32.totalorder %s13, 5
      %p108 = scmp.ne.s32.totalorder %s103, %s105
      %p109 = scmp.eq.s32.totalorder %s13, 0
      %p110 = por %p108, %p109
      %p111 = scmp.ne.s32.totalorder %s103, %s105
      %p112 = scmp.eq.s32.totalorder %s18, 5
      %p113 = por %p111, %p112
      %p114 = scmp.ne.s32.totalorder %s105, %s106
      %p115 = scmp.eq.s32.totalorder %s18, 0
      %p116 = por %p114, %p115
      %p117 = scmp.ne.s32.totalorder %s105, %s106
      %p118 = scmp.eq.s32.totalorder %s19, 5
      %p119 = por %p117, %p118
      %p121 = scmp.ne.s32.totalorder %s106, %s120
      %p122 = scmp.eq.s32.totalorder %s19, 0
      %p123 = por %p121, %p122
      %s125 = sadd.s32 %s124, 1
      %p128 = scmp.eq.s32.totalorder %s13, 5
      %p129 = scmp.ne.s32.totalorder %s124, %s126
      %p130 = scmp.eq.s32.totalorder %s13, 0
      %p131 = por %p129, %p130
      %p132 = scmp.ne.s32.totalorder %s124, %s126
      %p133 = scmp.eq.s32.totalorder %s18, 5
      %p134 = por %p132, %p133
      %p135 = scmp.ne.s32.totalorder %s126, %s127
      %p136 = scmp.eq.s32.totalorder %s18, 0
      %p137 = por %p135, %p136
      %p138 = scmp.ne.s32.totalorder %s126, %s127
      %p139 = scmp.eq.s32.totalorder %s19, 5
      %p140 = por %p138, %p139
      %p142 = scmp.ne.s32.totalorder %s127, %s141
      %p143 = scmp.eq.s32.totalorder %s19, 0
      %p144 = por %p142, %p143
      %s146 = sadd.s32 %s145, 1
      %p149 = scmp.eq.s32.totalorder %s13, 5
      %p150 = scmp.ne.s32.totalorder %s145, %s147
      %p151 = scmp.eq.s32.totalorder %s13, 0
      %p152 = por %p150, %p151
      %p153 = scmp.ne.s32.totalorder %s145, %s147
      %p154 = scmp.eq.s32.totalorder %s18, 5
      %p155 = por %p153, %p154
      %p156 = scmp.ne.s32.totalorder %s147, %s148
      %p157 = scmp.eq.s32.totalorder %s18, 0
      %p158 = por %p156, %p157
      %p159 = scmp.ne.s32.totalorder %s147, %s148
      %p160 = scmp.eq.s32.totalorder %s19, 5
      %p161 = por %p159, %p160
      %p163 = scmp.ne.s32.totalorder %s148, %s162
      %p164 = scmp.eq.s32.totalorder %s19, 0
      %p165 = por %p163, %p164
      %s167 = sadd.s32 %s166, 1
      %p170 = scmp.eq.s32.totalorder %s13, 5
      %p171 = scmp.ne.s32.totalorder %s166, %s168
      %p172 = scmp.eq.s32.totalorder %s13, 0
      %p173 = por %p171, %p172
      %p174 = scmp.ne.s32.totalorder %s166, %s168
      %p175 = scmp.eq.s32.totalorder %s18, 5
      %p176 = por %p174, %p175
      %p177 = scmp.ne.s32.totalorder %s168, %s169
      %p178 = scmp.eq.s32.totalorder %s18, 0
      %p179 = por %p177, %p178
      %p180 = scmp.ne.s32.totalorder %s168, %s169
      %p181 = scmp.eq.s32.totalorder %s19, 5
      %p182 = por %p180, %p181
      %p184 = scmp.ne.s32.totalorder %s169, %s183
      %p185 = scmp.eq.s32.totalorder %s19, 0
      %p186 = por %p184, %p185
      %s187 = ssub.s32 %s20, %s32
      %p188 = scmp.eq.s32.totalorder %s187, 0
      %s190 = sadd.s32 %s189, 1
      %s191 = scalar_select %p188, %s189, %s190
      %p194 = pneg %p188
      %p195 = scmp.eq.s32.totalorder %s13, 5
      %p196 = por %p194, %p195
      %p197 = scmp.ne.s32.totalorder %s189, %s192
      %p198 = scmp.eq.s32.totalorder %s13, 0
      %p199 = por %p197, %p198
      %p200 = scmp.ne.s32.totalorder %s189, %s192
      %p201 = scmp.eq.s32.totalorder %s18, 5
      %p202 = por %p200, %p201
      %p203 = scmp.ne.s32.totalorder %s192, %s193
      %p204 = scmp.eq.s32.totalorder %s18, 0
      %p205 = por %p203, %p204
      %p206 = scmp.ne.s32.totalorder %s192, %s193
      %p207 = scmp.eq.s32.totalorder %s19, 5
      %p208 = por %p206, %p207
      %p210 = scmp.ne.s32.totalorder %s193, %s209
      %p211 = scmp.eq.s32.totalorder %s19, 0
      %p212 = por %p210, %p211
      %p213 = scmp.le.s32.totalorder 1, %s13
      %p214 = scmp.lt.s32.totalorder %s13, 7
      %p215 = pnand %p213, %p214
      %p216 = pneg %p215
      // Predicated region
      $region9: #{tpu_custom_call.1} parent=5 // pred_check
        _
      $region10: #{tpu_custom_call.1} parent=5 // pred_check_branch
        %218 = sbr.rel (%p215) target = $region12
      $region11: #{tpu_custom_call.1} parent=5 // pred_region
        %s219 = ssub.s32 %s13, 1
        // Predicated region
        $region13: #{tpu_custom_call.1} parent=11 // pred_check
          %p220 = pneg %p74
        $region14: #{tpu_custom_call.1} parent=11 // pred_check_branch
          %222 = sbr.rel (%p220) target = $region16
        $region15: #{tpu_custom_call.1} parent=11 // pred_region
          _
        $region16: #{tpu_custom_call.1} parent=11 // pred_fallthru
          _
        // Predicated region
        $region17: #{tpu_custom_call.1} parent=11 // pred_check
          %p223 = pneg %p95
        $region18: #{tpu_custom_call.1} parent=11 // pred_check_branch
          %225 = sbr.rel (%p223) target = $region20
        $region19: #{tpu_custom_call.1} parent=11 // pred_region
          _
        $region20: #{tpu_custom_call.1} parent=11 // pred_fallthru
          _
        // Predicated region
        $region21: #{tpu_custom_call.1} parent=11 // pred_check
          %p226 = pneg %p116
        $region22: #{tpu_custom_call.1} parent=11 // pred_check_branch
          %228 = sbr.rel (%p226) target = $region24
        $region23: #{tpu_custom_call.1} parent=11 // pred_region
          _
        $region24: #{tpu_custom_call.1} parent=11 // pred_fallthru
          _
        // Predicated region
        $region25: #{tpu_custom_call.1} parent=11 // pred_check
          %p229 = pneg %p137
        $region26: #{tpu_custom_call.1} parent=11 // pred_check_branch
          %231 = sbr.rel (%p229) target = $region28
        $region27: #{tpu_custom_call.1} parent=11 // pred_region
          _
        $region28: #{tpu_custom_call.1} parent=11 // pred_fallthru
          _
        // Predicated region
        $region29: #{tpu_custom_call.1} parent=11 // pred_check
          %p232 = pneg %p158
        $region30: #{tpu_custom_call.1} parent=11 // pred_check_branch
          %234 = sbr.rel (%p232) target = $region32
        $region31: #{tpu_custom_call.1} parent=11 // pred_region
          _
        $region32: #{tpu_custom_call.1} parent=11 // pred_fallthru
          _
        // Predicated region
        $region33: #{tpu_custom_call.1} parent=11 // pred_check
          %p235 = pneg %p179
        $region34: #{tpu_custom_call.1} parent=11 // pred_check_branch
          %237 = sbr.rel (%p235) target = $region36
        $region35: #{tpu_custom_call.1} parent=11 // pred_region
          _
        $region36: #{tpu_custom_call.1} parent=11 // pred_fallthru
          _
      $region12: #{tpu_custom_call.1} parent=5 // pred_fallthru
        _
      %p238 = scmp.lt.s32.totalorder %s13, 6
      // Predicated region
      $region37: #{tpu_custom_call.1} parent=5 // pred_check
        %p239 = pneg %p238
      $region38: #{tpu_custom_call.1} parent=5 // pred_check_branch
        %241 = sbr.rel (%p239) target = $region40
      $region39: #{tpu_custom_call.1} parent=5 // pred_region
        // Predicated region
        $region41: #{tpu_custom_call.1} parent=39 // pred_check
          %p242 = pneg %p47
        $region42: #{tpu_custom_call.1} parent=39 // pred_check_branch
          %244 = sbr.rel (%p242) target = $region44
        $region43: #{tpu_custom_call.1} parent=39 // pred_region
          %s245 = sand.u32 %s37, 1
          %s246 = sand.u32 %s37, 1
          %s247 = smul.addr %s246, 16
          %s248 = scalar_lea.vmem [#allocation3], %s247
          %s249 = smul.addr %s20, 6
          %s250 = sadd.s32 %s21, %s249
          %s251 = smul.addr %s250, 8
          %s252 = scalar_lea.vmem %s0, %s251
          // Predicated region
          $region45: #{tpu_custom_call.1} parent=43 // pred_check
            _
          $region46: #{tpu_custom_call.1} parent=43 // pred_check_branch
            %254 = sbr.rel (0) target = $region48
          $region47: #{tpu_custom_call.1} parent=43 // pred_region
            // Predicated region
            $region49: #{tpu_custom_call.1} parent=47 // pred_check
              _
            $region50: #{tpu_custom_call.1} parent=47 // pred_check_branch
              %256 = sbr.rel (0) target = $region52
            $region51: #{tpu_custom_call.1} parent=47 // pred_region
              // Predicated region
              $region64: #{tpu_custom_call.1} parent=51 // pred_check
                _
              $region65: #{tpu_custom_call.1} parent=51 // pred_check_branch
                %274 = sbr.rel (0) target = $region67
              $region66: #{tpu_custom_call.1} parent=51 // pred_region
                loop: start=0, step=1, limit=1
                $region68: #{tpu_custom_call.1} parent=66 // loop_pre_header
                  _
                $region69: #{tpu_custom_call.1} parent=66 // loop_header
                  %s276 = sphi 0, %s280
                  %p277 = scmp.ge.s32.totalorder %s276, 1
                  %s281 = sphi %s252, %s252
                  %s282 = sphi %s248, %s248
                $region70: #{tpu_custom_call.1} parent=66 // loop_header_branch
                  %279 = sbr.rel (%p277) target = $region74
                $region71: #{tpu_custom_call.1} parent=66 // loop_body
                  %v283 = vld [vmem:[%s281] sm:$0xff]
                  %284 = vst [vmem:[%s282] sm:$0xff] %v283
                  %v285 = vld [vmem:[%s281 + $0x18] sm:$0xff]
                  %286 = vst [vmem:[%s282 + $0x8] sm:$0xff] %v285
                $region72: #{tpu_custom_call.1} parent=66 // loop_footer
                  %s280 = sadd.s32 1, %s276
                $region73: #{tpu_custom_call.1} parent=66 // loop_footer_branch
                  %275 = sbr.rel target = $region69
                $region74: #{tpu_custom_call.1} parent=66 // loop_exit
                  _
              $region67: #{tpu_custom_call.1} parent=51 // pred_fallthru
                _
              // Predicated region
              $region75: #{tpu_custom_call.1} parent=51 // pred_check
                _
              $region76: #{tpu_custom_call.1} parent=51 // pred_check_branch
                %288 = sbr.rel target = $region78
              $region77: #{tpu_custom_call.1} parent=51 // pred_region
                _
              $region78: #{tpu_custom_call.1} parent=51 // pred_fallthru
                _
            $region52: #{tpu_custom_call.1} parent=47 // pred_fallthru
              _
            // Predicated region
            $region53: #{tpu_custom_call.1} parent=47 // pred_check
              _
            $region54: #{tpu_custom_call.1} parent=47 // pred_check_branch
              %258 = sbr.rel target = $region56
            $region55: #{tpu_custom_call.1} parent=47 // pred_region
              %s260 = ssub.s32 256, 1
              loop: start=0, step=1, limit=1
              $region57: #{tpu_custom_call.1} parent=55 // loop_pre_header
                _
              $region58: #{tpu_custom_call.1} parent=55 // loop_header
                %s262 = sphi 0, %s266
                %p263 = scmp.ge.s32.totalorder %s262, 1
                %s267 = sphi %s252, %s252
                %s268 = sphi %s248, %s248
              $region59: #{tpu_custom_call.1} parent=55 // loop_header_branch
                %265 = sbr.rel (%p263) target = $region63
              $region60: #{tpu_custom_call.1} parent=55 // loop_body
                %v269 = vld [vmem:[%s267] sm:%s260]
                %270 = vst [vmem:[%s268] sm:%s260] %v269
                %v271 = vld [vmem:[%s267 + $0x18] sm:%s260]
                %272 = vst [vmem:[%s268 + $0x8] sm:%s260] %v271
              $region61: #{tpu_custom_call.1} parent=55 // loop_footer
                %s266 = sadd.s32 1, %s262
              $region62: #{tpu_custom_call.1} parent=55 // loop_footer_branch
                %261 = sbr.rel target = $region58
              $region63: #{tpu_custom_call.1} parent=55 // loop_exit
                _
            $region56: #{tpu_custom_call.1} parent=47 // pred_fallthru
              _
          $region48: #{tpu_custom_call.1} parent=43 // pred_fallthru
            _
          %289 = vnop
        $region44: #{tpu_custom_call.1} parent=39 // pred_fallthru
          _
      $region40: #{tpu_custom_call.1} parent=5 // pred_fallthru
        _
      %p290 = scmp.le.s32.totalorder 1, %s13
      %p291 = scmp.lt.s32.totalorder %s13, 7
      %p292 = pnand %p290, %p291
      %p293 = pneg %p292
      // Predicated region
      $region79: #{tpu_custom_call.1} parent=5 // pred_check
        _
      $region80: #{tpu_custom_call.1} parent=5 // pred_check_branch
        %295 = sbr.rel (%p292) target = $region82
      $region81: #{tpu_custom_call.1} parent=5 // pred_region
        %s296 = ssub.s32 %s13, 1
        %s297 = sand.u32 %s40, 1
        %s298 = sand.u32 %s40, 1
        %s299 = smul.addr %s298, 16
        %s300 = scalar_lea.vmem [#allocation3], %s299
        // Predicated region
        $region83: #{tpu_custom_call.1} parent=81 // pred_check
          %p301 = pneg %p53
        $region84: #{tpu_custom_call.1} parent=81 // pred_check_branch
          %303 = sbr.rel (%p301) target = $region86
        $region85: #{tpu_custom_call.1} parent=81 // pred_region
          _
        $region86: #{tpu_custom_call.1} parent=81 // pred_fallthru
          _
        %s304 = sand.u32 %s40, 1
        %s305 = sand.u32 %s40, 1
        %s306 = smul.addr %s305, 16
        %s307 = scalar_lea.vmem [#allocation3], %s306
        %p308 = pneg %p53
        %p309 = pneg %p50
        %p310 = pneg %p74
        %p311 = pneg %p71
        %p312 = pneg %p95
        %p313 = pneg %p92
        %p314 = pneg %p116
        %p315 = pneg %p113
        %p316 = pneg %p137
        %p317 = pneg %p134
        %p318 = pneg %p158
        %p319 = pneg %p155
        %p320 = pneg %p179
        %p321 = pneg %p176
        %p322 = pneg %p205
        %p323 = pneg %p202
        %p324 = scmp.lt.s32.totalorder %s22, 1
        %s325 = scalar_select %p324, %s22, 1
        %s326 = smul.addr %s325, 128
        %s327 = smul.addr %s326, 8
        %s328 = scalar_lea.vmem %s7, %s327
        %p329 = scmp.lt.s32.totalorder %s22, 1
        %s330 = scalar_select %p329, %s22, 1
        %s331 = smul.addr %s330, 128
        %s332 = smul.addr %s331, 8
        %s333 = scalar_lea.vmem %s7, %s332
        %p335 = scmp.eq.s32.totalorder %s23, 0
        // Predicated region
        $region87: #{tpu_custom_call.1} parent=81 // pred_check
          %p336 = pneg %p335
        $region88: #{tpu_custom_call.1} parent=81 // pred_check_branch
          %338 = sbr.rel (%p336) target = $region90
        $region89: #{tpu_custom_call.1} parent=81 // pred_region
          %vm339 = vcmask 7168
          %340 = vst.msk [vmem:[#allocation2] sm:$0xff] %vm339, -inf
          %341 = vst.msk [vmem:[#allocation2 + $0x8] sm:$0xff] %vm339, -inf
          %342 = vst.msk [vmem:[#allocation2 + $0x10] sm:$0xff] %vm339, -inf
          %343 = vst.msk [vmem:[#allocation2 + $0x18] sm:$0xff] %vm339, -inf
          %344 = vst.msk [vmem:[#allocation2 + $0x20] sm:$0xff] %vm339, -inf
          %345 = vst.msk [vmem:[#allocation2 + $0x28] sm:$0xff] %vm339, -inf
          %346 = vst.msk [vmem:[#allocation2 + $0x30] sm:$0xff] %vm339, -inf
          %347 = vst.msk [vmem:[#allocation2 + $0x38] sm:$0xff] %vm339, -inf
          %348 = vst.msk [vmem:[#allocation2 + $0x40] sm:$0xff] %vm339, -inf
          %349 = vst.msk [vmem:[#allocation2 + $0x48] sm:$0xff] %vm339, -inf
          %350 = vst.msk [vmem:[#allocation2 + $0x50] sm:$0xff] %vm339, -inf
          %351 = vst.msk [vmem:[#allocation2 + $0x58] sm:$0xff] %vm339, -inf
          %352 = vst.msk [vmem:[#allocation2 + $0x60] sm:$0xff] %vm339, -inf
          %353 = vst.msk [vmem:[#allocation2 + $0x68] sm:$0xff] %vm339, -inf
          %354 = vst.msk [vmem:[#allocation2 + $0x70] sm:$0xff] %vm339, -inf
          %355 = vst.msk [vmem:[#allocation2 + $0x78] sm:$0xff] %vm339, -inf
          %356 = vst.msk [vmem:[#allocation2 + $0x80] sm:$0xff] %vm339, -inf
          %357 = vst.msk [vmem:[#allocation2 + $0x88] sm:$0xff] %vm339, -inf
          %358 = vst.msk [vmem:[#allocation2 + $0x90] sm:$0xff] %vm339, -inf
          %359 = vst.msk [vmem:[#allocation2 + $0x98] sm:$0xff] %vm339, -inf
          %360 = vst.msk [vmem:[#allocation2 + $0xa0] sm:$0xff] %vm339, -inf
          %361 = vst.msk [vmem:[#allocation2 + $0xa8] sm:$0xff] %vm339, -inf
          %362 = vst.msk [vmem:[#allocation2 + $0xb0] sm:$0xff] %vm339, -inf
          %363 = vst.msk [vmem:[#allocation2 + $0xb8] sm:$0xff] %vm339, -inf
          %364 = vst.msk [vmem:[#allocation2 + $0xc0] sm:$0xff] %vm339, -inf
          %365 = vst.msk [vmem:[#allocation2 + $0xc8] sm:$0xff] %vm339, -inf
          %366 = vst.msk [vmem:[#allocation2 + $0xd0] sm:$0xff] %vm339, -inf
          %367 = vst.msk [vmem:[#allocation2 + $0xd8] sm:$0xff] %vm339, -inf
          %368 = vst.msk [vmem:[#allocation2 + $0xe0] sm:$0xff] %vm339, -inf
          %369 = vst.msk [vmem:[#allocation2 + $0xe8] sm:$0xff] %vm339, -inf
          %370 = vst.msk [vmem:[#allocation2 + $0xf0] sm:$0xff] %vm339, -inf
          %371 = vst.msk [vmem:[#allocation2 + $0xf8] sm:$0xff] %vm339, -inf
          %372 = vst.msk [vmem:[#allocation2 + $0x100] sm:$0xff] %vm339, -inf
          %373 = vst.msk [vmem:[#allocation2 + $0x108] sm:$0xff] %vm339, -inf
          %374 = vst.msk [vmem:[#allocation2 + $0x110] sm:$0xff] %vm339, -inf
          %375 = vst.msk [vmem:[#allocation2 + $0x118] sm:$0xff] %vm339, -inf
          %376 = vst.msk [vmem:[#allocation2 + $0x120] sm:$0xff] %vm339, -inf
          %377 = vst.msk [vmem:[#allocation2 + $0x128] sm:$0xff] %vm339, -inf
          %378 = vst.msk [vmem:[#allocation2 + $0x130] sm:$0xff] %vm339, -inf
          %379 = vst.msk [vmem:[#allocation2 + $0x138] sm:$0xff] %vm339, -inf
          %380 = vst.msk [vmem:[#allocation2 + $0x140] sm:$0xff] %vm339, -inf
          %381 = vst.msk [vmem:[#allocation2 + $0x148] sm:$0xff] %vm339, -inf
          %382 = vst.msk [vmem:[#allocation2 + $0x150] sm:$0xff] %vm339, -inf
          %383 = vst.msk [vmem:[#allocation2 + $0x158] sm:$0xff] %vm339, -inf
          %384 = vst.msk [vmem:[#allocation2 + $0x160] sm:$0xff] %vm339, -inf
          %385 = vst.msk [vmem:[#allocation2 + $0x168] sm:$0xff] %vm339, -inf
          %386 = vst.msk [vmem:[#allocation2 + $0x170] sm:$0xff] %vm339, -inf
          %387 = vst.msk [vmem:[#allocation2 + $0x178] sm:$0xff] %vm339, -inf
          %388 = vst.msk [vmem:[#allocation2 + $0x180] sm:$0xff] %vm339, -inf
          %389 = vst.msk [vmem:[#allocation2 + $0x188] sm:$0xff] %vm339, -inf
          %390 = vst.msk [vmem:[#allocation2 + $0x190] sm:$0xff] %vm339, -inf
          %391 = vst.msk [vmem:[#allocation2 + $0x198] sm:$0xff] %vm339, -inf
          %392 = vst.msk [vmem:[#allocation2 + $0x1a0] sm:$0xff] %vm339, -inf
          %393 = vst.msk [vmem:[#allocation2 + $0x1a8] sm:$0xff] %vm339, -inf
          %394 = vst.msk [vmem:[#allocation2 + $0x1b0] sm:$0xff] %vm339, -inf
          %395 = vst.msk [vmem:[#allocation2 + $0x1b8] sm:$0xff] %vm339, -inf
          %396 = vst.msk [vmem:[#allocation2 + $0x1c0] sm:$0xff] %vm339, -inf
          %397 = vst.msk [vmem:[#allocation2 + $0x1c8] sm:$0xff] %vm339, -inf
          %398 = vst.msk [vmem:[#allocation2 + $0x1d0] sm:$0xff] %vm339, -inf
          %399 = vst.msk [vmem:[#allocation2 + $0x1d8] sm:$0xff] %vm339, -inf
          %400 = vst.msk [vmem:[#allocation2 + $0x1e0] sm:$0xff] %vm339, -inf
          %401 = vst.msk [vmem:[#allocation2 + $0x1e8] sm:$0xff] %vm339, -inf
          %402 = vst.msk [vmem:[#allocation2 + $0x1f0] sm:$0xff] %vm339, -inf
          %403 = vst.msk [vmem:[#allocation2 + $0x1f8] sm:$0xff] %vm339, -inf
          %404 = vst.msk [vmem:[#allocation2 + $0x200] sm:$0xff] %vm339, -inf
          %405 = vst.msk [vmem:[#allocation2 + $0x208] sm:$0xff] %vm339, -inf
          %406 = vst.msk [vmem:[#allocation2 + $0x210] sm:$0xff] %vm339, -inf
          %407 = vst.msk [vmem:[#allocation2 + $0x218] sm:$0xff] %vm339, -inf
          %408 = vst.msk [vmem:[#allocation2 + $0x220] sm:$0xff] %vm339, -inf
          %409 = vst.msk [vmem:[#allocation2 + $0x228] sm:$0xff] %vm339, -inf
          %410 = vst.msk [vmem:[#allocation2 + $0x230] sm:$0xff] %vm339, -inf
          %411 = vst.msk [vmem:[#allocation2 + $0x238] sm:$0xff] %vm339, -inf
          %412 = vst.msk [vmem:[#allocation2 + $0x240] sm:$0xff] %vm339, -inf
          %413 = vst.msk [vmem:[#allocation2 + $0x248] sm:$0xff] %vm339, -inf
          %414 = vst.msk [vmem:[#allocation2 + $0x250] sm:$0xff] %vm339, -inf
          %415 = vst.msk [vmem:[#allocation2 + $0x258] sm:$0xff] %vm339, -inf
          %416 = vst.msk [vmem:[#allocation2 + $0x260] sm:$0xff] %vm339, -inf
          %417 = vst.msk [vmem:[#allocation2 + $0x268] sm:$0xff] %vm339, -inf
          %418 = vst.msk [vmem:[#allocation2 + $0x270] sm:$0xff] %vm339, -inf
          %419 = vst.msk [vmem:[#allocation2 + $0x278] sm:$0xff] %vm339, -inf
          %420 = vst.msk [vmem:[#allocation2 + $0x280] sm:$0xff] %vm339, -inf
          %421 = vst.msk [vmem:[#allocation2 + $0x288] sm:$0xff] %vm339, -inf
          %422 = vst.msk [vmem:[#allocation2 + $0x290] sm:$0xff] %vm339, -inf
          %423 = vst.msk [vmem:[#allocation2 + $0x298] sm:$0xff] %vm339, -inf
          %424 = vst.msk [vmem:[#allocation2 + $0x2a0] sm:$0xff] %vm339, -inf
          %425 = vst.msk [vmem:[#allocation2 + $0x2a8] sm:$0xff] %vm339, -inf
          %426 = vst.msk [vmem:[#allocation2 + $0x2b0] sm:$0xff] %vm339, -inf
          %427 = vst.msk [vmem:[#allocation2 + $0x2b8] sm:$0xff] %vm339, -inf
          %428 = vst.msk [vmem:[#allocation2 + $0x2c0] sm:$0xff] %vm339, -inf
          %429 = vst.msk [vmem:[#allocation2 + $0x2c8] sm:$0xff] %vm339, -inf
          %430 = vst.msk [vmem:[#allocation2 + $0x2d0] sm:$0xff] %vm339, -inf
          %431 = vst.msk [vmem:[#allocation2 + $0x2d8] sm:$0xff] %vm339, -inf
          %432 = vst.msk [vmem:[#allocation2 + $0x2e0] sm:$0xff] %vm339, -inf
          %433 = vst.msk [vmem:[#allocation2 + $0x2e8] sm:$0xff] %vm339, -inf
          %434 = vst.msk [vmem:[#allocation2 + $0x2f0] sm:$0xff] %vm339, -inf
          %435 = vst.msk [vmem:[#allocation2 + $0x2f8] sm:$0xff] %vm339, -inf
          %436 = vst.msk [vmem:[#allocation2 + $0x300] sm:$0xff] %vm339, -inf
          %437 = vst.msk [vmem:[#allocation2 + $0x308] sm:$0xff] %vm339, -inf
          %438 = vst.msk [vmem:[#allocation2 + $0x310] sm:$0xff] %vm339, -inf
          %439 = vst.msk [vmem:[#allocation2 + $0x318] sm:$0xff] %vm339, -inf
          %440 = vst.msk [vmem:[#allocation2 + $0x320] sm:$0xff] %vm339, -inf
          %441 = vst.msk [vmem:[#allocation2 + $0x328] sm:$0xff] %vm339, -inf
          %442 = vst.msk [vmem:[#allocation2 + $0x330] sm:$0xff] %vm339, -inf
          %443 = vst.msk [vmem:[#allocation2 + $0x338] sm:$0xff] %vm339, -inf
          %444 = vst.msk [vmem:[#allocation2 + $0x340] sm:$0xff] %vm339, -inf
          %445 = vst.msk [vmem:[#allocation2 + $0x348] sm:$0xff] %vm339, -inf
          %446 = vst.msk [vmem:[#allocation2 + $0x350] sm:$0xff] %vm339, -inf
          %447 = vst.msk [vmem:[#allocation2 + $0x358] sm:$0xff] %vm339, -inf
          %448 = vst.msk [vmem:[#allocation2 + $0x360] sm:$0xff] %vm339, -inf
          %449 = vst.msk [vmem:[#allocation2 + $0x368] sm:$0xff] %vm339, -inf
          %450 = vst.msk [vmem:[#allocation2 + $0x370] sm:$0xff] %vm339, -inf
          %451 = vst.msk [vmem:[#allocation2 + $0x378] sm:$0xff] %vm339, -inf
          %452 = vst.msk [vmem:[#allocation2 + $0x380] sm:$0xff] %vm339, -inf
          %453 = vst.msk [vmem:[#allocation2 + $0x388] sm:$0xff] %vm339, -inf
          %454 = vst.msk [vmem:[#allocation2 + $0x390] sm:$0xff] %vm339, -inf
          %455 = vst.msk [vmem:[#allocation2 + $0x398] sm:$0xff] %vm339, -inf
          %456 = vst.msk [vmem:[#allocation2 + $0x3a0] sm:$0xff] %vm339, -inf
          %457 = vst.msk [vmem:[#allocation2 + $0x3a8] sm:$0xff] %vm339, -inf
          %458 = vst.msk [vmem:[#allocation2 + $0x3b0] sm:$0xff] %vm339, -inf
          %459 = vst.msk [vmem:[#allocation2 + $0x3b8] sm:$0xff] %vm339, -inf
          %460 = vst.msk [vmem:[#allocation2 + $0x3c0] sm:$0xff] %vm339, -inf
          %461 = vst.msk [vmem:[#allocation2 + $0x3c8] sm:$0xff] %vm339, -inf
          %462 = vst.msk [vmem:[#allocation2 + $0x3d0] sm:$0xff] %vm339, -inf
          %463 = vst.msk [vmem:[#allocation2 + $0x3d8] sm:$0xff] %vm339, -inf
          %464 = vst.msk [vmem:[#allocation2 + $0x3e0] sm:$0xff] %vm339, -inf
          %465 = vst.msk [vmem:[#allocation2 + $0x3e8] sm:$0xff] %vm339, -inf
          %466 = vst.msk [vmem:[#allocation2 + $0x3f0] sm:$0xff] %vm339, -inf
          %467 = vst.msk [vmem:[#allocation2 + $0x3f8] sm:$0xff] %vm339, -inf
        $region90: #{tpu_custom_call.1} parent=81 // pred_fallthru
          _
        %v468 = vld [vmem:[%s300] sm:$0xff]
        %v469 = vld [vmem:[%s300 + $0x8] sm:$0x7f]
        %v470 = vld [vmem:[%s1] sm:$0xff]
        %v471 = vld [vmem:[%s1 + $0x8] sm:$0xff]
        %v472 = vld [vmem:[%s1 + $0x10] sm:$0xff]
        %v473 = vld [vmem:[%s1 + $0x18] sm:$0xff]
        %v474 = vld [vmem:[%s1 + $0x20] sm:$0xff]
        %v475 = vld [vmem:[%s1 + $0x28] sm:$0xff]
        %v476 = vld [vmem:[%s1 + $0x30] sm:$0xff]
        %v477 = vld [vmem:[%s1 + $0x38] sm:$0xff]
        %v478 = vld [vmem:[%s2] sm:$0xff]
        %v479 = vld [vmem:[%s2 + $0x8] sm:$0xff]
        %v480 = vld [vmem:[%s2 + $0x10] sm:$0xff]
        %v481 = vld [vmem:[%s2 + $0x18] sm:$0xff]
        %v482 = vld [vmem:[%s2 + $0x20] sm:$0xff]
        %v483 = vld [vmem:[%s2 + $0x28] sm:$0xff]
        %v484 = vld [vmem:[%s2 + $0x30] sm:$0xff]
        %v485 = vld [vmem:[%s2 + $0x38] sm:$0xff]
        %487 = vset.pattern.permute.xlu0 0
        %488 = vperm.xlu0 %487, %v478
        %v489 = vpop.permute.xlu0 %488
        %492 = vset.pattern.permute.xlu0 0
        %493 = vperm.xlu0 %492, %v479
        %v494 = vpop.permute.xlu0 %493
        %497 = vset.pattern.permute.xlu0 0
        %498 = vperm.xlu0 %497, %v480
        %v499 = vpop.permute.xlu0 %498
        %502 = vset.pattern.permute.xlu0 0
        %503 = vperm.xlu0 %502, %v481
        %v504 = vpop.permute.xlu0 %503
        %507 = vset.pattern.permute.xlu0 0
        %508 = vperm.xlu0 %507, %v482
        %v509 = vpop.permute.xlu0 %508
        %512 = vset.pattern.permute.xlu0 0
        %513 = vperm.xlu0 %512, %v483
        %v514 = vpop.permute.xlu0 %513
        %517 = vset.pattern.permute.xlu0 0
        %518 = vperm.xlu0 %517, %v484
        %v519 = vpop.permute.xlu0 %518
        %522 = vset.pattern.permute.xlu0 0
        %523 = vperm.xlu0 %522, %v485
        %v524 = vpop.permute.xlu0 %523
        %vm526 = vcmask 121856
        %v528 = vsel %vm526, %v470, 0
        %v531 = vsel %vm526, %v471, 0
        %v534 = vsel %vm526, %v472, 0
        %v537 = vsel %vm526, %v473, 0
        %v540 = vsel %vm526, %v474, 0
        %v543 = vsel %vm526, %v475, 0
        %v546 = vsel %vm526, %v476, 0
        %v549 = vsel %vm526, %v477, 0
        %vm551 = vcmask 1046528
        %v553 = vsel %vm551, %v469, 0
        %555 = vmatpush.msra.mxu0 0.0
        %556 = vmatpush.msra.mxu0 0.0
        %557 = vmatpush.msra.mxu0 0.0
        %558 = vmatpush.msra.mxu0 0.0
        %559 = vmatpush.msra.mxu0 0.0
        %560 = vmatpush.msra.mxu0 0.0
        %561 = vmatpush.msra.mxu0 0.0
        %562 = vmatpush.msra.mxu0 0.0
        %563 = vmatpush.msra.mxu0 0.0
        %564 = vmatpush.msra.mxu0 0.0
        %565 = vmatpush.msra.mxu0 0.0
        %566 = vmatpush.msra.mxu0 0.0
        %567 = vmatpush.msra.mxu0 0.0
        %568 = vmatpush.msra.mxu0 0.0
        %569 = vmatpush.msra.mxu0 %v553
        %570 = vmatpush.msra.mxu0 %v468
        %571 = vmatmul.f32.gmra.mxu0 %v528
        %v572 = vpop.f32.mrf.mxu0
        %v573 = vadd.f32 %v489, %v572
        %574 = vmatmul.f32.gmra.mxu0 %v531
        %v575 = vpop.f32.mrf.mxu0
        %v576 = vadd.f32 %v494, %v575
        %577 = vmatmul.f32.gmra.mxu0 %v534
        %v578 = vpop.f32.mrf.mxu0
        %v579 = vadd.f32 %v499, %v578
        %580 = vmatmul.f32.gmra.mxu0 %v537
        %v581 = vpop.f32.mrf.mxu0
        %v582 = vadd.f32 %v504, %v581
        %583 = vmatmul.f32.gmra.mxu0 %v540
        %v584 = vpop.f32.mrf.mxu0
        %v585 = vadd.f32 %v509, %v584
        %586 = vmatmul.f32.gmra.mxu0 %v543
        %v587 = vpop.f32.mrf.mxu0
        %v588 = vadd.f32 %v514, %v587
        %589 = vmatmul.f32.gmra.mxu0 %v546
        %v590 = vpop.f32.mrf.mxu0
        %v591 = vadd.f32 %v519, %v590
        %592 = vmatmul.f32.gmra.mxu0 %v549
        %v593 = vpop.f32.mrf.mxu0
        %v594 = vadd.f32 %v524, %v593
        %595 = vdwg.mxu0
        %v596 = vmax.f32 %v573, 0.0
        %v597 = vmax.f32 %v576, 0.0
        %v598 = vmax.f32 %v579, 0.0
        %v599 = vmax.f32 %v582, 0.0
        %v600 = vmax.f32 %v585, 0.0
        %v601 = vmax.f32 %v588, 0.0
        %v602 = vmax.f32 %v591, 0.0
        %v603 = vmax.f32 %v594, 0.0
        %v604 = vld [vmem:[%s3] sm:$0xf]
        %v605 = vld [vmem:[%s3 + $0x4] sm:$0xf]
        %v606 = vld [vmem:[%s3 + $0x8] sm:$0xf]
        %v607 = vld [vmem:[%s3 + $0xc] sm:$0xf]
        %v608 = vld [vmem:[%s3 + $0x10] sm:$0xf]
        %v609 = vld [vmem:[%s3 + $0x14] sm:$0xf]
        %v610 = vld [vmem:[%s3 + $0x18] sm:$0xf]
        %v611 = vld [vmem:[%s3 + $0x1c] sm:$0xf]
        %v612 = vld [vmem:[%s3 + $0x20] sm:$0xf]
        %v613 = vld [vmem:[%s3 + $0x24] sm:$0xf]
        %v614 = vld [vmem:[%s3 + $0x28] sm:$0xf]
        %v615 = vld [vmem:[%s3 + $0x2c] sm:$0xf]
        %v616 = vld [vmem:[%s3 + $0x30] sm:$0xf]
        %v617 = vld [vmem:[%s3 + $0x34] sm:$0xf]
        %v618 = vld [vmem:[%s3 + $0x38] sm:$0xf]
        %v619 = vld [vmem:[%s3 + $0x3c] sm:$0xf]
        %v620 = vpack.c.bf16 %v597, %v596
        %v621 = vpack.c.bf16 %v599, %v598
        %v622 = vpack.c.bf16 %v601, %v600
        %v623 = vpack.c.bf16 %v603, %v602
        %v624 = vld [vmem:[%s4] sm:$0xff]
        %v625 = vld [vmem:[%s4 + $0x8] sm:$0xff]
        %v626 = vld [vmem:[%s4 + $0x10] sm:$0xff]
        %v627 = vld [vmem:[%s4 + $0x18] sm:$0xff]
        %v628 = vld [vmem:[%s4 + $0x20] sm:$0xff]
        %v629 = vld [vmem:[%s4 + $0x28] sm:$0xff]
        %v630 = vld [vmem:[%s4 + $0x30] sm:$0xff]
        %v631 = vld [vmem:[%s4 + $0x38] sm:$0xff]
        %v632 = vld [vmem:[%s4 + $0x40] sm:$0xff]
        %v633 = vld [vmem:[%s4 + $0x48] sm:$0xff]
        %v634 = vld [vmem:[%s4 + $0x50] sm:$0xff]
        %v635 = vld [vmem:[%s4 + $0x58] sm:$0xff]
        %v636 = vld [vmem:[%s4 + $0x60] sm:$0xff]
        %v637 = vld [vmem:[%s4 + $0x68] sm:$0xff]
        %v638 = vld [vmem:[%s4 + $0x70] sm:$0xff]
        %v639 = vld [vmem:[%s4 + $0x78] sm:$0xff]
        %641 = vset.pattern.permute.xlu0 0
        %642 = vperm.xlu0 %641, %v624
        %v643 = vpop.permute.xlu0 %642
        %646 = vset.pattern.permute.xlu0 0
        %647 = vperm.xlu0 %646, %v625
        %v648 = vpop.permute.xlu0 %647
        %651 = vset.pattern.permute.xlu0 0
        %652 = vperm.xlu0 %651, %v626
        %v653 = vpop.permute.xlu0 %652
        %656 = vset.pattern.permute.xlu0 0
        %657 = vperm.xlu0 %656, %v627
        %v658 = vpop.permute.xlu0 %657
        %661 = vset.pattern.permute.xlu0 0
        %662 = vperm.xlu0 %661, %v628
        %v663 = vpop.permute.xlu0 %662
        %666 = vset.pattern.permute.xlu0 0
        %667 = vperm.xlu0 %666, %v629
        %v668 = vpop.permute.xlu0 %667
        %671 = vset.pattern.permute.xlu0 0
        %672 = vperm.xlu0 %671, %v630
        %v673 = vpop.permute.xlu0 %672
        %676 = vset.pattern.permute.xlu0 0
        %677 = vperm.xlu0 %676, %v631
        %v678 = vpop.permute.xlu0 %677
        %681 = vset.pattern.permute.xlu0 0
        %682 = vperm.xlu0 %681, %v632
        %v683 = vpop.permute.xlu0 %682
        %686 = vset.pattern.permute.xlu0 0
        %687 = vperm.xlu0 %686, %v633
        %v688 = vpop.permute.xlu0 %687
        %691 = vset.pattern.permute.xlu0 0
        %692 = vperm.xlu0 %691, %v634
        %v693 = vpop.permute.xlu0 %692
        %696 = vset.pattern.permute.xlu0 0
        %697 = vperm.xlu0 %696, %v635
        %v698 = vpop.permute.xlu0 %697
        %701 = vset.pattern.permute.xlu0 0
        %702 = vperm.xlu0 %701, %v636
        %v703 = vpop.permute.xlu0 %702
        %706 = vset.pattern.permute.xlu0 0
        %707 = vperm.xlu0 %706, %v637
        %v708 = vpop.permute.xlu0 %707
        %711 = vset.pattern.permute.xlu0 0
        %712 = vperm.xlu0 %711, %v638
        %v713 = vpop.permute.xlu0 %712
        %716 = vset.pattern.permute.xlu0 0
        %717 = vperm.xlu0 %716, %v639
        %v718 = vpop.permute.xlu0 %717
        %v736 = vunpack.c.l.b16 %v604
        %v737 = vunpack.c.l.b16 %v605
        %v738 = vunpack.c.l.b16 %v606
        %v739 = vunpack.c.l.b16 %v607
        %v740 = vunpack.c.l.b16 %v608
        %v741 = vunpack.c.l.b16 %v609
        %v742 = vunpack.c.l.b16 %v610
        %v743 = vunpack.c.l.b16 %v611
        %v744 = vunpack.c.l.b16 %v612
        %v745 = vunpack.c.l.b16 %v613
        %v746 = vunpack.c.l.b16 %v614
        %v747 = vunpack.c.l.b16 %v615
        %v748 = vunpack.c.l.b16 %v616
        %v749 = vunpack.c.l.b16 %v617
        %v750 = vunpack.c.l.b16 %v618
        %v751 = vunpack.c.l.b16 %v619
        %v752 = vpack.c.b16 %v737, %v736
        %v753 = vpack.c.b16 %v739, %v738
        %v754 = vpack.c.b16 %v741, %v740
        %v755 = vpack.c.b16 %v743, %v742
        %v756 = vpack.c.b16 %v745, %v744
        %v757 = vpack.c.b16 %v747, %v746
        %v758 = vpack.c.b16 %v749, %v748
        %v759 = vpack.c.b16 %v751, %v750
        %vm760 = vcmask 523264
        %v762 = vsel %vm760, %v752, 0
        %v765 = vsel %vm760, %v753, 0
        %v768 = vsel %vm760, %v754, 0
        %v771 = vsel %vm760, %v755, 0
        %v774 = vsel %vm760, %v756, 0
        %v777 = vsel %vm760, %v757, 0
        %v780 = vsel %vm760, %v758, 0
        %v783 = vsel %vm760, %v759, 0
        %785 = vmatpush.bf16.msra.mxu0 0
        %786 = vmatpush.bf16.msra.mxu0 0
        %787 = vmatpush.bf16.msra.mxu0 0
        %788 = vmatpush.bf16.msra.mxu0 0
        %789 = vmatpush.bf16.msra.mxu0 %v623
        %790 = vmatpush.bf16.msra.mxu0 %v622
        %791 = vmatpush.bf16.msra.mxu0 %v621
        %792 = vmatpush.bf16.msra.mxu0 %v620
        %793 = vmatmul.bf16.gmra.mxu0 %v762
        %v794 = vpop.f32.mrf.mxu0
        %v795 = vadd.f32 %v643, %v794
        %v796 = vpop.f32.mrf.mxu0
        %v797 = vadd.f32 %v648, %v796
        %798 = vmatmul.bf16.gmra.mxu0 %v765
        %v799 = vpop.f32.mrf.mxu0
        %v800 = vadd.f32 %v653, %v799
        %v801 = vpop.f32.mrf.mxu0
        %v802 = vadd.f32 %v658, %v801
        %803 = vmatmul.bf16.gmra.mxu0 %v768
        %v804 = vpop.f32.mrf.mxu0
        %v805 = vadd.f32 %v663, %v804
        %v806 = vpop.f32.mrf.mxu0
        %v807 = vadd.f32 %v668, %v806
        %808 = vmatmul.bf16.gmra.mxu0 %v771
        %v809 = vpop.f32.mrf.mxu0
        %v810 = vadd.f32 %v673, %v809
        %v811 = vpop.f32.mrf.mxu0
        %v812 = vadd.f32 %v678, %v811
        %813 = vmatmul.bf16.gmra.mxu0 %v774
        %v814 = vpop.f32.mrf.mxu0
        %v815 = vadd.f32 %v683, %v814
        %v816 = vpop.f32.mrf.mxu0
        %v817 = vadd.f32 %v688, %v816
        %818 = vmatmul.bf16.gmra.mxu0 %v777
        %v819 = vpop.f32.mrf.mxu0
        %v820 = vadd.f32 %v693, %v819
        %v821 = vpop.f32.mrf.mxu0
        %v822 = vadd.f32 %v698, %v821
        %823 = vmatmul.bf16.gmra.mxu0 %v780
        %v824 = vpop.f32.mrf.mxu0
        %v825 = vadd.f32 %v703, %v824
        %v826 = vpop.f32.mrf.mxu0
        %v827 = vadd.f32 %v708, %v826
        %828 = vmatmul.bf16.gmra.mxu0 %v783
        %v829 = vpop.f32.mrf.mxu0
        %v830 = vadd.f32 %v713, %v829
        %v831 = vpop.f32.mrf.mxu0
        %v832 = vadd.f32 %v718, %v831
        %833 = vdwg.mxu0
        %v834 = vmax.f32 %v795, 0.0
        %v835 = vmax.f32 %v797, 0.0
        %v836 = vmax.f32 %v800, 0.0
        %v837 = vmax.f32 %v802, 0.0
        %v838 = vmax.f32 %v805, 0.0
        %v839 = vmax.f32 %v807, 0.0
        %v840 = vmax.f32 %v810, 0.0
        %v841 = vmax.f32 %v812, 0.0
        %v842 = vmax.f32 %v815, 0.0
        %v843 = vmax.f32 %v817, 0.0
        %v844 = vmax.f32 %v820, 0.0
        %v845 = vmax.f32 %v822, 0.0
        %v846 = vmax.f32 %v825, 0.0
        %v847 = vmax.f32 %v827, 0.0
        %v848 = vmax.f32 %v830, 0.0
        %v849 = vmax.f32 %v832, 0.0
        %v850 = vld [vmem:[%s5] sm:$0xf]
        %v851 = vld [vmem:[%s5 + $0x4] sm:$0xf]
        %v852 = vld [vmem:[%s5 + $0x8] sm:$0xf]
        %v853 = vld [vmem:[%s5 + $0xc] sm:$0xf]
        %v854 = vld [vmem:[%s5 + $0x10] sm:$0xf]
        %v855 = vld [vmem:[%s5 + $0x14] sm:$0xf]
        %v856 = vld [vmem:[%s5 + $0x18] sm:$0xf]
        %v857 = vld [vmem:[%s5 + $0x1c] sm:$0xf]
        %v858 = vld [vmem:[%s5 + $0x20] sm:$0xf]
        %v859 = vld [vmem:[%s5 + $0x24] sm:$0xf]
        %v860 = vld [vmem:[%s5 + $0x28] sm:$0xf]
        %v861 = vld [vmem:[%s5 + $0x2c] sm:$0xf]
        %v862 = vld [vmem:[%s5 + $0x30] sm:$0xf]
        %v863 = vld [vmem:[%s5 + $0x34] sm:$0xf]
        %v864 = vld [vmem:[%s5 + $0x38] sm:$0xf]
        %v865 = vld [vmem:[%s5 + $0x3c] sm:$0xf]
        %v866 = vld [vmem:[%s5 + $0x40] sm:$0xf]
        %v867 = vld [vmem:[%s5 + $0x44] sm:$0xf]
        %v868 = vld [vmem:[%s5 + $0x48] sm:$0xf]
        %v869 = vld [vmem:[%s5 + $0x4c] sm:$0xf]
        %v870 = vld [vmem:[%s5 + $0x50] sm:$0xf]
        %v871 = vld [vmem:[%s5 + $0x54] sm:$0xf]
        %v872 = vld [vmem:[%s5 + $0x58] sm:$0xf]
        %v873 = vld [vmem:[%s5 + $0x5c] sm:$0xf]
        %v874 = vld [vmem:[%s5 + $0x60] sm:$0xf]
        %v875 = vld [vmem:[%s5 + $0x64] sm:$0xf]
        %v876 = vld [vmem:[%s5 + $0x68] sm:$0xf]
        %v877 = vld [vmem:[%s5 + $0x6c] sm:$0xf]
        %v878 = vld [vmem:[%s5 + $0x70] sm:$0xf]
        %v879 = vld [vmem:[%s5 + $0x74] sm:$0xf]
        %v880 = vld [vmem:[%s5 + $0x78] sm:$0xf]
        %v881 = vld [vmem:[%s5 + $0x7c] sm:$0xf]
        %v882 = vld [vmem:[%s5 + $0x80] sm:$0xf]
        %v883 = vld [vmem:[%s5 + $0x84] sm:$0xf]
        %v884 = vld [vmem:[%s5 + $0x88] sm:$0xf]
        %v885 = vld [vmem:[%s5 + $0x8c] sm:$0xf]
        %v886 = vld [vmem:[%s5 + $0x90] sm:$0xf]
        %v887 = vld [vmem:[%s5 + $0x94] sm:$0xf]
        %v888 = vld [vmem:[%s5 + $0x98] sm:$0xf]
        %v889 = vld [vmem:[%s5 + $0x9c] sm:$0xf]
        %v890 = vld [vmem:[%s5 + $0xa0] sm:$0xf]
        %v891 = vld [vmem:[%s5 + $0xa4] sm:$0xf]
        %v892 = vld [vmem:[%s5 + $0xa8] sm:$0xf]
        %v893 = vld [vmem:[%s5 + $0xac] sm:$0xf]
        %v894 = vld [vmem:[%s5 + $0xb0] sm:$0xf]
        %v895 = vld [vmem:[%s5 + $0xb4] sm:$0xf]
        %v896 = vld [vmem:[%s5 + $0xb8] sm:$0xf]
        %v897 = vld [vmem:[%s5 + $0xbc] sm:$0xf]
        %v898 = vld [vmem:[%s5 + $0xc0] sm:$0xf]
        %v899 = vld [vmem:[%s5 + $0xc4] sm:$0xf]
        %v900 = vld [vmem:[%s5 + $0xc8] sm:$0xf]
        %v901 = vld [vmem:[%s5 + $0xcc] sm:$0xf]
        %v902 = vld [vmem:[%s5 + $0xd0] sm:$0xf]
        %v903 = vld [vmem:[%s5 + $0xd4] sm:$0xf]
        %v904 = vld [vmem:[%s5 + $0xd8] sm:$0xf]
        %v905 = vld [vmem:[%s5 + $0xdc] sm:$0xf]
        %v906 = vld [vmem:[%s5 + $0xe0] sm:$0xf]
        %v907 = vld [vmem:[%s5 + $0xe4] sm:$0xf]
        %v908 = vld [vmem:[%s5 + $0xe8] sm:$0xf]
        %v909 = vld [vmem:[%s5 + $0xec] sm:$0xf]
        %v910 = vld [vmem:[%s5 + $0xf0] sm:$0xf]
        %v911 = vld [vmem:[%s5 + $0xf4] sm:$0xf]
        %v912 = vld [vmem:[%s5 + $0xf8] sm:$0xf]
        %v913 = vld [vmem:[%s5 + $0xfc] sm:$0xf]
        %v914 = vld [vmem:[%s5 + $0x100] sm:$0xf]
        %v915 = vld [vmem:[%s5 + $0x104] sm:$0xf]
        %v916 = vld [vmem:[%s5 + $0x108] sm:$0xf]
        %v917 = vld [vmem:[%s5 + $0x10c] sm:$0xf]
        %v918 = vld [vmem:[%s5 + $0x110] sm:$0xf]
        %v919 = vld [vmem:[%s5 + $0x114] sm:$0xf]
        %v920 = vld [vmem:[%s5 + $0x118] sm:$0xf]
        %v921 = vld [vmem:[%s5 + $0x11c] sm:$0xf]
        %v922 = vld [vmem:[%s5 + $0x120] sm:$0xf]
        %v923 = vld [vmem:[%s5 + $0x124] sm:$0xf]
        %v924 = vld [vmem:[%s5 + $0x128] sm:$0xf]
        %v925 = vld [vmem:[%s5 + $0x12c] sm:$0xf]
        %v926 = vld [vmem:[%s5 + $0x130] sm:$0xf]
        %v927 = vld [vmem:[%s5 + $0x134] sm:$0xf]
        %v928 = vld [vmem:[%s5 + $0x138] sm:$0xf]
        %v929 = vld [vmem:[%s5 + $0x13c] sm:$0xf]
        %v930 = vld [vmem:[%s5 + $0x140] sm:$0xf]
        %v931 = vld [vmem:[%s5 + $0x144] sm:$0xf]
        %v932 = vld [vmem:[%s5 + $0x148] sm:$0xf]
        %v933 = vld [vmem:[%s5 + $0x14c] sm:$0xf]
        %v934 = vld [vmem:[%s5 + $0x150] sm:$0xf]
        %v935 = vld [vmem:[%s5 + $0x154] sm:$0xf]
        %v936 = vld [vmem:[%s5 + $0x158] sm:$0xf]
        %v937 = vld [vmem:[%s5 + $0x15c] sm:$0xf]
        %v938 = vld [vmem:[%s5 + $0x160] sm:$0xf]
        %v939 = vld [vmem:[%s5 + $0x164] sm:$0xf]
        %v940 = vld [vmem:[%s5 + $0x168] sm:$0xf]
        %v941 = vld [vmem:[%s5 + $0x16c] sm:$0xf]
        %v942 = vld [vmem:[%s5 + $0x170] sm:$0xf]
        %v943 = vld [vmem:[%s5 + $0x174] sm:$0xf]
        %v944 = vld [vmem:[%s5 + $0x178] sm:$0xf]
        %v945 = vld [vmem:[%s5 + $0x17c] sm:$0xf]
        %v946 = vld [vmem:[%s5 + $0x180] sm:$0xf]
        %v947 = vld [vmem:[%s5 + $0x184] sm:$0xf]
        %v948 = vld [vmem:[%s5 + $0x188] sm:$0xf]
        %v949 = vld [vmem:[%s5 + $0x18c] sm:$0xf]
        %v950 = vld [vmem:[%s5 + $0x190] sm:$0xf]
        %v951 = vld [vmem:[%s5 + $0x194] sm:$0xf]
        %v952 = vld [vmem:[%s5 + $0x198] sm:$0xf]
        %v953 = vld [vmem:[%s5 + $0x19c] sm:$0xf]
        %v954 = vld [vmem:[%s5 + $0x1a0] sm:$0xf]
        %v955 = vld [vmem:[%s5 + $0x1a4] sm:$0xf]
        %v956 = vld [vmem:[%s5 + $0x1a8] sm:$0xf]
        %v957 = vld [vmem:[%s5 + $0x1ac] sm:$0xf]
        %v958 = vld [vmem:[%s5 + $0x1b0] sm:$0xf]
        %v959 = vld [vmem:[%s5 + $0x1b4] sm:$0xf]
        %v960 = vld [vmem:[%s5 + $0x1b8] sm:$0xf]
        %v961 = vld [vmem:[%s5 + $0x1bc] sm:$0xf]
        %v962 = vld [vmem:[%s5 + $0x1c0] sm:$0xf]
        %v963 = vld [vmem:[%s5 + $0x1c4] sm:$0xf]
        %v964 = vld [vmem:[%s5 + $0x1c8] sm:$0xf]
        %v965 = vld [vmem:[%s5 + $0x1cc] sm:$0xf]
        %v966 = vld [vmem:[%s5 + $0x1d0] sm:$0xf]
        %v967 = vld [vmem:[%s5 + $0x1d4] sm:$0xf]
        %v968 = vld [vmem:[%s5 + $0x1d8] sm:$0xf]
        %v969 = vld [vmem:[%s5 + $0x1dc] sm:$0xf]
        %v970 = vld [vmem:[%s5 + $0x1e0] sm:$0xf]
        %v971 = vld [vmem:[%s5 + $0x1e4] sm:$0xf]
        %v972 = vld [vmem:[%s5 + $0x1e8] sm:$0xf]
        %v973 = vld [vmem:[%s5 + $0x1ec] sm:$0xf]
        %v974 = vld [vmem:[%s5 + $0x1f0] sm:$0xf]
        %v975 = vld [vmem:[%s5 + $0x1f4] sm:$0xf]
        %v976 = vld [vmem:[%s5 + $0x1f8] sm:$0xf]
        %v977 = vld [vmem:[%s5 + $0x1fc] sm:$0xf]
        %v978 = vpack.c.bf16 %v835, %v834
        %v979 = vpack.c.bf16 %v837, %v836
        %v980 = vpack.c.bf16 %v839, %v838
        %v981 = vpack.c.bf16 %v841, %v840
        %v982 = vpack.c.bf16 %v843, %v842
        %v983 = vpack.c.bf16 %v845, %v844
        %v984 = vpack.c.bf16 %v847, %v846
        %v985 = vpack.c.bf16 %v849, %v848
        %v986 = vld [vmem:[%s6] sm:$0xff]
        %v987 = vld [vmem:[%s6 + $0x8] sm:$0xff]
        %v988 = vld [vmem:[%s6 + $0x10] sm:$0xff]
        %v989 = vld [vmem:[%s6 + $0x18] sm:$0xff]
        %v990 = vld [vmem:[%s6 + $0x20] sm:$0xff]
        %v991 = vld [vmem:[%s6 + $0x28] sm:$0xff]
        %v992 = vld [vmem:[%s6 + $0x30] sm:$0xff]
        %v993 = vld [vmem:[%s6 + $0x38] sm:$0xff]
        %v994 = vld [vmem:[%s6 + $0x40] sm:$0xff]
        %v995 = vld [vmem:[%s6 + $0x48] sm:$0xff]
        %v996 = vld [vmem:[%s6 + $0x50] sm:$0xff]
        %v997 = vld [vmem:[%s6 + $0x58] sm:$0xff]
        %v998 = vld [vmem:[%s6 + $0x60] sm:$0xff]
        %v999 = vld [vmem:[%s6 + $0x68] sm:$0xff]
        %v1000 = vld [vmem:[%s6 + $0x70] sm:$0xff]
        %v1001 = vld [vmem:[%s6 + $0x78] sm:$0xff]
        %v1002 = vld [vmem:[%s6 + $0x80] sm:$0xff]
        %v1003 = vld [vmem:[%s6 + $0x88] sm:$0xff]
        %v1004 = vld [vmem:[%s6 + $0x90] sm:$0xff]
        %v1005 = vld [vmem:[%s6 + $0x98] sm:$0xff]
        %v1006 = vld [vmem:[%s6 + $0xa0] sm:$0xff]
        %v1007 = vld [vmem:[%s6 + $0xa8] sm:$0xff]
        %v1008 = vld [vmem:[%s6 + $0xb0] sm:$0xff]
        %v1009 = vld [vmem:[%s6 + $0xb8] sm:$0xff]
        %v1010 = vld [vmem:[%s6 + $0xc0] sm:$0xff]
        %v1011 = vld [vmem:[%s6 + $0xc8] sm:$0xff]
        %v1012 = vld [vmem:[%s6 + $0xd0] sm:$0xff]
        %v1013 = vld [vmem:[%s6 + $0xd8] sm:$0xff]
        %v1014 = vld [vmem:[%s6 + $0xe0] sm:$0xff]
        %v1015 = vld [vmem:[%s6 + $0xe8] sm:$0xff]
        %v1016 = vld [vmem:[%s6 + $0xf0] sm:$0xff]
        %v1017 = vld [vmem:[%s6 + $0xf8] sm:$0xff]
        %v1018 = vld [vmem:[%s6 + $0x100] sm:$0xff]
        %v1019 = vld [vmem:[%s6 + $0x108] sm:$0xff]
        %v1020 = vld [vmem:[%s6 + $0x110] sm:$0xff]
        %v1021 = vld [vmem:[%s6 + $0x118] sm:$0xff]
        %v1022 = vld [vmem:[%s6 + $0x120] sm:$0xff]
        %v1023 = vld [vmem:[%s6 + $0x128] sm:$0xff]
        %v1024 = vld [vmem:[%s6 + $0x130] sm:$0xff]
        %v1025 = vld [vmem:[%s6 + $0x138] sm:$0xff]
        %v1026 = vld [vmem:[%s6 + $0x140] sm:$0xff]
        %v1027 = vld [vmem:[%s6 + $0x148] sm:$0xff]
        %v1028 = vld [vmem:[%s6 + $0x150] sm:$0xff]
        %v1029 = vld [vmem:[%s6 + $0x158] sm:$0xff]
        %v1030 = vld [vmem:[%s6 + $0x160] sm:$0xff]
        %v1031 = vld [vmem:[%s6 + $0x168] sm:$0xff]
        %v1032 = vld [vmem:[%s6 + $0x170] sm:$0xff]
        %v1033 = vld [vmem:[%s6 + $0x178] sm:$0xff]
        %v1034 = vld [vmem:[%s6 + $0x180] sm:$0xff]
        %v1035 = vld [vmem:[%s6 + $0x188] sm:$0xff]
        %v1036 = vld [vmem:[%s6 + $0x190] sm:$0xff]
        %v1037 = vld [vmem:[%s6 + $0x198] sm:$0xff]
        %v1038 = vld [vmem:[%s6 + $0x1a0] sm:$0xff]
        %v1039 = vld [vmem:[%s6 + $0x1a8] sm:$0xff]
        %v1040 = vld [vmem:[%s6 + $0x1b0] sm:$0xff]
        %v1041 = vld [vmem:[%s6 + $0x1b8] sm:$0xff]
        %v1042 = vld [vmem:[%s6 + $0x1c0] sm:$0xff]
        %v1043 = vld [vmem:[%s6 + $0x1c8] sm:$0xff]
        %v1044 = vld [vmem:[%s6 + $0x1d0] sm:$0xff]
        %v1045 = vld [vmem:[%s6 + $0x1d8] sm:$0xff]
        %v1046 = vld [vmem:[%s6 + $0x1e0] sm:$0xff]
        %v1047 = vld [vmem:[%s6 + $0x1e8] sm:$0xff]
        %v1048 = vld [vmem:[%s6 + $0x1f0] sm:$0xff]
        %v1049 = vld [vmem:[%s6 + $0x1f8] sm:$0xff]
        %v1050 = vld [vmem:[%s6 + $0x200] sm:$0xff]
        %v1051 = vld [vmem:[%s6 + $0x208] sm:$0xff]
        %v1052 = vld [vmem:[%s6 + $0x210] sm:$0xff]
        %v1053 = vld [vmem:[%s6 + $0x218] sm:$0xff]
        %v1054 = vld [vmem:[%s6 + $0x220] sm:$0xff]
        %v1055 = vld [vmem:[%s6 + $0x228] sm:$0xff]
        %v1056 = vld [vmem:[%s6 + $0x230] sm:$0xff]
        %v1057 = vld [vmem:[%s6 + $0x238] sm:$0xff]
        %v1058 = vld [vmem:[%s6 + $0x240] sm:$0xff]
        %v1059 = vld [vmem:[%s6 + $0x248] sm:$0xff]
        %v1060 = vld [vmem:[%s6 + $0x250] sm:$0xff]
        %v1061 = vld [vmem:[%s6 + $0x258] sm:$0xff]
        %v1062 = vld [vmem:[%s6 + $0x260] sm:$0xff]
        %v1063 = vld [vmem:[%s6 + $0x268] sm:$0xff]
        %v1064 = vld [vmem:[%s6 + $0x270] sm:$0xff]
        %v1065 = vld [vmem:[%s6 + $0x278] sm:$0xff]
        %v1066 = vld [vmem:[%s6 + $0x280] sm:$0xff]
        %v1067 = vld [vmem:[%s6 + $0x288] sm:$0xff]
        %v1068 = vld [vmem:[%s6 + $0x290] sm:$0xff]
        %v1069 = vld [vmem:[%s6 + $0x298] sm:$0xff]
        %v1070 = vld [vmem:[%s6 + $0x2a0] sm:$0xff]
        %v1071 = vld [vmem:[%s6 + $0x2a8] sm:$0xff]
        %v1072 = vld [vmem:[%s6 + $0x2b0] sm:$0xff]
        %v1073 = vld [vmem:[%s6 + $0x2b8] sm:$0xff]
        %v1074 = vld [vmem:[%s6 + $0x2c0] sm:$0xff]
        %v1075 = vld [vmem:[%s6 + $0x2c8] sm:$0xff]
        %v1076 = vld [vmem:[%s6 + $0x2d0] sm:$0xff]
        %v1077 = vld [vmem:[%s6 + $0x2d8] sm:$0xff]
        %v1078 = vld [vmem:[%s6 + $0x2e0] sm:$0xff]
        %v1079 = vld [vmem:[%s6 + $0x2e8] sm:$0xff]
        %v1080 = vld [vmem:[%s6 + $0x2f0] sm:$0xff]
        %v1081 = vld [vmem:[%s6 + $0x2f8] sm:$0xff]
        %v1082 = vld [vmem:[%s6 + $0x300] sm:$0xff]
        %v1083 = vld [vmem:[%s6 + $0x308] sm:$0xff]
        %v1084 = vld [vmem:[%s6 + $0x310] sm:$0xff]
        %v1085 = vld [vmem:[%s6 + $0x318] sm:$0xff]
        %v1086 = vld [vmem:[%s6 + $0x320] sm:$0xff]
        %v1087 = vld [vmem:[%s6 + $0x328] sm:$0xff]
        %v1088 = vld [vmem:[%s6 + $0x330] sm:$0xff]
        %v1089 = vld [vmem:[%s6 + $0x338] sm:$0xff]
        %v1090 = vld [vmem:[%s6 + $0x340] sm:$0xff]
        %v1091 = vld [vmem:[%s6 + $0x348] sm:$0xff]
        %v1092 = vld [vmem:[%s6 + $0x350] sm:$0xff]
        %v1093 = vld [vmem:[%s6 + $0x358] sm:$0xff]
        %v1094 = vld [vmem:[%s6 + $0x360] sm:$0xff]
        %v1095 = vld [vmem:[%s6 + $0x368] sm:$0xff]
        %v1096 = vld [vmem:[%s6 + $0x370] sm:$0xff]
        %v1097 = vld [vmem:[%s6 + $0x378] sm:$0xff]
        %v1098 = vld [vmem:[%s6 + $0x380] sm:$0xff]
        %v1099 = vld [vmem:[%s6 + $0x388] sm:$0xff]
        %v1100 = vld [vmem:[%s6 + $0x390] sm:$0xff]
        %v1101 = vld [vmem:[%s6 + $0x398] sm:$0xff]
        %v1102 = vld [vmem:[%s6 + $0x3a0] sm:$0xff]
        %v1103 = vld [vmem:[%s6 + $0x3a8] sm:$0xff]
        %v1104 = vld [vmem:[%s6 + $0x3b0] sm:$0xff]
        %v1105 = vld [vmem:[%s6 + $0x3b8] sm:$0xff]
        %v1106 = vld [vmem:[%s6 + $0x3c0] sm:$0xff]
        %v1107 = vld [vmem:[%s6 + $0x3c8] sm:$0xff]
        %v1108 = vld [vmem:[%s6 + $0x3d0] sm:$0xff]
        %v1109 = vld [vmem:[%s6 + $0x3d8] sm:$0xff]
        %v1110 = vld [vmem:[%s6 + $0x3e0] sm:$0xff]
        %v1111 = vld [vmem:[%s6 + $0x3e8] sm:$0xff]
        %v1112 = vld [vmem:[%s6 + $0x3f0] sm:$0xff]
        %v1113 = vld [vmem:[%s6 + $0x3f8] sm:$0xff]
        %1115 = vset.pattern.permute.xlu0 0
        %1116 = vperm.xlu0 %1115, %v986
        %v1117 = vpop.permute.xlu0 %1116
        %1120 = vset.pattern.permute.xlu0 0
        %1121 = vperm.xlu0 %1120, %v987
        %v1122 = vpop.permute.xlu0 %1121
        %1125 = vset.pattern.permute.xlu0 0
        %1126 = vperm.xlu0 %1125, %v988
        %v1127 = vpop.permute.xlu0 %1126
        %1130 = vset.pattern.permute.xlu0 0
        %1131 = vperm.xlu0 %1130, %v989
        %v1132 = vpop.permute.xlu0 %1131
        %1135 = vset.pattern.permute.xlu0 0
        %1136 = vperm.xlu0 %1135, %v990
        %v1137 = vpop.permute.xlu0 %1136
        %1140 = vset.pattern.permute.xlu0 0
        %1141 = vperm.xlu0 %1140, %v991
        %v1142 = vpop.permute.xlu0 %1141
        %1145 = vset.pattern.permute.xlu0 0
        %1146 = vperm.xlu0 %1145, %v992
        %v1147 = vpop.permute.xlu0 %1146
        %1150 = vset.pattern.permute.xlu0 0
        %1151 = vperm.xlu0 %1150, %v993
        %v1152 = vpop.permute.xlu0 %1151
        %1155 = vset.pattern.permute.xlu0 0
        %1156 = vperm.xlu0 %1155, %v994
        %v1157 = vpop.permute.xlu0 %1156
        %1160 = vset.pattern.permute.xlu0 0
        %1161 = vperm.xlu0 %1160, %v995
        %v1162 = vpop.permute.xlu0 %1161
        %1165 = vset.pattern.permute.xlu0 0
        %1166 = vperm.xlu0 %1165, %v996
        %v1167 = vpop.permute.xlu0 %1166
        %1170 = vset.pattern.permute.xlu0 0
        %1171 = vperm.xlu0 %1170, %v997
        %v1172 = vpop.permute.xlu0 %1171
        %1175 = vset.pattern.permute.xlu0 0
        %1176 = vperm.xlu0 %1175, %v998
        %v1177 = vpop.permute.xlu0 %1176
        %1180 = vset.pattern.permute.xlu0 0
        %1181 = vperm.xlu0 %1180, %v999
        %v1182 = vpop.permute.xlu0 %1181
        %1185 = vset.pattern.permute.xlu0 0
        %1186 = vperm.xlu0 %1185, %v1000
        %v1187 = vpop.permute.xlu0 %1186
        %1190 = vset.pattern.permute.xlu0 0
        %1191 = vperm.xlu0 %1190, %v1001
        %v1192 = vpop.permute.xlu0 %1191
        %1195 = vset.pattern.permute.xlu0 0
        %1196 = vperm.xlu0 %1195, %v1002
        %v1197 = vpop.permute.xlu0 %1196
        %1200 = vset.pattern.permute.xlu0 0
        %1201 = vperm.xlu0 %1200, %v1003
        %v1202 = vpop.permute.xlu0 %1201
        %1205 = vset.pattern.permute.xlu0 0
        %1206 = vperm.xlu0 %1205, %v1004
        %v1207 = vpop.permute.xlu0 %1206
        %1210 = vset.pattern.permute.xlu0 0
        %1211 = vperm.xlu0 %1210, %v1005
        %v1212 = vpop.permute.xlu0 %1211
        %1215 = vset.pattern.permute.xlu0 0
        %1216 = vperm.xlu0 %1215, %v1006
        %v1217 = vpop.permute.xlu0 %1216
        %1220 = vset.pattern.permute.xlu0 0
        %1221 = vperm.xlu0 %1220, %v1007
        %v1222 = vpop.permute.xlu0 %1221
        %1225 = vset.pattern.permute.xlu0 0
        %1226 = vperm.xlu0 %1225, %v1008
        %v1227 = vpop.permute.xlu0 %1226
        %1230 = vset.pattern.permute.xlu0 0
        %1231 = vperm.xlu0 %1230, %v1009
        %v1232 = vpop.permute.xlu0 %1231
        %1235 = vset.pattern.permute.xlu0 0
        %1236 = vperm.xlu0 %1235, %v1010
        %v1237 = vpop.permute.xlu0 %1236
        %1240 = vset.pattern.permute.xlu0 0
        %1241 = vperm.xlu0 %1240, %v1011
        %v1242 = vpop.permute.xlu0 %1241
        %1245 = vset.pattern.permute.xlu0 0
        %1246 = vperm.xlu0 %1245, %v1012
        %v1247 = vpop.permute.xlu0 %1246
        %1250 = vset.pattern.permute.xlu0 0
        %1251 = vperm.xlu0 %1250, %v1013
        %v1252 = vpop.permute.xlu0 %1251
        %1255 = vset.pattern.permute.xlu0 0
        %1256 = vperm.xlu0 %1255, %v1014
        %v1257 = vpop.permute.xlu0 %1256
        %1260 = vset.pattern.permute.xlu0 0
        %1261 = vperm.xlu0 %1260, %v1015
        %v1262 = vpop.permute.xlu0 %1261
        %1265 = vset.pattern.permute.xlu0 0
        %1266 = vperm.xlu0 %1265, %v1016
        %v1267 = vpop.permute.xlu0 %1266
        %1270 = vset.pattern.permute.xlu0 0
        %1271 = vperm.xlu0 %1270, %v1017
        %v1272 = vpop.permute.xlu0 %1271
        %1275 = vset.pattern.permute.xlu0 0
        %1276 = vperm.xlu0 %1275, %v1018
        %v1277 = vpop.permute.xlu0 %1276
        %1280 = vset.pattern.permute.xlu0 0
        %1281 = vperm.xlu0 %1280, %v1019
        %v1282 = vpop.permute.xlu0 %1281
        %1285 = vset.pattern.permute.xlu0 0
        %1286 = vperm.xlu0 %1285, %v1020
        %v1287 = vpop.permute.xlu0 %1286
        %1290 = vset.pattern.permute.xlu0 0
        %1291 = vperm.xlu0 %1290, %v1021
        %v1292 = vpop.permute.xlu0 %1291
        %1295 = vset.pattern.permute.xlu0 0
        %1296 = vperm.xlu0 %1295, %v1022
        %v1297 = vpop.permute.xlu0 %1296
        %1300 = vset.pattern.permute.xlu0 0
        %1301 = vperm.xlu0 %1300, %v1023
        %v1302 = vpop.permute.xlu0 %1301
        %1305 = vset.pattern.permute.xlu0 0
        %1306 = vperm.xlu0 %1305, %v1024
        %v1307 = vpop.permute.xlu0 %1306
        %1310 = vset.pattern.permute.xlu0 0
        %1311 = vperm.xlu0 %1310, %v1025
        %v1312 = vpop.permute.xlu0 %1311
        %1315 = vset.pattern.permute.xlu0 0
        %1316 = vperm.xlu0 %1315, %v1026
        %v1317 = vpop.permute.xlu0 %1316
        %1320 = vset.pattern.permute.xlu0 0
        %1321 = vperm.xlu0 %1320, %v1027
        %v1322 = vpop.permute.xlu0 %1321
        %1325 = vset.pattern.permute.xlu0 0
        %1326 = vperm.xlu0 %1325, %v1028
        %v1327 = vpop.permute.xlu0 %1326
        %1330 = vset.pattern.permute.xlu0 0
        %1331 = vperm.xlu0 %1330, %v1029
        %v1332 = vpop.permute.xlu0 %1331
        %1335 = vset.pattern.permute.xlu0 0
        %1336 = vperm.xlu0 %1335, %v1030
        %v1337 = vpop.permute.xlu0 %1336
        %1340 = vset.pattern.permute.xlu0 0
        %1341 = vperm.xlu0 %1340, %v1031
        %v1342 = vpop.permute.xlu0 %1341
        %1345 = vset.pattern.permute.xlu0 0
        %1346 = vperm.xlu0 %1345, %v1032
        %v1347 = vpop.permute.xlu0 %1346
        %1350 = vset.pattern.permute.xlu0 0
        %1351 = vperm.xlu0 %1350, %v1033
        %v1352 = vpop.permute.xlu0 %1351
        %1355 = vset.pattern.permute.xlu0 0
        %1356 = vperm.xlu0 %1355, %v1034
        %v1357 = vpop.permute.xlu0 %1356
        %1360 = vset.pattern.permute.xlu0 0
        %1361 = vperm.xlu0 %1360, %v1035
        %v1362 = vpop.permute.xlu0 %1361
        %1365 = vset.pattern.permute.xlu0 0
        %1366 = vperm.xlu0 %1365, %v1036
        %v1367 = vpop.permute.xlu0 %1366
        %1370 = vset.pattern.permute.xlu0 0
        %1371 = vperm.xlu0 %1370, %v1037
        %v1372 = vpop.permute.xlu0 %1371
        %1375 = vset.pattern.permute.xlu0 0
        %1376 = vperm.xlu0 %1375, %v1038
        %v1377 = vpop.permute.xlu0 %1376
        %1380 = vset.pattern.permute.xlu0 0
        %1381 = vperm.xlu0 %1380, %v1039
        %v1382 = vpop.permute.xlu0 %1381
        %1385 = vset.pattern.permute.xlu0 0
        %1386 = vperm.xlu0 %1385, %v1040
        %v1387 = vpop.permute.xlu0 %1386
        %1390 = vset.pattern.permute.xlu0 0
        %1391 = vperm.xlu0 %1390, %v1041
        %v1392 = vpop.permute.xlu0 %1391
        %1395 = vset.pattern.permute.xlu0 0
        %1396 = vperm.xlu0 %1395, %v1042
        %v1397 = vpop.permute.xlu0 %1396
        %1400 = vset.pattern.permute.xlu0 0
        %1401 = vperm.xlu0 %1400, %v1043
        %v1402 = vpop.permute.xlu0 %1401
        %1405 = vset.pattern.permute.xlu0 0
        %1406 = vperm.xlu0 %1405, %v1044
        %v1407 = vpop.permute.xlu0 %1406
        %1410 = vset.pattern.permute.xlu0 0
        %1411 = vperm.xlu0 %1410, %v1045
        %v1412 = vpop.permute.xlu0 %1411
        %1415 = vset.pattern.permute.xlu0 0
        %1416 = vperm.xlu0 %1415, %v1046
        %v1417 = vpop.permute.xlu0 %1416
        %1420 = vset.pattern.permute.xlu0 0
        %1421 = vperm.xlu0 %1420, %v1047
        %v1422 = vpop.permute.xlu0 %1421
        %1425 = vset.pattern.permute.xlu0 0
        %1426 = vperm.xlu0 %1425, %v1048
        %v1427 = vpop.permute.xlu0 %1426
        %1430 = vset.pattern.permute.xlu0 0
        %1431 = vperm.xlu0 %1430, %v1049
        %v1432 = vpop.permute.xlu0 %1431
        %1435 = vset.pattern.permute.xlu0 0
        %1436 = vperm.xlu0 %1435, %v1050
        %v1437 = vpop.permute.xlu0 %1436
        %1440 = vset.pattern.permute.xlu0 0
        %1441 = vperm.xlu0 %1440, %v1051
        %v1442 = vpop.permute.xlu0 %1441
        %1445 = vset.pattern.permute.xlu0 0
        %1446 = vperm.xlu0 %1445, %v1052
        %v1447 = vpop.permute.xlu0 %1446
        %1450 = vset.pattern.permute.xlu0 0
        %1451 = vperm.xlu0 %1450, %v1053
        %v1452 = vpop.permute.xlu0 %1451
        %1455 = vset.pattern.permute.xlu0 0
        %1456 = vperm.xlu0 %1455, %v1054
        %v1457 = vpop.permute.xlu0 %1456
        %1460 = vset.pattern.permute.xlu0 0
        %1461 = vperm.xlu0 %1460, %v1055
        %v1462 = vpop.permute.xlu0 %1461
        %1465 = vset.pattern.permute.xlu0 0
        %1466 = vperm.xlu0 %1465, %v1056
        %v1467 = vpop.permute.xlu0 %1466
        %1470 = vset.pattern.permute.xlu0 0
        %1471 = vperm.xlu0 %1470, %v1057
        %v1472 = vpop.permute.xlu0 %1471
        %1475 = vset.pattern.permute.xlu0 0
        %1476 = vperm.xlu0 %1475, %v1058
        %v1477 = vpop.permute.xlu0 %1476
        %1480 = vset.pattern.permute.xlu0 0
        %1481 = vperm.xlu0 %1480, %v1059
        %v1482 = vpop.permute.xlu0 %1481
        %1485 = vset.pattern.permute.xlu0 0
        %1486 = vperm.xlu0 %1485, %v1060
        %v1487 = vpop.permute.xlu0 %1486
        %1490 = vset.pattern.permute.xlu0 0
        %1491 = vperm.xlu0 %1490, %v1061
        %v1492 = vpop.permute.xlu0 %1491
        %1495 = vset.pattern.permute.xlu0 0
        %1496 = vperm.xlu0 %1495, %v1062
        %v1497 = vpop.permute.xlu0 %1496
        %1500 = vset.pattern.permute.xlu0 0
        %1501 = vperm.xlu0 %1500, %v1063
        %v1502 = vpop.permute.xlu0 %1501
        %1505 = vset.pattern.permute.xlu0 0
        %1506 = vperm.xlu0 %1505, %v1064
        %v1507 = vpop.permute.xlu0 %1506
        %1510 = vset.pattern.permute.xlu0 0
        %1511 = vperm.xlu0 %1510, %v1065
        %v1512 = vpop.permute.xlu0 %1511
        %1515 = vset.pattern.permute.xlu0 0
        %1516 = vperm.xlu0 %1515, %v1066
        %v1517 = vpop.permute.xlu0 %1516
        %1520 = vset.pattern.permute.xlu0 0
        %1521 = vperm.xlu0 %1520, %v1067
        %v1522 = vpop.permute.xlu0 %1521
        %1525 = vset.pattern.permute.xlu0 0
        %1526 = vperm.xlu0 %1525, %v1068
        %v1527 = vpop.permute.xlu0 %1526
        %1530 = vset.pattern.permute.xlu0 0
        %1531 = vperm.xlu0 %1530, %v1069
        %v1532 = vpop.permute.xlu0 %1531
        %1535 = vset.pattern.permute.xlu0 0
        %1536 = vperm.xlu0 %1535, %v1070
        %v1537 = vpop.permute.xlu0 %1536
        %1540 = vset.pattern.permute.xlu0 0
        %1541 = vperm.xlu0 %1540, %v1071
        %v1542 = vpop.permute.xlu0 %1541
        %1545 = vset.pattern.permute.xlu0 0
        %1546 = vperm.xlu0 %1545, %v1072
        %v1547 = vpop.permute.xlu0 %1546
        %1550 = vset.pattern.permute.xlu0 0
        %1551 = vperm.xlu0 %1550, %v1073
        %v1552 = vpop.permute.xlu0 %1551
        %1555 = vset.pattern.permute.xlu0 0
        %1556 = vperm.xlu0 %1555, %v1074
        %v1557 = vpop.permute.xlu0 %1556
        %1560 = vset.pattern.permute.xlu0 0
        %1561 = vperm.xlu0 %1560, %v1075
        %v1562 = vpop.permute.xlu0 %1561
        %1565 = vset.pattern.permute.xlu0 0
        %1566 = vperm.xlu0 %1565, %v1076
        %v1567 = vpop.permute.xlu0 %1566
        %1570 = vset.pattern.permute.xlu0 0
        %1571 = vperm.xlu0 %1570, %v1077
        %v1572 = vpop.permute.xlu0 %1571
        %1575 = vset.pattern.permute.xlu0 0
        %1576 = vperm.xlu0 %1575, %v1078
        %v1577 = vpop.permute.xlu0 %1576
        %1580 = vset.pattern.permute.xlu0 0
        %1581 = vperm.xlu0 %1580, %v1079
        %v1582 = vpop.permute.xlu0 %1581
        %1585 = vset.pattern.permute.xlu0 0
        %1586 = vperm.xlu0 %1585, %v1080
        %v1587 = vpop.permute.xlu0 %1586
        %1590 = vset.pattern.permute.xlu0 0
        %1591 = vperm.xlu0 %1590, %v1081
        %v1592 = vpop.permute.xlu0 %1591
        %1595 = vset.pattern.permute.xlu0 0
        %1596 = vperm.xlu0 %1595, %v1082
        %v1597 = vpop.permute.xlu0 %1596
        %1600 = vset.pattern.permute.xlu0 0
        %1601 = vperm.xlu0 %1600, %v1083
        %v1602 = vpop.permute.xlu0 %1601
        %1605 = vset.pattern.permute.xlu0 0
        %1606 = vperm.xlu0 %1605, %v1084
        %v1607 = vpop.permute.xlu0 %1606
        %1610 = vset.pattern.permute.xlu0 0
        %1611 = vperm.xlu0 %1610, %v1085
        %v1612 = vpop.permute.xlu0 %1611
        %1615 = vset.pattern.permute.xlu0 0
        %1616 = vperm.xlu0 %1615, %v1086
        %v1617 = vpop.permute.xlu0 %1616
        %1620 = vset.pattern.permute.xlu0 0
        %1621 = vperm.xlu0 %1620, %v1087
        %v1622 = vpop.permute.xlu0 %1621
        %1625 = vset.pattern.permute.xlu0 0
        %1626 = vperm.xlu0 %1625, %v1088
        %v1627 = vpop.permute.xlu0 %1626
        %1630 = vset.pattern.permute.xlu0 0
        %1631 = vperm.xlu0 %1630, %v1089
        %v1632 = vpop.permute.xlu0 %1631
        %1635 = vset.pattern.permute.xlu0 0
        %1636 = vperm.xlu0 %1635, %v1090
        %v1637 = vpop.permute.xlu0 %1636
        %1640 = vset.pattern.permute.xlu0 0
        %1641 = vperm.xlu0 %1640, %v1091
        %v1642 = vpop.permute.xlu0 %1641
        %1645 = vset.pattern.permute.xlu0 0
        %1646 = vperm.xlu0 %1645, %v1092
        %v1647 = vpop.permute.xlu0 %1646
        %1650 = vset.pattern.permute.xlu0 0
        %1651 = vperm.xlu0 %1650, %v1093
        %v1652 = vpop.permute.xlu0 %1651
        %1655 = vset.pattern.permute.xlu0 0
        %1656 = vperm.xlu0 %1655, %v1094
        %v1657 = vpop.permute.xlu0 %1656
        %1660 = vset.pattern.permute.xlu0 0
        %1661 = vperm.xlu0 %1660, %v1095
        %v1662 = vpop.permute.xlu0 %1661
        %1665 = vset.pattern.permute.xlu0 0
        %1666 = vperm.xlu0 %1665, %v1096
        %v1667 = vpop.permute.xlu0 %1666
        %1670 = vset.pattern.permute.xlu0 0
        %1671 = vperm.xlu0 %1670, %v1097
        %v1672 = vpop.permute.xlu0 %1671
        %1675 = vset.pattern.permute.xlu0 0
        %1676 = vperm.xlu0 %1675, %v1098
        %v1677 = vpop.permute.xlu0 %1676
        %1680 = vset.pattern.permute.xlu0 0
        %1681 = vperm.xlu0 %1680, %v1099
        %v1682 = vpop.permute.xlu0 %1681
        %1685 = vset.pattern.permute.xlu0 0
        %1686 = vperm.xlu0 %1685, %v1100
        %v1687 = vpop.permute.xlu0 %1686
        %1690 = vset.pattern.permute.xlu0 0
        %1691 = vperm.xlu0 %1690, %v1101
        %v1692 = vpop.permute.xlu0 %1691
        %1695 = vset.pattern.permute.xlu0 0
        %1696 = vperm.xlu0 %1695, %v1102
        %v1697 = vpop.permute.xlu0 %1696
        %1700 = vset.pattern.permute.xlu0 0
        %1701 = vperm.xlu0 %1700, %v1103
        %v1702 = vpop.permute.xlu0 %1701
        %1705 = vset.pattern.permute.xlu0 0
        %1706 = vperm.xlu0 %1705, %v1104
        %v1707 = vpop.permute.xlu0 %1706
        %1710 = vset.pattern.permute.xlu0 0
        %1711 = vperm.xlu0 %1710, %v1105
        %v1712 = vpop.permute.xlu0 %1711
        %1715 = vset.pattern.permute.xlu0 0
        %1716 = vperm.xlu0 %1715, %v1106
        %v1717 = vpop.permute.xlu0 %1716
        %1720 = vset.pattern.permute.xlu0 0
        %1721 = vperm.xlu0 %1720, %v1107
        %v1722 = vpop.permute.xlu0 %1721
        %1725 = vset.pattern.permute.xlu0 0
        %1726 = vperm.xlu0 %1725, %v1108
        %v1727 = vpop.permute.xlu0 %1726
        %1730 = vset.pattern.permute.xlu0 0
        %1731 = vperm.xlu0 %1730, %v1109
        %v1732 = vpop.permute.xlu0 %1731
        %1735 = vset.pattern.permute.xlu0 0
        %1736 = vperm.xlu0 %1735, %v1110
        %v1737 = vpop.permute.xlu0 %1736
        %1740 = vset.pattern.permute.xlu0 0
        %1741 = vperm.xlu0 %1740, %v1111
        %v1742 = vpop.permute.xlu0 %1741
        %1745 = vset.pattern.permute.xlu0 0
        %1746 = vperm.xlu0 %1745, %v1112
        %v1747 = vpop.permute.xlu0 %1746
        %1750 = vset.pattern.permute.xlu0 0
        %1751 = vperm.xlu0 %1750, %v1113
        %v1752 = vpop.permute.xlu0 %1751
        %v1882 = vunpack.c.l.b16 %v850
        %v1883 = vunpack.c.l.b16 %v851
        %v1884 = vunpack.c.l.b16 %v852
        %v1885 = vunpack.c.l.b16 %v853
        %v1886 = vunpack.c.l.b16 %v854
        %v1887 = vunpack.c.l.b16 %v855
        %v1888 = vunpack.c.l.b16 %v856
        %v1889 = vunpack.c.l.b16 %v857
        %v1890 = vunpack.c.l.b16 %v858
        %v1891 = vunpack.c.l.b16 %v859
        %v1892 = vunpack.c.l.b16 %v860
        %v1893 = vunpack.c.l.b16 %v861
        %v1894 = vunpack.c.l.b16 %v862
        %v1895 = vunpack.c.l.b16 %v863
        %v1896 = vunpack.c.l.b16 %v864
        %v1897 = vunpack.c.l.b16 %v865
        %v1898 = vunpack.c.l.b16 %v866
        %v1899 = vunpack.c.l.b16 %v867
        %v1900 = vunpack.c.l.b16 %v868
        %v1901 = vunpack.c.l.b16 %v869
        %v1902 = vunpack.c.l.b16 %v870
        %v1903 = vunpack.c.l.b16 %v871
        %v1904 = vunpack.c.l.b16 %v872
        %v1905 = vunpack.c.l.b16 %v873
        %v1906 = vunpack.c.l.b16 %v874
        %v1907 = vunpack.c.l.b16 %v875
        %v1908 = vunpack.c.l.b16 %v876
        %v1909 = vunpack.c.l.b16 %v877
        %v1910 = vunpack.c.l.b16 %v878
        %v1911 = vunpack.c.l.b16 %v879
        %v1912 = vunpack.c.l.b16 %v880
        %v1913 = vunpack.c.l.b16 %v881
        %v1914 = vunpack.c.l.b16 %v882
        %v1915 = vunpack.c.l.b16 %v883
        %v1916 = vunpack.c.l.b16 %v884
        %v1917 = vunpack.c.l.b16 %v885
        %v1918 = vunpack.c.l.b16 %v886
        %v1919 = vunpack.c.l.b16 %v887
        %v1920 = vunpack.c.l.b16 %v888
        %v1921 = vunpack.c.l.b16 %v889
        %v1922 = vunpack.c.l.b16 %v890
        %v1923 = vunpack.c.l.b16 %v891
        %v1924 = vunpack.c.l.b16 %v892
        %v1925 = vunpack.c.l.b16 %v893
        %v1926 = vunpack.c.l.b16 %v894
        %v1927 = vunpack.c.l.b16 %v895
        %v1928 = vunpack.c.l.b16 %v896
        %v1929 = vunpack.c.l.b16 %v897
        %v1930 = vunpack.c.l.b16 %v898
        %v1931 = vunpack.c.l.b16 %v899
        %v1932 = vunpack.c.l.b16 %v900
        %v1933 = vunpack.c.l.b16 %v901
        %v1934 = vunpack.c.l.b16 %v902
        %v1935 = vunpack.c.l.b16 %v903
        %v1936 = vunpack.c.l.b16 %v904
        %v1937 = vunpack.c.l.b16 %v905
        %v1938 = vunpack.c.l.b16 %v906
        %v1939 = vunpack.c.l.b16 %v907
        %v1940 = vunpack.c.l.b16 %v908
        %v1941 = vunpack.c.l.b16 %v909
        %v1942 = vunpack.c.l.b16 %v910
        %v1943 = vunpack.c.l.b16 %v911
        %v1944 = vunpack.c.l.b16 %v912
        %v1945 = vunpack.c.l.b16 %v913
        %v1946 = vunpack.c.l.b16 %v914
        %v1947 = vunpack.c.l.b16 %v915
        %v1948 = vunpack.c.l.b16 %v916
        %v1949 = vunpack.c.l.b16 %v917
        %v1950 = vunpack.c.l.b16 %v918
        %v1951 = vunpack.c.l.b16 %v919
        %v1952 = vunpack.c.l.b16 %v920
        %v1953 = vunpack.c.l.b16 %v921
        %v1954 = vunpack.c.l.b16 %v922
        %v1955 = vunpack.c.l.b16 %v923
        %v1956 = vunpack.c.l.b16 %v924
        %v1957 = vunpack.c.l.b16 %v925
        %v1958 = vunpack.c.l.b16 %v926
        %v1959 = vunpack.c.l.b16 %v927
        %v1960 = vunpack.c.l.b16 %v928
        %v1961 = vunpack.c.l.b16 %v929
        %v1962 = vunpack.c.l.b16 %v930
        %v1963 = vunpack.c.l.b16 %v931
        %v1964 = vunpack.c.l.b16 %v932
        %v1965 = vunpack.c.l.b16 %v933
        %v1966 = vunpack.c.l.b16 %v934
        %v1967 = vunpack.c.l.b16 %v935
        %v1968 = vunpack.c.l.b16 %v936
        %v1969 = vunpack.c.l.b16 %v937
        %v1970 = vunpack.c.l.b16 %v938
        %v1971 = vunpack.c.l.b16 %v939
        %v1972 = vunpack.c.l.b16 %v940
        %v1973 = vunpack.c.l.b16 %v941
        %v1974 = vunpack.c.l.b16 %v942
        %v1975 = vunpack.c.l.b16 %v943
        %v1976 = vunpack.c.l.b16 %v944
        %v1977 = vunpack.c.l.b16 %v945
        %v1978 = vunpack.c.l.b16 %v946
        %v1979 = vunpack.c.l.b16 %v947
        %v1980 = vunpack.c.l.b16 %v948
        %v1981 = vunpack.c.l.b16 %v949
        %v1982 = vunpack.c.l.b16 %v950
        %v1983 = vunpack.c.l.b16 %v951
        %v1984 = vunpack.c.l.b16 %v952
        %v1985 = vunpack.c.l.b16 %v953
        %v1986 = vunpack.c.l.b16 %v954
        %v1987 = vunpack.c.l.b16 %v955
        %v1988 = vunpack.c.l.b16 %v956
        %v1989 = vunpack.c.l.b16 %v957
        %v1990 = vunpack.c.l.b16 %v958
        %v1991 = vunpack.c.l.b16 %v959
        %v1992 = vunpack.c.l.b16 %v960
        %v1993 = vunpack.c.l.b16 %v961
        %v1994 = vunpack.c.l.b16 %v962
        %v1995 = vunpack.c.l.b16 %v963
        %v1996 = vunpack.c.l.b16 %v964
        %v1997 = vunpack.c.l.b16 %v965
        %v1998 = vunpack.c.l.b16 %v966
        %v1999 = vunpack.c.l.b16 %v967
        %v2000 = vunpack.c.l.b16 %v968
        %v2001 = vunpack.c.l.b16 %v969
        %v2002 = vunpack.c.l.b16 %v970
        %v2003 = vunpack.c.l.b16 %v971
        %v2004 = vunpack.c.l.b16 %v972
        %v2005 = vunpack.c.l.b16 %v973
        %v2006 = vunpack.c.l.b16 %v974
        %v2007 = vunpack.c.l.b16 %v975
        %v2008 = vunpack.c.l.b16 %v976
        %v2009 = vunpack.c.l.b16 %v977
        %v2010 = vpack.c.b16 %v1883, %v1882
        %v2011 = vpack.c.b16 %v1885, %v1884
        %v2012 = vpack.c.b16 %v1887, %v1886
        %v2013 = vpack.c.b16 %v1889, %v1888
        %v2014 = vpack.c.b16 %v1891, %v1890
        %v2015 = vpack.c.b16 %v1893, %v1892
        %v2016 = vpack.c.b16 %v1895, %v1894
        %v2017 = vpack.c.b16 %v1897, %v1896
        %v2018 = vpack.c.b16 %v1899, %v1898
        %v2019 = vpack.c.b16 %v1901, %v1900
        %v2020 = vpack.c.b16 %v1903, %v1902
        %v2021 = vpack.c.b16 %v1905, %v1904
        %v2022 = vpack.c.b16 %v1907, %v1906
        %v2023 = vpack.c.b16 %v1909, %v1908
        %v2024 = vpack.c.b16 %v1911, %v1910
        %v2025 = vpack.c.b16 %v1913, %v1912
        %v2026 = vpack.c.b16 %v1915, %v1914
        %v2027 = vpack.c.b16 %v1917, %v1916
        %v2028 = vpack.c.b16 %v1919, %v1918
        %v2029 = vpack.c.b16 %v1921, %v1920
        %v2030 = vpack.c.b16 %v1923, %v1922
        %v2031 = vpack.c.b16 %v1925, %v1924
        %v2032 = vpack.c.b16 %v1927, %v1926
        %v2033 = vpack.c.b16 %v1929, %v1928
        %v2034 = vpack.c.b16 %v1931, %v1930
        %v2035 = vpack.c.b16 %v1933, %v1932
        %v2036 = vpack.c.b16 %v1935, %v1934
        %v2037 = vpack.c.b16 %v1937, %v1936
        %v2038 = vpack.c.b16 %v1939, %v1938
        %v2039 = vpack.c.b16 %v1941, %v1940
        %v2040 = vpack.c.b16 %v1943, %v1942
        %v2041 = vpack.c.b16 %v1945, %v1944
        %v2042 = vpack.c.b16 %v1947, %v1946
        %v2043 = vpack.c.b16 %v1949, %v1948
        %v2044 = vpack.c.b16 %v1951, %v1950
        %v2045 = vpack.c.b16 %v1953, %v1952
        %v2046 = vpack.c.b16 %v1955, %v1954
        %v2047 = vpack.c.b16 %v1957, %v1956
        %v2048 = vpack.c.b16 %v1959, %v1958
        %v2049 = vpack.c.b16 %v1961, %v1960
        %v2050 = vpack.c.b16 %v1963, %v1962
        %v2051 = vpack.c.b16 %v1965, %v1964
        %v2052 = vpack.c.b16 %v1967, %v1966
        %v2053 = vpack.c.b16 %v1969, %v1968
        %v2054 = vpack.c.b16 %v1971, %v1970
        %v2055 = vpack.c.b16 %v1973, %v1972
        %v2056 = vpack.c.b16 %v1975, %v1974
        %v2057 = vpack.c.b16 %v1977, %v1976
        %v2058 = vpack.c.b16 %v1979, %v1978
        %v2059 = vpack.c.b16 %v1981, %v1980
        %v2060 = vpack.c.b16 %v1983, %v1982
        %v2061 = vpack.c.b16 %v1985, %v1984
        %v2062 = vpack.c.b16 %v1987, %v1986
        %v2063 = vpack.c.b16 %v1989, %v1988
        %v2064 = vpack.c.b16 %v1991, %v1990
        %v2065 = vpack.c.b16 %v1993, %v1992
        %v2066 = vpack.c.b16 %v1995, %v1994
        %v2067 = vpack.c.b16 %v1997, %v1996
        %v2068 = vpack.c.b16 %v1999, %v1998
        %v2069 = vpack.c.b16 %v2001, %v2000
        %v2070 = vpack.c.b16 %v2003, %v2002
        %v2071 = vpack.c.b16 %v2005, %v2004
        %v2072 = vpack.c.b16 %v2007, %v2006
        %v2073 = vpack.c.b16 %v2009, %v2008
        %2138 = vmatpush.bf16.msra.mxu0 %v985
        %2139 = vmatpush.bf16.msra.mxu0 %v984
        %2140 = vmatpush.bf16.msra.mxu0 %v983
        %2141 = vmatpush.bf16.msra.mxu0 %v982
        %2142 = vmatpush.bf16.msra.mxu0 %v981
        %2143 = vmatpush.bf16.msra.mxu0 %v980
        %2144 = vmatpush.bf16.msra.mxu0 %v979
        %2145 = vmatpush.bf16.msra.mxu0 %v978
        %2146 = vmatmul.bf16.gmra.mxu0 %v2010
        %v2147 = vpop.f32.mrf.mxu0
        %v2148 = vadd.f32 %v1117, %v2147
        %v2149 = vpop.f32.mrf.mxu0
        %v2150 = vadd.f32 %v1122, %v2149
        %2151 = vmatmul.bf16.gmra.mxu0 %v2011
        %v2152 = vpop.f32.mrf.mxu0
        %v2153 = vadd.f32 %v1127, %v2152
        %v2154 = vpop.f32.mrf.mxu0
        %v2155 = vadd.f32 %v1132, %v2154
        %2156 = vmatmul.bf16.gmra.mxu0 %v2012
        %v2157 = vpop.f32.mrf.mxu0
        %v2158 = vadd.f32 %v1137, %v2157
        %v2159 = vpop.f32.mrf.mxu0
        %v2160 = vadd.f32 %v1142, %v2159
        %2161 = vmatmul.bf16.gmra.mxu0 %v2013
        %v2162 = vpop.f32.mrf.mxu0
        %v2163 = vadd.f32 %v1147, %v2162
        %v2164 = vpop.f32.mrf.mxu0
        %v2165 = vadd.f32 %v1152, %v2164
        %2166 = vmatmul.bf16.gmra.mxu0 %v2014
        %v2167 = vpop.f32.mrf.mxu0
        %v2168 = vadd.f32 %v1157, %v2167
        %v2169 = vpop.f32.mrf.mxu0
        %v2170 = vadd.f32 %v1162, %v2169
        %2171 = vmatmul.bf16.gmra.mxu0 %v2015
        %v2172 = vpop.f32.mrf.mxu0
        %v2173 = vadd.f32 %v1167, %v2172
        %v2174 = vpop.f32.mrf.mxu0
        %v2175 = vadd.f32 %v1172, %v2174
        %2176 = vmatmul.bf16.gmra.mxu0 %v2016
        %v2177 = vpop.f32.mrf.mxu0
        %v2178 = vadd.f32 %v1177, %v2177
        %v2179 = vpop.f32.mrf.mxu0
        %v2180 = vadd.f32 %v1182, %v2179
        %2181 = vmatmul.bf16.gmra.mxu0 %v2017
        %v2182 = vpop.f32.mrf.mxu0
        %v2183 = vadd.f32 %v1187, %v2182
        %v2184 = vpop.f32.mrf.mxu0
        %v2185 = vadd.f32 %v1192, %v2184
        %2186 = vmatmul.bf16.gmra.mxu0 %v2018
        %v2187 = vpop.f32.mrf.mxu0
        %v2188 = vadd.f32 %v1197, %v2187
        %v2189 = vpop.f32.mrf.mxu0
        %v2190 = vadd.f32 %v1202, %v2189
        %2191 = vmatmul.bf16.gmra.mxu0 %v2019
        %v2192 = vpop.f32.mrf.mxu0
        %v2193 = vadd.f32 %v1207, %v2192
        %v2194 = vpop.f32.mrf.mxu0
        %v2195 = vadd.f32 %v1212, %v2194
        %2196 = vmatmul.bf16.gmra.mxu0 %v2020
        %v2197 = vpop.f32.mrf.mxu0
        %v2198 = vadd.f32 %v1217, %v2197
        %v2199 = vpop.f32.mrf.mxu0
        %v2200 = vadd.f32 %v1222, %v2199
        %2201 = vmatmul.bf16.gmra.mxu0 %v2021
        %v2202 = vpop.f32.mrf.mxu0
        %v2203 = vadd.f32 %v1227, %v2202
        %v2204 = vpop.f32.mrf.mxu0
        %v2205 = vadd.f32 %v1232, %v2204
        %2206 = vmatmul.bf16.gmra.mxu0 %v2022
        %v2207 = vpop.f32.mrf.mxu0
        %v2208 = vadd.f32 %v1237, %v2207
        %v2209 = vpop.f32.mrf.mxu0
        %v2210 = vadd.f32 %v1242, %v2209
        %2211 = vmatmul.bf16.gmra.mxu0 %v2023
        %v2212 = vpop.f32.mrf.mxu0
        %v2213 = vadd.f32 %v1247, %v2212
        %v2214 = vpop.f32.mrf.mxu0
        %v2215 = vadd.f32 %v1252, %v2214
        %2216 = vmatmul.bf16.gmra.mxu0 %v2024
        %v2217 = vpop.f32.mrf.mxu0
        %v2218 = vadd.f32 %v1257, %v2217
        %v2219 = vpop.f32.mrf.mxu0
        %v2220 = vadd.f32 %v1262, %v2219
        %2221 = vmatmul.bf16.gmra.mxu0 %v2025
        %v2222 = vpop.f32.mrf.mxu0
        %v2223 = vadd.f32 %v1267, %v2222
        %v2224 = vpop.f32.mrf.mxu0
        %v2225 = vadd.f32 %v1272, %v2224
        %2226 = vmatmul.bf16.gmra.mxu0 %v2026
        %v2227 = vpop.f32.mrf.mxu0
        %v2228 = vadd.f32 %v1277, %v2227
        %v2229 = vpop.f32.mrf.mxu0
        %v2230 = vadd.f32 %v1282, %v2229
        %2231 = vmatmul.bf16.gmra.mxu0 %v2027
        %v2232 = vpop.f32.mrf.mxu0
        %v2233 = vadd.f32 %v1287, %v2232
        %v2234 = vpop.f32.mrf.mxu0
        %v2235 = vadd.f32 %v1292, %v2234
        %2236 = vmatmul.bf16.gmra.mxu0 %v2028
        %v2237 = vpop.f32.mrf.mxu0
        %v2238 = vadd.f32 %v1297, %v2237
        %v2239 = vpop.f32.mrf.mxu0
        %v2240 = vadd.f32 %v1302, %v2239
        %2241 = vmatmul.bf16.gmra.mxu0 %v2029
        %v2242 = vpop.f32.mrf.mxu0
        %v2243 = vadd.f32 %v1307, %v2242
        %v2244 = vpop.f32.mrf.mxu0
        %v2245 = vadd.f32 %v1312, %v2244
        %2246 = vmatmul.bf16.gmra.mxu0 %v2030
        %v2247 = vpop.f32.mrf.mxu0
        %v2248 = vadd.f32 %v1317, %v2247
        %v2249 = vpop.f32.mrf.mxu0
        %v2250 = vadd.f32 %v1322, %v2249
        %2251 = vmatmul.bf16.gmra.mxu0 %v2031
        %v2252 = vpop.f32.mrf.mxu0
        %v2253 = vadd.f32 %v1327, %v2252
        %v2254 = vpop.f32.mrf.mxu0
        %v2255 = vadd.f32 %v1332, %v2254
        %2256 = vmatmul.bf16.gmra.mxu0 %v2032
        %v2257 = vpop.f32.mrf.mxu0
        %v2258 = vadd.f32 %v1337, %v2257
        %v2259 = vpop.f32.mrf.mxu0
        %v2260 = vadd.f32 %v1342, %v2259
        %2261 = vmatmul.bf16.gmra.mxu0 %v2033
        %v2262 = vpop.f32.mrf.mxu0
        %v2263 = vadd.f32 %v1347, %v2262
        %v2264 = vpop.f32.mrf.mxu0
        %v2265 = vadd.f32 %v1352, %v2264
        %2266 = vmatmul.bf16.gmra.mxu0 %v2034
        %v2267 = vpop.f32.mrf.mxu0
        %v2268 = vadd.f32 %v1357, %v2267
        %v2269 = vpop.f32.mrf.mxu0
        %v2270 = vadd.f32 %v1362, %v2269
        %2271 = vmatmul.bf16.gmra.mxu0 %v2035
        %v2272 = vpop.f32.mrf.mxu0
        %v2273 = vadd.f32 %v1367, %v2272
        %v2274 = vpop.f32.mrf.mxu0
        %v2275 = vadd.f32 %v1372, %v2274
        %2276 = vmatmul.bf16.gmra.mxu0 %v2036
        %v2277 = vpop.f32.mrf.mxu0
        %v2278 = vadd.f32 %v1377, %v2277
        %v2279 = vpop.f32.mrf.mxu0
        %v2280 = vadd.f32 %v1382, %v2279
        %2281 = vmatmul.bf16.gmra.mxu0 %v2037
        %v2282 = vpop.f32.mrf.mxu0
        %v2283 = vadd.f32 %v1387, %v2282
        %v2284 = vpop.f32.mrf.mxu0
        %v2285 = vadd.f32 %v1392, %v2284
        %2286 = vmatmul.bf16.gmra.mxu0 %v2038
        %v2287 = vpop.f32.mrf.mxu0
        %v2288 = vadd.f32 %v1397, %v2287
        %v2289 = vpop.f32.mrf.mxu0
        %v2290 = vadd.f32 %v1402, %v2289
        %2291 = vmatmul.bf16.gmra.mxu0 %v2039
        %v2292 = vpop.f32.mrf.mxu0
        %v2293 = vadd.f32 %v1407, %v2292
        %v2294 = vpop.f32.mrf.mxu0
        %v2295 = vadd.f32 %v1412, %v2294
        %2296 = vmatmul.bf16.gmra.mxu0 %v2040
        %v2297 = vpop.f32.mrf.mxu0
        %v2298 = vadd.f32 %v1417, %v2297
        %v2299 = vpop.f32.mrf.mxu0
        %v2300 = vadd.f32 %v1422, %v2299
        %2301 = vmatmul.bf16.gmra.mxu0 %v2041
        %v2302 = vpop.f32.mrf.mxu0
        %v2303 = vadd.f32 %v1427, %v2302
        %v2304 = vpop.f32.mrf.mxu0
        %v2305 = vadd.f32 %v1432, %v2304
        %2306 = vmatmul.bf16.gmra.mxu0 %v2042
        %v2307 = vpop.f32.mrf.mxu0
        %v2308 = vadd.f32 %v1437, %v2307
        %v2309 = vpop.f32.mrf.mxu0
        %v2310 = vadd.f32 %v1442, %v2309
        %2311 = vmatmul.bf16.gmra.mxu0 %v2043
        %v2312 = vpop.f32.mrf.mxu0
        %v2313 = vadd.f32 %v1447, %v2312
        %v2314 = vpop.f32.mrf.mxu0
        %v2315 = vadd.f32 %v1452, %v2314
        %2316 = vmatmul.bf16.gmra.mxu0 %v2044
        %v2317 = vpop.f32.mrf.mxu0
        %v2318 = vadd.f32 %v1457, %v2317
        %v2319 = vpop.f32.mrf.mxu0
        %v2320 = vadd.f32 %v1462, %v2319
        %2321 = vmatmul.bf16.gmra.mxu0 %v2045
        %v2322 = vpop.f32.mrf.mxu0
        %v2323 = vadd.f32 %v1467, %v2322
        %v2324 = vpop.f32.mrf.mxu0
        %v2325 = vadd.f32 %v1472, %v2324
        %2326 = vmatmul.bf16.gmra.mxu0 %v2046
        %v2327 = vpop.f32.mrf.mxu0
        %v2328 = vadd.f32 %v1477, %v2327
        %v2329 = vpop.f32.mrf.mxu0
        %v2330 = vadd.f32 %v1482, %v2329
        %2331 = vmatmul.bf16.gmra.mxu0 %v2047
        %v2332 = vpop.f32.mrf.mxu0
        %v2333 = vadd.f32 %v1487, %v2332
        %v2334 = vpop.f32.mrf.mxu0
        %v2335 = vadd.f32 %v1492, %v2334
        %2336 = vmatmul.bf16.gmra.mxu0 %v2048
        %v2337 = vpop.f32.mrf.mxu0
        %v2338 = vadd.f32 %v1497, %v2337
        %v2339 = vpop.f32.mrf.mxu0
        %v2340 = vadd.f32 %v1502, %v2339
        %2341 = vmatmul.bf16.gmra.mxu0 %v2049
        %v2342 = vpop.f32.mrf.mxu0
        %v2343 = vadd.f32 %v1507, %v2342
        %v2344 = vpop.f32.mrf.mxu0
        %v2345 = vadd.f32 %v1512, %v2344
        %2346 = vmatmul.bf16.gmra.mxu0 %v2050
        %v2347 = vpop.f32.mrf.mxu0
        %v2348 = vadd.f32 %v1517, %v2347
        %v2349 = vpop.f32.mrf.mxu0
        %v2350 = vadd.f32 %v1522, %v2349
        %2351 = vmatmul.bf16.gmra.mxu0 %v2051
        %v2352 = vpop.f32.mrf.mxu0
        %v2353 = vadd.f32 %v1527, %v2352
        %v2354 = vpop.f32.mrf.mxu0
        %v2355 = vadd.f32 %v1532, %v2354
        %2356 = vmatmul.bf16.gmra.mxu0 %v2052
        %v2357 = vpop.f32.mrf.mxu0
        %v2358 = vadd.f32 %v1537, %v2357
        %v2359 = vpop.f32.mrf.mxu0
        %v2360 = vadd.f32 %v1542, %v2359
        %2361 = vmatmul.bf16.gmra.mxu0 %v2053
        %v2362 = vpop.f32.mrf.mxu0
        %v2363 = vadd.f32 %v1547, %v2362
        %v2364 = vpop.f32.mrf.mxu0
        %v2365 = vadd.f32 %v1552, %v2364
        %2366 = vmatmul.bf16.gmra.mxu0 %v2054
        %v2367 = vpop.f32.mrf.mxu0
        %v2368 = vadd.f32 %v1557, %v2367
        %v2369 = vpop.f32.mrf.mxu0
        %v2370 = vadd.f32 %v1562, %v2369
        %2371 = vmatmul.bf16.gmra.mxu0 %v2055
        %v2372 = vpop.f32.mrf.mxu0
        %v2373 = vadd.f32 %v1567, %v2372
        %v2374 = vpop.f32.mrf.mxu0
        %v2375 = vadd.f32 %v1572, %v2374
        %2376 = vmatmul.bf16.gmra.mxu0 %v2056
        %v2377 = vpop.f32.mrf.mxu0
        %v2378 = vadd.f32 %v1577, %v2377
        %v2379 = vpop.f32.mrf.mxu0
        %v2380 = vadd.f32 %v1582, %v2379
        %2381 = vmatmul.bf16.gmra.mxu0 %v2057
        %v2382 = vpop.f32.mrf.mxu0
        %v2383 = vadd.f32 %v1587, %v2382
        %v2384 = vpop.f32.mrf.mxu0
        %v2385 = vadd.f32 %v1592, %v2384
        %2386 = vmatmul.bf16.gmra.mxu0 %v2058
        %v2387 = vpop.f32.mrf.mxu0
        %v2388 = vadd.f32 %v1597, %v2387
        %v2389 = vpop.f32.mrf.mxu0
        %v2390 = vadd.f32 %v1602, %v2389
        %2391 = vmatmul.bf16.gmra.mxu0 %v2059
        %v2392 = vpop.f32.mrf.mxu0
        %v2393 = vadd.f32 %v1607, %v2392
        %v2394 = vpop.f32.mrf.mxu0
        %v2395 = vadd.f32 %v1612, %v2394
        %2396 = vmatmul.bf16.gmra.mxu0 %v2060
        %v2397 = vpop.f32.mrf.mxu0
        %v2398 = vadd.f32 %v1617, %v2397
        %v2399 = vpop.f32.mrf.mxu0
        %v2400 = vadd.f32 %v1622, %v2399
        %2401 = vmatmul.bf16.gmra.mxu0 %v2061
        %v2402 = vpop.f32.mrf.mxu0
        %v2403 = vadd.f32 %v1627, %v2402
        %v2404 = vpop.f32.mrf.mxu0
        %v2405 = vadd.f32 %v1632, %v2404
        %2406 = vmatmul.bf16.gmra.mxu0 %v2062
        %v2407 = vpop.f32.mrf.mxu0
        %v2408 = vadd.f32 %v1637, %v2407
        %v2409 = vpop.f32.mrf.mxu0
        %v2410 = vadd.f32 %v1642, %v2409
        %2411 = vmatmul.bf16.gmra.mxu0 %v2063
        %v2412 = vpop.f32.mrf.mxu0
        %v2413 = vadd.f32 %v1647, %v2412
        %v2414 = vpop.f32.mrf.mxu0
        %v2415 = vadd.f32 %v1652, %v2414
        %2416 = vmatmul.bf16.gmra.mxu0 %v2064
        %v2417 = vpop.f32.mrf.mxu0
        %v2418 = vadd.f32 %v1657, %v2417
        %v2419 = vpop.f32.mrf.mxu0
        %v2420 = vadd.f32 %v1662, %v2419
        %2421 = vmatmul.bf16.gmra.mxu0 %v2065
        %v2422 = vpop.f32.mrf.mxu0
        %v2423 = vadd.f32 %v1667, %v2422
        %v2424 = vpop.f32.mrf.mxu0
        %v2425 = vadd.f32 %v1672, %v2424
        %2426 = vmatmul.bf16.gmra.mxu0 %v2066
        %v2427 = vpop.f32.mrf.mxu0
        %v2428 = vadd.f32 %v1677, %v2427
        %v2429 = vpop.f32.mrf.mxu0
        %v2430 = vadd.f32 %v1682, %v2429
        %2431 = vmatmul.bf16.gmra.mxu0 %v2067
        %v2432 = vpop.f32.mrf.mxu0
        %v2433 = vadd.f32 %v1687, %v2432
        %v2434 = vpop.f32.mrf.mxu0
        %v2435 = vadd.f32 %v1692, %v2434
        %2436 = vmatmul.bf16.gmra.mxu0 %v2068
        %v2437 = vpop.f32.mrf.mxu0
        %v2438 = vadd.f32 %v1697, %v2437
        %v2439 = vpop.f32.mrf.mxu0
        %v2440 = vadd.f32 %v1702, %v2439
        %2441 = vmatmul.bf16.gmra.mxu0 %v2069
        %v2442 = vpop.f32.mrf.mxu0
        %v2443 = vadd.f32 %v1707, %v2442
        %v2444 = vpop.f32.mrf.mxu0
        %v2445 = vadd.f32 %v1712, %v2444
        %2446 = vmatmul.bf16.gmra.mxu0 %v2070
        %v2447 = vpop.f32.mrf.mxu0
        %v2448 = vadd.f32 %v1717, %v2447
        %v2449 = vpop.f32.mrf.mxu0
        %v2450 = vadd.f32 %v1722, %v2449
        %2451 = vmatmul.bf16.gmra.mxu0 %v2071
        %v2452 = vpop.f32.mrf.mxu0
        %v2453 = vadd.f32 %v1727, %v2452
        %v2454 = vpop.f32.mrf.mxu0
        %v2455 = vadd.f32 %v1732, %v2454
        %2456 = vmatmul.bf16.gmra.mxu0 %v2072
        %v2457 = vpop.f32.mrf.mxu0
        %v2458 = vadd.f32 %v1737, %v2457
        %v2459 = vpop.f32.mrf.mxu0
        %v2460 = vadd.f32 %v1742, %v2459
        %2461 = vmatmul.bf16.gmra.mxu0 %v2073
        %v2462 = vpop.f32.mrf.mxu0
        %v2463 = vadd.f32 %v1747, %v2462
        %v2464 = vpop.f32.mrf.mxu0
        %v2465 = vadd.f32 %v1752, %v2464
        %2466 = vdwg.mxu0
        %v2467 = vmax.f32 %v2148, 0.0
        %v2468 = vmax.f32 %v2150, 0.0
        %v2469 = vmax.f32 %v2153, 0.0
        %v2470 = vmax.f32 %v2155, 0.0
        %v2471 = vmax.f32 %v2158, 0.0
        %v2472 = vmax.f32 %v2160, 0.0
        %v2473 = vmax.f32 %v2163, 0.0
        %v2474 = vmax.f32 %v2165, 0.0
        %v2475 = vmax.f32 %v2168, 0.0
        %v2476 = vmax.f32 %v2170, 0.0
        %v2477 = vmax.f32 %v2173, 0.0
        %v2478 = vmax.f32 %v2175, 0.0
        %v2479 = vmax.f32 %v2178, 0.0
        %v2480 = vmax.f32 %v2180, 0.0
        %v2481 = vmax.f32 %v2183, 0.0
        %v2482 = vmax.f32 %v2185, 0.0
        %v2483 = vmax.f32 %v2188, 0.0
        %v2484 = vmax.f32 %v2190, 0.0
        %v2485 = vmax.f32 %v2193, 0.0
        %v2486 = vmax.f32 %v2195, 0.0
        %v2487 = vmax.f32 %v2198, 0.0
        %v2488 = vmax.f32 %v2200, 0.0
        %v2489 = vmax.f32 %v2203, 0.0
        %v2490 = vmax.f32 %v2205, 0.0
        %v2491 = vmax.f32 %v2208, 0.0
        %v2492 = vmax.f32 %v2210, 0.0
        %v2493 = vmax.f32 %v2213, 0.0
        %v2494 = vmax.f32 %v2215, 0.0
        %v2495 = vmax.f32 %v2218, 0.0
        %v2496 = vmax.f32 %v2220, 0.0
        %v2497 = vmax.f32 %v2223, 0.0
        %v2498 = vmax.f32 %v2225, 0.0
        %v2499 = vmax.f32 %v2228, 0.0
        %v2500 = vmax.f32 %v2230, 0.0
        %v2501 = vmax.f32 %v2233, 0.0
        %v2502 = vmax.f32 %v2235, 0.0
        %v2503 = vmax.f32 %v2238, 0.0
        %v2504 = vmax.f32 %v2240, 0.0
        %v2505 = vmax.f32 %v2243, 0.0
        %v2506 = vmax.f32 %v2245, 0.0
        %v2507 = vmax.f32 %v2248, 0.0
        %v2508 = vmax.f32 %v2250, 0.0
        %v2509 = vmax.f32 %v2253, 0.0
        %v2510 = vmax.f32 %v2255, 0.0
        %v2511 = vmax.f32 %v2258, 0.0
        %v2512 = vmax.f32 %v2260, 0.0
        %v2513 = vmax.f32 %v2263, 0.0
        %v2514 = vmax.f32 %v2265, 0.0
        %v2515 = vmax.f32 %v2268, 0.0
        %v2516 = vmax.f32 %v2270, 0.0
        %v2517 = vmax.f32 %v2273, 0.0
        %v2518 = vmax.f32 %v2275, 0.0
        %v2519 = vmax.f32 %v2278, 0.0
        %v2520 = vmax.f32 %v2280, 0.0
        %v2521 = vmax.f32 %v2283, 0.0
        %v2522 = vmax.f32 %v2285, 0.0
        %v2523 = vmax.f32 %v2288, 0.0
        %v2524 = vmax.f32 %v2290, 0.0
        %v2525 = vmax.f32 %v2293, 0.0
        %v2526 = vmax.f32 %v2295, 0.0
        %v2527 = vmax.f32 %v2298, 0.0
        %v2528 = vmax.f32 %v2300, 0.0
        %v2529 = vmax.f32 %v2303, 0.0
        %v2530 = vmax.f32 %v2305, 0.0
        %v2531 = vmax.f32 %v2308, 0.0
        %v2532 = vmax.f32 %v2310, 0.0
        %v2533 = vmax.f32 %v2313, 0.0
        %v2534 = vmax.f32 %v2315, 0.0
        %v2535 = vmax.f32 %v2318, 0.0
        %v2536 = vmax.f32 %v2320, 0.0
        %v2537 = vmax.f32 %v2323, 0.0
        %v2538 = vmax.f32 %v2325, 0.0
        %v2539 = vmax.f32 %v2328, 0.0
        %v2540 = vmax.f32 %v2330, 0.0
        %v2541 = vmax.f32 %v2333, 0.0
        %v2542 = vmax.f32 %v2335, 0.0
        %v2543 = vmax.f32 %v2338, 0.0
        %v2544 = vmax.f32 %v2340, 0.0
        %v2545 = vmax.f32 %v2343, 0.0
        %v2546 = vmax.f32 %v2345, 0.0
        %v2547 = vmax.f32 %v2348, 0.0
        %v2548 = vmax.f32 %v2350, 0.0
        %v2549 = vmax.f32 %v2353, 0.0
        %v2550 = vmax.f32 %v2355, 0.0
        %v2551 = vmax.f32 %v2358, 0.0
        %v2552 = vmax.f32 %v2360, 0.0
        %v2553 = vmax.f32 %v2363, 0.0
        %v2554 = vmax.f32 %v2365, 0.0
        %v2555 = vmax.f32 %v2368, 0.0
        %v2556 = vmax.f32 %v2370, 0.0
        %v2557 = vmax.f32 %v2373, 0.0
        %v2558 = vmax.f32 %v2375, 0.0
        %v2559 = vmax.f32 %v2378, 0.0
        %v2560 = vmax.f32 %v2380, 0.0
        %v2561 = vmax.f32 %v2383, 0.0
        %v2562 = vmax.f32 %v2385, 0.0
        %v2563 = vmax.f32 %v2388, 0.0
        %v2564 = vmax.f32 %v2390, 0.0
        %v2565 = vmax.f32 %v2393, 0.0
        %v2566 = vmax.f32 %v2395, 0.0
        %v2567 = vmax.f32 %v2398, 0.0
        %v2568 = vmax.f32 %v2400, 0.0
        %v2569 = vmax.f32 %v2403, 0.0
        %v2570 = vmax.f32 %v2405, 0.0
        %v2571 = vmax.f32 %v2408, 0.0
        %v2572 = vmax.f32 %v2410, 0.0
        %v2573 = vmax.f32 %v2413, 0.0
        %v2574 = vmax.f32 %v2415, 0.0
        %v2575 = vmax.f32 %v2418, 0.0
        %v2576 = vmax.f32 %v2420, 0.0
        %v2577 = vmax.f32 %v2423, 0.0
        %v2578 = vmax.f32 %v2425, 0.0
        %v2579 = vmax.f32 %v2428, 0.0
        %v2580 = vmax.f32 %v2430, 0.0
        %v2581 = vmax.f32 %v2433, 0.0
        %v2582 = vmax.f32 %v2435, 0.0
        %v2583 = vmax.f32 %v2438, 0.0
        %v2584 = vmax.f32 %v2440, 0.0
        %v2585 = vmax.f32 %v2443, 0.0
        %v2586 = vmax.f32 %v2445, 0.0
        %v2587 = vmax.f32 %v2448, 0.0
        %v2588 = vmax.f32 %v2450, 0.0
        %v2589 = vmax.f32 %v2453, 0.0
        %v2590 = vmax.f32 %v2455, 0.0
        %v2591 = vmax.f32 %v2458, 0.0
        %v2592 = vmax.f32 %v2460, 0.0
        %v2593 = vmax.f32 %v2463, 0.0
        %v2594 = vmax.f32 %v2465, 0.0
        %s2595 = smul.u32 %s23, 128
        %v2596 = vlaneseq
        %v2597 = vand.u32 %v2596, 127
        %v2598 = vstv %s2595
        %v2599 = vadd.s32 %v2598, %v2597
        %vm2600 = vcmp.lt.s32.totalorder %v2599, 320
        %v2601 = vsel %vm2600, 1, 0
        %vm2602 = vcmp.eq.s32.totalorder %v2601, 1
        %v2603 = vsel %vm2602, %v2467, -inf
        %v2604 = vsel %vm2602, %v2468, -inf
        %v2605 = vsel %vm2602, %v2469, -inf
        %v2606 = vsel %vm2602, %v2470, -inf
        %v2607 = vsel %vm2602, %v2471, -inf
        %v2608 = vsel %vm2602, %v2472, -inf
        %v2609 = vsel %vm2602, %v2473, -inf
        %v2610 = vsel %vm2602, %v2474, -inf
        %v2611 = vsel %vm2602, %v2475, -inf
        %v2612 = vsel %vm2602, %v2476, -inf
        %v2613 = vsel %vm2602, %v2477, -inf
        %v2614 = vsel %vm2602, %v2478, -inf
        %v2615 = vsel %vm2602, %v2479, -inf
        %v2616 = vsel %vm2602, %v2480, -inf
        %v2617 = vsel %vm2602, %v2481, -inf
        %v2618 = vsel %vm2602, %v2482, -inf
        %v2619 = vsel %vm2602, %v2483, -inf
        %v2620 = vsel %vm2602, %v2484, -inf
        %v2621 = vsel %vm2602, %v2485, -inf
        %v2622 = vsel %vm2602, %v2486, -inf
        %v2623 = vsel %vm2602, %v2487, -inf
        %v2624 = vsel %vm2602, %v2488, -inf
        %v2625 = vsel %vm2602, %v2489, -inf
        %v2626 = vsel %vm2602, %v2490, -inf
        %v2627 = vsel %vm2602, %v2491, -inf
        %v2628 = vsel %vm2602, %v2492, -inf
        %v2629 = vsel %vm2602, %v2493, -inf
        %v2630 = vsel %vm2602, %v2494, -inf
        %v2631 = vsel %vm2602, %v2495, -inf
        %v2632 = vsel %vm2602, %v2496, -inf
        %v2633 = vsel %vm2602, %v2497, -inf
        %v2634 = vsel %vm2602, %v2498, -inf
        %v2635 = vsel %vm2602, %v2499, -inf
        %v2636 = vsel %vm2602, %v2500, -inf
        %v2637 = vsel %vm2602, %v2501, -inf
        %v2638 = vsel %vm2602, %v2502, -inf
        %v2639 = vsel %vm2602, %v2503, -inf
        %v2640 = vsel %vm2602, %v2504, -inf
        %v2641 = vsel %vm2602, %v2505, -inf
        %v2642 = vsel %vm2602, %v2506, -inf
        %v2643 = vsel %vm2602, %v2507, -inf
        %v2644 = vsel %vm2602, %v2508, -inf
        %v2645 = vsel %vm2602, %v2509, -inf
        %v2646 = vsel %vm2602, %v2510, -inf
        %v2647 = vsel %vm2602, %v2511, -inf
        %v2648 = vsel %vm2602, %v2512, -inf
        %v2649 = vsel %vm2602, %v2513, -inf
        %v2650 = vsel %vm2602, %v2514, -inf
        %v2651 = vsel %vm2602, %v2515, -inf
        %v2652 = vsel %vm2602, %v2516, -inf
        %v2653 = vsel %vm2602, %v2517, -inf
        %v2654 = vsel %vm2602, %v2518, -inf
        %v2655 = vsel %vm2602, %v2519, -inf
        %v2656 = vsel %vm2602, %v2520, -inf
        %v2657 = vsel %vm2602, %v2521, -inf
        %v2658 = vsel %vm2602, %v2522, -inf
        %v2659 = vsel %vm2602, %v2523, -inf
        %v2660 = vsel %vm2602, %v2524, -inf
        %v2661 = vsel %vm2602, %v2525, -inf
        %v2662 = vsel %vm2602, %v2526, -inf
        %v2663 = vsel %vm2602, %v2527, -inf
        %v2664 = vsel %vm2602, %v2528, -inf
        %v2665 = vsel %vm2602, %v2529, -inf
        %v2666 = vsel %vm2602, %v2530, -inf
        %v2667 = vsel %vm2602, %v2531, -inf
        %v2668 = vsel %vm2602, %v2532, -inf
        %v2669 = vsel %vm2602, %v2533, -inf
        %v2670 = vsel %vm2602, %v2534, -inf
        %v2671 = vsel %vm2602, %v2535, -inf
        %v2672 = vsel %vm2602, %v2536, -inf
        %v2673 = vsel %vm2602, %v2537, -inf
        %v2674 = vsel %vm2602, %v2538, -inf
        %v2675 = vsel %vm2602, %v2539, -inf
        %v2676 = vsel %vm2602, %v2540, -inf
        %v2677 = vsel %vm2602, %v2541, -inf
        %v2678 = vsel %vm2602, %v2542, -inf
        %v2679 = vsel %vm2602, %v2543, -inf
        %v2680 = vsel %vm2602, %v2544, -inf
        %v2681 = vsel %vm2602, %v2545, -inf
        %v2682 = vsel %vm2602, %v2546, -inf
        %v2683 = vsel %vm2602, %v2547, -inf
        %v2684 = vsel %vm2602, %v2548, -inf
        %v2685 = vsel %vm2602, %v2549, -inf
        %v2686 = vsel %vm2602, %v2550, -inf
        %v2687 = vsel %vm2602, %v2551, -inf
        %v2688 = vsel %vm2602, %v2552, -inf
        %v2689 = vsel %vm2602, %v2553, -inf
        %v2690 = vsel %vm2602, %v2554, -inf
        %v2691 = vsel %vm2602, %v2555, -inf
        %v2692 = vsel %vm2602, %v2556, -inf
        %v2693 = vsel %vm2602, %v2557, -inf
        %v2694 = vsel %vm2602, %v2558, -inf
        %v2695 = vsel %vm2602, %v2559, -inf
        %v2696 = vsel %vm2602, %v2560, -inf
        %v2697 = vsel %vm2602, %v2561, -inf
        %v2698 = vsel %vm2602, %v2562, -inf
        %v2699 = vsel %vm2602, %v2563, -inf
        %v2700 = vsel %vm2602, %v2564, -inf
        %v2701 = vsel %vm2602, %v2565, -inf
        %v2702 = vsel %vm2602, %v2566, -inf
        %v2703 = vsel %vm2602, %v2567, -inf
        %v2704 = vsel %vm2602, %v2568, -inf
        %v2705 = vsel %vm2602, %v2569, -inf
        %v2706 = vsel %vm2602, %v2570, -inf
        %v2707 = vsel %vm2602, %v2571, -inf
        %v2708 = vsel %vm2602, %v2572, -inf
        %v2709 = vsel %vm2602, %v2573, -inf
        %v2710 = vsel %vm2602, %v2574, -inf
        %v2711 = vsel %vm2602, %v2575, -inf
        %v2712 = vsel %vm2602, %v2576, -inf
        %v2713 = vsel %vm2602, %v2577, -inf
        %v2714 = vsel %vm2602, %v2578, -inf
        %v2715 = vsel %vm2602, %v2579, -inf
        %v2716 = vsel %vm2602, %v2580, -inf
        %v2717 = vsel %vm2602, %v2581, -inf
        %v2718 = vsel %vm2602, %v2582, -inf
        %v2719 = vsel %vm2602, %v2583, -inf
        %v2720 = vsel %vm2602, %v2584, -inf
        %v2721 = vsel %vm2602, %v2585, -inf
        %v2722 = vsel %vm2602, %v2586, -inf
        %v2723 = vsel %vm2602, %v2587, -inf
        %v2724 = vsel %vm2602, %v2588, -inf
        %v2725 = vsel %vm2602, %v2589, -inf
        %v2726 = vsel %vm2602, %v2590, -inf
        %v2727 = vsel %vm2602, %v2591, -inf
        %v2728 = vsel %vm2602, %v2592, -inf
        %v2729 = vsel %vm2602, %v2593, -inf
        %v2730 = vsel %vm2602, %v2594, -inf
        %v2731 = vld [vmem:[#allocation2] sm:$0xff]
        %v2732 = vld [vmem:[#allocation2 + $0x8] sm:$0xff]
        %v2733 = vld [vmem:[#allocation2 + $0x10] sm:$0xff]
        %v2734 = vld [vmem:[#allocation2 + $0x18] sm:$0xff]
        %v2735 = vld [vmem:[#allocation2 + $0x20] sm:$0xff]
        %v2736 = vld [vmem:[#allocation2 + $0x28] sm:$0xff]
        %v2737 = vld [vmem:[#allocation2 + $0x30] sm:$0xff]
        %v2738 = vld [vmem:[#allocation2 + $0x38] sm:$0xff]
        %v2739 = vld [vmem:[#allocation2 + $0x40] sm:$0xff]
        %v2740 = vld [vmem:[#allocation2 + $0x48] sm:$0xff]
        %v2741 = vld [vmem:[#allocation2 + $0x50] sm:$0xff]
        %v2742 = vld [vmem:[#allocation2 + $0x58] sm:$0xff]
        %v2743 = vld [vmem:[#allocation2 + $0x60] sm:$0xff]
        %v2744 = vld [vmem:[#allocation2 + $0x68] sm:$0xff]
        %v2745 = vld [vmem:[#allocation2 + $0x70] sm:$0xff]
        %v2746 = vld [vmem:[#allocation2 + $0x78] sm:$0xff]
        %v2747 = vld [vmem:[#allocation2 + $0x80] sm:$0xff]
        %v2748 = vld [vmem:[#allocation2 + $0x88] sm:$0xff]
        %v2749 = vld [vmem:[#allocation2 + $0x90] sm:$0xff]
        %v2750 = vld [vmem:[#allocation2 + $0x98] sm:$0xff]
        %v2751 = vld [vmem:[#allocation2 + $0xa0] sm:$0xff]
        %v2752 = vld [vmem:[#allocation2 + $0xa8] sm:$0xff]
        %v2753 = vld [vmem:[#allocation2 + $0xb0] sm:$0xff]
        %v2754 = vld [vmem:[#allocation2 + $0xb8] sm:$0xff]
        %v2755 = vld [vmem:[#allocation2 + $0xc0] sm:$0xff]
        %v2756 = vld [vmem:[#allocation2 + $0xc8] sm:$0xff]
        %v2757 = vld [vmem:[#allocation2 + $0xd0] sm:$0xff]
        %v2758 = vld [vmem:[#allocation2 + $0xd8] sm:$0xff]
        %v2759 = vld [vmem:[#allocation2 + $0xe0] sm:$0xff]
        %v2760 = vld [vmem:[#allocation2 + $0xe8] sm:$0xff]
        %v2761 = vld [vmem:[#allocation2 + $0xf0] sm:$0xff]
        %v2762 = vld [vmem:[#allocation2 + $0xf8] sm:$0xff]
        %v2763 = vld [vmem:[#allocation2 + $0x100] sm:$0xff]
        %v2764 = vld [vmem:[#allocation2 + $0x108] sm:$0xff]
        %v2765 = vld [vmem:[#allocation2 + $0x110] sm:$0xff]
        %v2766 = vld [vmem:[#allocation2 + $0x118] sm:$0xff]
        %v2767 = vld [vmem:[#allocation2 + $0x120] sm:$0xff]
        %v2768 = vld [vmem:[#allocation2 + $0x128] sm:$0xff]
        %v2769 = vld [vmem:[#allocation2 + $0x130] sm:$0xff]
        %v2770 = vld [vmem:[#allocation2 + $0x138] sm:$0xff]
        %v2771 = vld [vmem:[#allocation2 + $0x140] sm:$0xff]
        %v2772 = vld [vmem:[#allocation2 + $0x148] sm:$0xff]
        %v2773 = vld [vmem:[#allocation2 + $0x150] sm:$0xff]
        %v2774 = vld [vmem:[#allocation2 + $0x158] sm:$0xff]
        %v2775 = vld [vmem:[#allocation2 + $0x160] sm:$0xff]
        %v2776 = vld [vmem:[#allocation2 + $0x168] sm:$0xff]
        %v2777 = vld [vmem:[#allocation2 + $0x170] sm:$0xff]
        %v2778 = vld [vmem:[#allocation2 + $0x178] sm:$0xff]
        %v2779 = vld [vmem:[#allocation2 + $0x180] sm:$0xff]
        %v2780 = vld [vmem:[#allocation2 + $0x188] sm:$0xff]
        %v2781 = vld [vmem:[#allocation2 + $0x190] sm:$0xff]
        %v2782 = vld [vmem:[#allocation2 + $0x198] sm:$0xff]
        %v2783 = vld [vmem:[#allocation2 + $0x1a0] sm:$0xff]
        %v2784 = vld [vmem:[#allocation2 + $0x1a8] sm:$0xff]
        %v2785 = vld [vmem:[#allocation2 + $0x1b0] sm:$0xff]
        %v2786 = vld [vmem:[#allocation2 + $0x1b8] sm:$0xff]
        %v2787 = vld [vmem:[#allocation2 + $0x1c0] sm:$0xff]
        %v2788 = vld [vmem:[#allocation2 + $0x1c8] sm:$0xff]
        %v2789 = vld [vmem:[#allocation2 + $0x1d0] sm:$0xff]
        %v2790 = vld [vmem:[#allocation2 + $0x1d8] sm:$0xff]
        %v2791 = vld [vmem:[#allocation2 + $0x1e0] sm:$0xff]
        %v2792 = vld [vmem:[#allocation2 + $0x1e8] sm:$0xff]
        %v2793 = vld [vmem:[#allocation2 + $0x1f0] sm:$0xff]
        %v2794 = vld [vmem:[#allocation2 + $0x1f8] sm:$0xff]
        %v2795 = vld [vmem:[#allocation2 + $0x200] sm:$0xff]
        %v2796 = vld [vmem:[#allocation2 + $0x208] sm:$0xff]
        %v2797 = vld [vmem:[#allocation2 + $0x210] sm:$0xff]
        %v2798 = vld [vmem:[#allocation2 + $0x218] sm:$0xff]
        %v2799 = vld [vmem:[#allocation2 + $0x220] sm:$0xff]
        %v2800 = vld [vmem:[#allocation2 + $0x228] sm:$0xff]
        %v2801 = vld [vmem:[#allocation2 + $0x230] sm:$0xff]
        %v2802 = vld [vmem:[#allocation2 + $0x238] sm:$0xff]
        %v2803 = vld [vmem:[#allocation2 + $0x240] sm:$0xff]
        %v2804 = vld [vmem:[#allocation2 + $0x248] sm:$0xff]
        %v2805 = vld [vmem:[#allocation2 + $0x250] sm:$0xff]
        %v2806 = vld [vmem:[#allocation2 + $0x258] sm:$0xff]
        %v2807 = vld [vmem:[#allocation2 + $0x260] sm:$0xff]
        %v2808 = vld [vmem:[#allocation2 + $0x268] sm:$0xff]
        %v2809 = vld [vmem:[#allocation2 + $0x270] sm:$0xff]
        %v2810 = vld [vmem:[#allocation2 + $0x278] sm:$0xff]
        %v2811 = vld [vmem:[#allocation2 + $0x280] sm:$0xff]
        %v2812 = vld [vmem:[#allocation2 + $0x288] sm:$0xff]
        %v2813 = vld [vmem:[#allocation2 + $0x290] sm:$0xff]
        %v2814 = vld [vmem:[#allocation2 + $0x298] sm:$0xff]
        %v2815 = vld [vmem:[#allocation2 + $0x2a0] sm:$0xff]
        %v2816 = vld [vmem:[#allocation2 + $0x2a8] sm:$0xff]
        %v2817 = vld [vmem:[#allocation2 + $0x2b0] sm:$0xff]
        %v2818 = vld [vmem:[#allocation2 + $0x2b8] sm:$0xff]
        %v2819 = vld [vmem:[#allocation2 + $0x2c0] sm:$0xff]
        %v2820 = vld [vmem:[#allocation2 + $0x2c8] sm:$0xff]
        %v2821 = vld [vmem:[#allocation2 + $0x2d0] sm:$0xff]
        %v2822 = vld [vmem:[#allocation2 + $0x2d8] sm:$0xff]
        %v2823 = vld [vmem:[#allocation2 + $0x2e0] sm:$0xff]
        %v2824 = vld [vmem:[#allocation2 + $0x2e8] sm:$0xff]
        %v2825 = vld [vmem:[#allocation2 + $0x2f0] sm:$0xff]
        %v2826 = vld [vmem:[#allocation2 + $0x2f8] sm:$0xff]
        %v2827 = vld [vmem:[#allocation2 + $0x300] sm:$0xff]
        %v2828 = vld [vmem:[#allocation2 + $0x308] sm:$0xff]
        %v2829 = vld [vmem:[#allocation2 + $0x310] sm:$0xff]
        %v2830 = vld [vmem:[#allocation2 + $0x318] sm:$0xff]
        %v2831 = vld [vmem:[#allocation2 + $0x320] sm:$0xff]
        %v2832 = vld [vmem:[#allocation2 + $0x328] sm:$0xff]
        %v2833 = vld [vmem:[#allocation2 + $0x330] sm:$0xff]
        %v2834 = vld [vmem:[#allocation2 + $0x338] sm:$0xff]
        %v2835 = vld [vmem:[#allocation2 + $0x340] sm:$0xff]
        %v2836 = vld [vmem:[#allocation2 + $0x348] sm:$0xff]
        %v2837 = vld [vmem:[#allocation2 + $0x350] sm:$0xff]
        %v2838 = vld [vmem:[#allocation2 + $0x358] sm:$0xff]
        %v2839 = vld [vmem:[#allocation2 + $0x360] sm:$0xff]
        %v2840 = vld [vmem:[#allocation2 + $0x368] sm:$0xff]
        %v2841 = vld [vmem:[#allocation2 + $0x370] sm:$0xff]
        %v2842 = vld [vmem:[#allocation2 + $0x378] sm:$0xff]
        %v2843 = vld [vmem:[#allocation2 + $0x380] sm:$0xff]
        %v2844 = vld [vmem:[#allocation2 + $0x388] sm:$0xff]
        %v2845 = vld [vmem:[#allocation2 + $0x390] sm:$0xff]
        %v2846 = vld [vmem:[#allocation2 + $0x398] sm:$0xff]
        %v2847 = vld [vmem:[#allocation2 + $0x3a0] sm:$0xff]
        %v2848 = vld [vmem:[#allocation2 + $0x3a8] sm:$0xff]
        %v2849 = vld [vmem:[#allocation2 + $0x3b0] sm:$0xff]
        %v2850 = vld [vmem:[#allocation2 + $0x3b8] sm:$0xff]
        %v2851 = vld [vmem:[#allocation2 + $0x3c0] sm:$0xff]
        %v2852 = vld [vmem:[#allocation2 + $0x3c8] sm:$0xff]
        %v2853 = vld [vmem:[#allocation2 + $0x3d0] sm:$0xff]
        %v2854 = vld [vmem:[#allocation2 + $0x3d8] sm:$0xff]
        %v2855 = vld [vmem:[#allocation2 + $0x3e0] sm:$0xff]
        %v2856 = vld [vmem:[#allocation2 + $0x3e8] sm:$0xff]
        %v2857 = vld [vmem:[#allocation2 + $0x3f0] sm:$0xff]
        %v2858 = vld [vmem:[#allocation2 + $0x3f8] sm:$0xff]
        %2859 = vmax.xlane.f32.xlu0 %v2603
        %v2860 = vpop.xlane.xlu0 %2859
        %2861 = vmax.xlane.f32.xlu0 %v2604
        %v2862 = vpop.xlane.xlu0 %2861
        %2863 = vmax.xlane.f32.xlu0 %v2605
        %v2864 = vpop.xlane.xlu0 %2863
        %2865 = vmax.xlane.f32.xlu0 %v2606
        %v2866 = vpop.xlane.xlu0 %2865
        %2867 = vmax.xlane.f32.xlu0 %v2607
        %v2868 = vpop.xlane.xlu0 %2867
        %2869 = vmax.xlane.f32.xlu0 %v2608
        %v2870 = vpop.xlane.xlu0 %2869
        %2871 = vmax.xlane.f32.xlu0 %v2609
        %v2872 = vpop.xlane.xlu0 %2871
        %2873 = vmax.xlane.f32.xlu0 %v2610
        %v2874 = vpop.xlane.xlu0 %2873
        %2875 = vmax.xlane.f32.xlu0 %v2611
        %v2876 = vpop.xlane.xlu0 %2875
        %2877 = vmax.xlane.f32.xlu0 %v2612
        %v2878 = vpop.xlane.xlu0 %2877
        %2879 = vmax.xlane.f32.xlu0 %v2613
        %v2880 = vpop.xlane.xlu0 %2879
        %2881 = vmax.xlane.f32.xlu0 %v2614
        %v2882 = vpop.xlane.xlu0 %2881
        %2883 = vmax.xlane.f32.xlu0 %v2615
        %v2884 = vpop.xlane.xlu0 %2883
        %2885 = vmax.xlane.f32.xlu0 %v2616
        %v2886 = vpop.xlane.xlu0 %2885
        %2887 = vmax.xlane.f32.xlu0 %v2617
        %v2888 = vpop.xlane.xlu0 %2887
        %2889 = vmax.xlane.f32.xlu0 %v2618
        %v2890 = vpop.xlane.xlu0 %2889
        %2891 = vmax.xlane.f32.xlu0 %v2619
        %v2892 = vpop.xlane.xlu0 %2891
        %2893 = vmax.xlane.f32.xlu0 %v2620
        %v2894 = vpop.xlane.xlu0 %2893
        %2895 = vmax.xlane.f32.xlu0 %v2621
        %v2896 = vpop.xlane.xlu0 %2895
        %2897 = vmax.xlane.f32.xlu0 %v2622
        %v2898 = vpop.xlane.xlu0 %2897
        %2899 = vmax.xlane.f32.xlu0 %v2623
        %v2900 = vpop.xlane.xlu0 %2899
        %2901 = vmax.xlane.f32.xlu0 %v2624
        %v2902 = vpop.xlane.xlu0 %2901
        %2903 = vmax.xlane.f32.xlu0 %v2625
        %v2904 = vpop.xlane.xlu0 %2903
        %2905 = vmax.xlane.f32.xlu0 %v2626
        %v2906 = vpop.xlane.xlu0 %2905
        %2907 = vmax.xlane.f32.xlu0 %v2627
        %v2908 = vpop.xlane.xlu0 %2907
        %2909 = vmax.xlane.f32.xlu0 %v2628
        %v2910 = vpop.xlane.xlu0 %2909
        %2911 = vmax.xlane.f32.xlu0 %v2629
        %v2912 = vpop.xlane.xlu0 %2911
        %2913 = vmax.xlane.f32.xlu0 %v2630
        %v2914 = vpop.xlane.xlu0 %2913
        %2915 = vmax.xlane.f32.xlu0 %v2631
        %v2916 = vpop.xlane.xlu0 %2915
        %2917 = vmax.xlane.f32.xlu0 %v2632
        %v2918 = vpop.xlane.xlu0 %2917
        %2919 = vmax.xlane.f32.xlu0 %v2633
        %v2920 = vpop.xlane.xlu0 %2919
        %2921 = vmax.xlane.f32.xlu0 %v2634
        %v2922 = vpop.xlane.xlu0 %2921
        %2923 = vmax.xlane.f32.xlu0 %v2635
        %v2924 = vpop.xlane.xlu0 %2923
        %2925 = vmax.xlane.f32.xlu0 %v2636
        %v2926 = vpop.xlane.xlu0 %2925
        %2927 = vmax.xlane.f32.xlu0 %v2637
        %v2928 = vpop.xlane.xlu0 %2927
        %2929 = vmax.xlane.f32.xlu0 %v2638
        %v2930 = vpop.xlane.xlu0 %2929
        %2931 = vmax.xlane.f32.xlu0 %v2639
        %v2932 = vpop.xlane.xlu0 %2931
        %2933 = vmax.xlane.f32.xlu0 %v2640
        %v2934 = vpop.xlane.xlu0 %2933
        %2935 = vmax.xlane.f32.xlu0 %v2641
        %v2936 = vpop.xlane.xlu0 %2935
        %2937 = vmax.xlane.f32.xlu0 %v2642
        %v2938 = vpop.xlane.xlu0 %2937
        %2939 = vmax.xlane.f32.xlu0 %v2643
        %v2940 = vpop.xlane.xlu0 %2939
        %2941 = vmax.xlane.f32.xlu0 %v2644
        %v2942 = vpop.xlane.xlu0 %2941
        %2943 = vmax.xlane.f32.xlu0 %v2645
        %v2944 = vpop.xlane.xlu0 %2943
        %2945 = vmax.xlane.f32.xlu0 %v2646
        %v2946 = vpop.xlane.xlu0 %2945
        %2947 = vmax.xlane.f32.xlu0 %v2647
        %v2948 = vpop.xlane.xlu0 %2947
        %2949 = vmax.xlane.f32.xlu0 %v2648
        %v2950 = vpop.xlane.xlu0 %2949
        %2951 = vmax.xlane.f32.xlu0 %v2649
        %v2952 = vpop.xlane.xlu0 %2951
        %2953 = vmax.xlane.f32.xlu0 %v2650
        %v2954 = vpop.xlane.xlu0 %2953
        %2955 = vmax.xlane.f32.xlu0 %v2651
        %v2956 = vpop.xlane.xlu0 %2955
        %2957 = vmax.xlane.f32.xlu0 %v2652
        %v2958 = vpop.xlane.xlu0 %2957
        %2959 = vmax.xlane.f32.xlu0 %v2653
        %v2960 = vpop.xlane.xlu0 %2959
        %2961 = vmax.xlane.f32.xlu0 %v2654
        %v2962 = vpop.xlane.xlu0 %2961
        %2963 = vmax.xlane.f32.xlu0 %v2655
        %v2964 = vpop.xlane.xlu0 %2963
        %2965 = vmax.xlane.f32.xlu0 %v2656
        %v2966 = vpop.xlane.xlu0 %2965
        %2967 = vmax.xlane.f32.xlu0 %v2657
        %v2968 = vpop.xlane.xlu0 %2967
        %2969 = vmax.xlane.f32.xlu0 %v2658
        %v2970 = vpop.xlane.xlu0 %2969
        %2971 = vmax.xlane.f32.xlu0 %v2659
        %v2972 = vpop.xlane.xlu0 %2971
        %2973 = vmax.xlane.f32.xlu0 %v2660
        %v2974 = vpop.xlane.xlu0 %2973
        %2975 = vmax.xlane.f32.xlu0 %v2661
        %v2976 = vpop.xlane.xlu0 %2975
        %2977 = vmax.xlane.f32.xlu0 %v2662
        %v2978 = vpop.xlane.xlu0 %2977
        %2979 = vmax.xlane.f32.xlu0 %v2663
        %v2980 = vpop.xlane.xlu0 %2979
        %2981 = vmax.xlane.f32.xlu0 %v2664
        %v2982 = vpop.xlane.xlu0 %2981
        %2983 = vmax.xlane.f32.xlu0 %v2665
        %v2984 = vpop.xlane.xlu0 %2983
        %2985 = vmax.xlane.f32.xlu0 %v2666
        %v2986 = vpop.xlane.xlu0 %2985
        %2987 = vmax.xlane.f32.xlu0 %v2667
        %v2988 = vpop.xlane.xlu0 %2987
        %2989 = vmax.xlane.f32.xlu0 %v2668
        %v2990 = vpop.xlane.xlu0 %2989
        %2991 = vmax.xlane.f32.xlu0 %v2669
        %v2992 = vpop.xlane.xlu0 %2991
        %2993 = vmax.xlane.f32.xlu0 %v2670
        %v2994 = vpop.xlane.xlu0 %2993
        %2995 = vmax.xlane.f32.xlu0 %v2671
        %v2996 = vpop.xlane.xlu0 %2995
        %2997 = vmax.xlane.f32.xlu0 %v2672
        %v2998 = vpop.xlane.xlu0 %2997
        %2999 = vmax.xlane.f32.xlu0 %v2673
        %v3000 = vpop.xlane.xlu0 %2999
        %3001 = vmax.xlane.f32.xlu0 %v2674
        %v3002 = vpop.xlane.xlu0 %3001
        %3003 = vmax.xlane.f32.xlu0 %v2675
        %v3004 = vpop.xlane.xlu0 %3003
        %3005 = vmax.xlane.f32.xlu0 %v2676
        %v3006 = vpop.xlane.xlu0 %3005
        %3007 = vmax.xlane.f32.xlu0 %v2677
        %v3008 = vpop.xlane.xlu0 %3007
        %3009 = vmax.xlane.f32.xlu0 %v2678
        %v3010 = vpop.xlane.xlu0 %3009
        %3011 = vmax.xlane.f32.xlu0 %v2679
        %v3012 = vpop.xlane.xlu0 %3011
        %3013 = vmax.xlane.f32.xlu0 %v2680
        %v3014 = vpop.xlane.xlu0 %3013
        %3015 = vmax.xlane.f32.xlu0 %v2681
        %v3016 = vpop.xlane.xlu0 %3015
        %3017 = vmax.xlane.f32.xlu0 %v2682
        %v3018 = vpop.xlane.xlu0 %3017
        %3019 = vmax.xlane.f32.xlu0 %v2683
        %v3020 = vpop.xlane.xlu0 %3019
        %3021 = vmax.xlane.f32.xlu0 %v2684
        %v3022 = vpop.xlane.xlu0 %3021
        %3023 = vmax.xlane.f32.xlu0 %v2685
        %v3024 = vpop.xlane.xlu0 %3023
        %3025 = vmax.xlane.f32.xlu0 %v2686
        %v3026 = vpop.xlane.xlu0 %3025
        %3027 = vmax.xlane.f32.xlu0 %v2687
        %v3028 = vpop.xlane.xlu0 %3027
        %3029 = vmax.xlane.f32.xlu0 %v2688
        %v3030 = vpop.xlane.xlu0 %3029
        %3031 = vmax.xlane.f32.xlu0 %v2689
        %v3032 = vpop.xlane.xlu0 %3031
        %3033 = vmax.xlane.f32.xlu0 %v2690
        %v3034 = vpop.xlane.xlu0 %3033
        %3035 = vmax.xlane.f32.xlu0 %v2691
        %v3036 = vpop.xlane.xlu0 %3035
        %3037 = vmax.xlane.f32.xlu0 %v2692
        %v3038 = vpop.xlane.xlu0 %3037
        %3039 = vmax.xlane.f32.xlu0 %v2693
        %v3040 = vpop.xlane.xlu0 %3039
        %3041 = vmax.xlane.f32.xlu0 %v2694
        %v3042 = vpop.xlane.xlu0 %3041
        %3043 = vmax.xlane.f32.xlu0 %v2695
        %v3044 = vpop.xlane.xlu0 %3043
        %3045 = vmax.xlane.f32.xlu0 %v2696
        %v3046 = vpop.xlane.xlu0 %3045
        %3047 = vmax.xlane.f32.xlu0 %v2697
        %v3048 = vpop.xlane.xlu0 %3047
        %3049 = vmax.xlane.f32.xlu0 %v2698
        %v3050 = vpop.xlane.xlu0 %3049
        %3051 = vmax.xlane.f32.xlu0 %v2699
        %v3052 = vpop.xlane.xlu0 %3051
        %3053 = vmax.xlane.f32.xlu0 %v2700
        %v3054 = vpop.xlane.xlu0 %3053
        %3055 = vmax.xlane.f32.xlu0 %v2701
        %v3056 = vpop.xlane.xlu0 %3055
        %3057 = vmax.xlane.f32.xlu0 %v2702
        %v3058 = vpop.xlane.xlu0 %3057
        %3059 = vmax.xlane.f32.xlu0 %v2703
        %v3060 = vpop.xlane.xlu0 %3059
        %3061 = vmax.xlane.f32.xlu0 %v2704
        %v3062 = vpop.xlane.xlu0 %3061
        %3063 = vmax.xlane.f32.xlu0 %v2705
        %v3064 = vpop.xlane.xlu0 %3063
        %3065 = vmax.xlane.f32.xlu0 %v2706
        %v3066 = vpop.xlane.xlu0 %3065
        %3067 = vmax.xlane.f32.xlu0 %v2707
        %v3068 = vpop.xlane.xlu0 %3067
        %3069 = vmax.xlane.f32.xlu0 %v2708
        %v3070 = vpop.xlane.xlu0 %3069
        %3071 = vmax.xlane.f32.xlu0 %v2709
        %v3072 = vpop.xlane.xlu0 %3071
        %3073 = vmax.xlane.f32.xlu0 %v2710
        %v3074 = vpop.xlane.xlu0 %3073
        %3075 = vmax.xlane.f32.xlu0 %v2711
        %v3076 = vpop.xlane.xlu0 %3075
        %3077 = vmax.xlane.f32.xlu0 %v2712
        %v3078 = vpop.xlane.xlu0 %3077
        %3079 = vmax.xlane.f32.xlu0 %v2713
        %v3080 = vpop.xlane.xlu0 %3079
        %3081 = vmax.xlane.f32.xlu0 %v2714
        %v3082 = vpop.xlane.xlu0 %3081
        %3083 = vmax.xlane.f32.xlu0 %v2715
        %v3084 = vpop.xlane.xlu0 %3083
        %3085 = vmax.xlane.f32.xlu0 %v2716
        %v3086 = vpop.xlane.xlu0 %3085
        %3087 = vmax.xlane.f32.xlu0 %v2717
        %v3088 = vpop.xlane.xlu0 %3087
        %3089 = vmax.xlane.f32.xlu0 %v2718
        %v3090 = vpop.xlane.xlu0 %3089
        %3091 = vmax.xlane.f32.xlu0 %v2719
        %v3092 = vpop.xlane.xlu0 %3091
        %3093 = vmax.xlane.f32.xlu0 %v2720
        %v3094 = vpop.xlane.xlu0 %3093
        %3095 = vmax.xlane.f32.xlu0 %v2721
        %v3096 = vpop.xlane.xlu0 %3095
        %3097 = vmax.xlane.f32.xlu0 %v2722
        %v3098 = vpop.xlane.xlu0 %3097
        %3099 = vmax.xlane.f32.xlu0 %v2723
        %v3100 = vpop.xlane.xlu0 %3099
        %3101 = vmax.xlane.f32.xlu0 %v2724
        %v3102 = vpop.xlane.xlu0 %3101
        %3103 = vmax.xlane.f32.xlu0 %v2725
        %v3104 = vpop.xlane.xlu0 %3103
        %3105 = vmax.xlane.f32.xlu0 %v2726
        %v3106 = vpop.xlane.xlu0 %3105
        %3107 = vmax.xlane.f32.xlu0 %v2727
        %v3108 = vpop.xlane.xlu0 %3107
        %3109 = vmax.xlane.f32.xlu0 %v2728
        %v3110 = vpop.xlane.xlu0 %3109
        %3111 = vmax.xlane.f32.xlu0 %v2729
        %v3112 = vpop.xlane.xlu0 %3111
        %3113 = vmax.xlane.f32.xlu0 %v2730
        %v3114 = vpop.xlane.xlu0 %3113
        %v3115 = vmax.f32 %v2731, %v2860
        %v3116 = vmax.f32 %v2732, %v2862
        %v3117 = vmax.f32 %v2733, %v2864
        %v3118 = vmax.f32 %v2734, %v2866
        %v3119 = vmax.f32 %v2735, %v2868
        %v3120 = vmax.f32 %v2736, %v2870
        %v3121 = vmax.f32 %v2737, %v2872
        %v3122 = vmax.f32 %v2738, %v2874
        %v3123 = vmax.f32 %v2739, %v2876
        %v3124 = vmax.f32 %v2740, %v2878
        %v3125 = vmax.f32 %v2741, %v2880
        %v3126 = vmax.f32 %v2742, %v2882
        %v3127 = vmax.f32 %v2743, %v2884
        %v3128 = vmax.f32 %v2744, %v2886
        %v3129 = vmax.f32 %v2745, %v2888
        %v3130 = vmax.f32 %v2746, %v2890
        %v3131 = vmax.f32 %v2747, %v2892
        %v3132 = vmax.f32 %v2748, %v2894
        %v3133 = vmax.f32 %v2749, %v2896
        %v3134 = vmax.f32 %v2750, %v2898
        %v3135 = vmax.f32 %v2751, %v2900
        %v3136 = vmax.f32 %v2752, %v2902
        %v3137 = vmax.f32 %v2753, %v2904
        %v3138 = vmax.f32 %v2754, %v2906
        %v3139 = vmax.f32 %v2755, %v2908
        %v3140 = vmax.f32 %v2756, %v2910
        %v3141 = vmax.f32 %v2757, %v2912
        %v3142 = vmax.f32 %v2758, %v2914
        %v3143 = vmax.f32 %v2759, %v2916
        %v3144 = vmax.f32 %v2760, %v2918
        %v3145 = vmax.f32 %v2761, %v2920
        %v3146 = vmax.f32 %v2762, %v2922
        %v3147 = vmax.f32 %v2763, %v2924
        %v3148 = vmax.f32 %v2764, %v2926
        %v3149 = vmax.f32 %v2765, %v2928
        %v3150 = vmax.f32 %v2766, %v2930
        %v3151 = vmax.f32 %v2767, %v2932
        %v3152 = vmax.f32 %v2768, %v2934
        %v3153 = vmax.f32 %v2769, %v2936
        %v3154 = vmax.f32 %v2770, %v2938
        %v3155 = vmax.f32 %v2771, %v2940
        %v3156 = vmax.f32 %v2772, %v2942
        %v3157 = vmax.f32 %v2773, %v2944
        %v3158 = vmax.f32 %v2774, %v2946
        %v3159 = vmax.f32 %v2775, %v2948
        %v3160 = vmax.f32 %v2776, %v2950
        %v3161 = vmax.f32 %v2777, %v2952
        %v3162 = vmax.f32 %v2778, %v2954
        %v3163 = vmax.f32 %v2779, %v2956
        %v3164 = vmax.f32 %v2780, %v2958
        %v3165 = vmax.f32 %v2781, %v2960
        %v3166 = vmax.f32 %v2782, %v2962
        %v3167 = vmax.f32 %v2783, %v2964
        %v3168 = vmax.f32 %v2784, %v2966
        %v3169 = vmax.f32 %v2785, %v2968
        %v3170 = vmax.f32 %v2786, %v2970
        %v3171 = vmax.f32 %v2787, %v2972
        %v3172 = vmax.f32 %v2788, %v2974
        %v3173 = vmax.f32 %v2789, %v2976
        %v3174 = vmax.f32 %v2790, %v2978
        %v3175 = vmax.f32 %v2791, %v2980
        %v3176 = vmax.f32 %v2792, %v2982
        %v3177 = vmax.f32 %v2793, %v2984
        %v3178 = vmax.f32 %v2794, %v2986
        %v3179 = vmax.f32 %v2795, %v2988
        %v3180 = vmax.f32 %v2796, %v2990
        %v3181 = vmax.f32 %v2797, %v2992
        %v3182 = vmax.f32 %v2798, %v2994
        %v3183 = vmax.f32 %v2799, %v2996
        %v3184 = vmax.f32 %v2800, %v2998
        %v3185 = vmax.f32 %v2801, %v3000
        %v3186 = vmax.f32 %v2802, %v3002
        %v3187 = vmax.f32 %v2803, %v3004
        %v3188 = vmax.f32 %v2804, %v3006
        %v3189 = vmax.f32 %v2805, %v3008
        %v3190 = vmax.f32 %v2806, %v3010
        %v3191 = vmax.f32 %v2807, %v3012
        %v3192 = vmax.f32 %v2808, %v3014
        %v3193 = vmax.f32 %v2809, %v3016
        %v3194 = vmax.f32 %v2810, %v3018
        %v3195 = vmax.f32 %v2811, %v3020
        %v3196 = vmax.f32 %v2812, %v3022
        %v3197 = vmax.f32 %v2813, %v3024
        %v3198 = vmax.f32 %v2814, %v3026
        %v3199 = vmax.f32 %v2815, %v3028
        %v3200 = vmax.f32 %v2816, %v3030
        %v3201 = vmax.f32 %v2817, %v3032
        %v3202 = vmax.f32 %v2818, %v3034
        %v3203 = vmax.f32 %v2819, %v3036
        %v3204 = vmax.f32 %v2820, %v3038
        %v3205 = vmax.f32 %v2821, %v3040
        %v3206 = vmax.f32 %v2822, %v3042
        %v3207 = vmax.f32 %v2823, %v3044
        %v3208 = vmax.f32 %v2824, %v3046
        %v3209 = vmax.f32 %v2825, %v3048
        %v3210 = vmax.f32 %v2826, %v3050
        %v3211 = vmax.f32 %v2827, %v3052
        %v3212 = vmax.f32 %v2828, %v3054
        %v3213 = vmax.f32 %v2829, %v3056
        %v3214 = vmax.f32 %v2830, %v3058
        %v3215 = vmax.f32 %v2831, %v3060
        %v3216 = vmax.f32 %v2832, %v3062
        %v3217 = vmax.f32 %v2833, %v3064
        %v3218 = vmax.f32 %v2834, %v3066
        %v3219 = vmax.f32 %v2835, %v3068
        %v3220 = vmax.f32 %v2836, %v3070
        %v3221 = vmax.f32 %v2837, %v3072
        %v3222 = vmax.f32 %v2838, %v3074
        %v3223 = vmax.f32 %v2839, %v3076
        %v3224 = vmax.f32 %v2840, %v3078
        %v3225 = vmax.f32 %v2841, %v3080
        %v3226 = vmax.f32 %v2842, %v3082
        %v3227 = vmax.f32 %v2843, %v3084
        %v3228 = vmax.f32 %v2844, %v3086
        %v3229 = vmax.f32 %v2845, %v3088
        %v3230 = vmax.f32 %v2846, %v3090
        %v3231 = vmax.f32 %v2847, %v3092
        %v3232 = vmax.f32 %v2848, %v3094
        %v3233 = vmax.f32 %v2849, %v3096
        %v3234 = vmax.f32 %v2850, %v3098
        %v3235 = vmax.f32 %v2851, %v3100
        %v3236 = vmax.f32 %v2852, %v3102
        %v3237 = vmax.f32 %v2853, %v3104
        %v3238 = vmax.f32 %v2854, %v3106
        %v3239 = vmax.f32 %v2855, %v3108
        %v3240 = vmax.f32 %v2856, %v3110
        %v3241 = vmax.f32 %v2857, %v3112
        %v3242 = vmax.f32 %v2858, %v3114
        %vm3243 = vcmask 7168
        %3244 = vst.msk [vmem:[#allocation2] sm:$0xff] %vm3243, %v3115
        %3245 = vst.msk [vmem:[#allocation2 + $0x8] sm:$0xff] %vm3243, %v3116
        %3246 = vst.msk [vmem:[#allocation2 + $0x10] sm:$0xff] %vm3243, %v3117
        %3247 = vst.msk [vmem:[#allocation2 + $0x18] sm:$0xff] %vm3243, %v3118
        %3248 = vst.msk [vmem:[#allocation2 + $0x20] sm:$0xff] %vm3243, %v3119
        %3249 = vst.msk [vmem:[#allocation2 + $0x28] sm:$0xff] %vm3243, %v3120
        %3250 = vst.msk [vmem:[#allocation2 + $0x30] sm:$0xff] %vm3243, %v3121
        %3251 = vst.msk [vmem:[#allocation2 + $0x38] sm:$0xff] %vm3243, %v3122
        %3252 = vst.msk [vmem:[#allocation2 + $0x40] sm:$0xff] %vm3243, %v3123
        %3253 = vst.msk [vmem:[#allocation2 + $0x48] sm:$0xff] %vm3243, %v3124
        %3254 = vst.msk [vmem:[#allocation2 + $0x50] sm:$0xff] %vm3243, %v3125
        %3255 = vst.msk [vmem:[#allocation2 + $0x58] sm:$0xff] %vm3243, %v3126
        %3256 = vst.msk [vmem:[#allocation2 + $0x60] sm:$0xff] %vm3243, %v3127
        %3257 = vst.msk [vmem:[#allocation2 + $0x68] sm:$0xff] %vm3243, %v3128
        %3258 = vst.msk [vmem:[#allocation2 + $0x70] sm:$0xff] %vm3243, %v3129
        %3259 = vst.msk [vmem:[#allocation2 + $0x78] sm:$0xff] %vm3243, %v3130
        %3260 = vst.msk [vmem:[#allocation2 + $0x80] sm:$0xff] %vm3243, %v3131
        %3261 = vst.msk [vmem:[#allocation2 + $0x88] sm:$0xff] %vm3243, %v3132
        %3262 = vst.msk [vmem:[#allocation2 + $0x90] sm:$0xff] %vm3243, %v3133
        %3263 = vst.msk [vmem:[#allocation2 + $0x98] sm:$0xff] %vm3243, %v3134
        %3264 = vst.msk [vmem:[#allocation2 + $0xa0] sm:$0xff] %vm3243, %v3135
        %3265 = vst.msk [vmem:[#allocation2 + $0xa8] sm:$0xff] %vm3243, %v3136
        %3266 = vst.msk [vmem:[#allocation2 + $0xb0] sm:$0xff] %vm3243, %v3137
        %3267 = vst.msk [vmem:[#allocation2 + $0xb8] sm:$0xff] %vm3243, %v3138
        %3268 = vst.msk [vmem:[#allocation2 + $0xc0] sm:$0xff] %vm3243, %v3139
        %3269 = vst.msk [vmem:[#allocation2 + $0xc8] sm:$0xff] %vm3243, %v3140
        %3270 = vst.msk [vmem:[#allocation2 + $0xd0] sm:$0xff] %vm3243, %v3141
        %3271 = vst.msk [vmem:[#allocation2 + $0xd8] sm:$0xff] %vm3243, %v3142
        %3272 = vst.msk [vmem:[#allocation2 + $0xe0] sm:$0xff] %vm3243, %v3143
        %3273 = vst.msk [vmem:[#allocation2 + $0xe8] sm:$0xff] %vm3243, %v3144
        %3274 = vst.msk [vmem:[#allocation2 + $0xf0] sm:$0xff] %vm3243, %v3145
        %3275 = vst.msk [vmem:[#allocation2 + $0xf8] sm:$0xff] %vm3243, %v3146
        %3276 = vst.msk [vmem:[#allocation2 + $0x100] sm:$0xff] %vm3243, %v3147
        %3277 = vst.msk [vmem:[#allocation2 + $0x108] sm:$0xff] %vm3243, %v3148
        %3278 = vst.msk [vmem:[#allocation2 + $0x110] sm:$0xff] %vm3243, %v3149
        %3279 = vst.msk [vmem:[#allocation2 + $0x118] sm:$0xff] %vm3243, %v3150
        %3280 = vst.msk [vmem:[#allocation2 + $0x120] sm:$0xff] %vm3243, %v3151
        %3281 = vst.msk [vmem:[#allocation2 + $0x128] sm:$0xff] %vm3243, %v3152
        %3282 = vst.msk [vmem:[#allocation2 + $0x130] sm:$0xff] %vm3243, %v3153
        %3283 = vst.msk [vmem:[#allocation2 + $0x138] sm:$0xff] %vm3243, %v3154
        %3284 = vst.msk [vmem:[#allocation2 + $0x140] sm:$0xff] %vm3243, %v3155
        %3285 = vst.msk [vmem:[#allocation2 + $0x148] sm:$0xff] %vm3243, %v3156
        %3286 = vst.msk [vmem:[#allocation2 + $0x150] sm:$0xff] %vm3243, %v3157
        %3287 = vst.msk [vmem:[#allocation2 + $0x158] sm:$0xff] %vm3243, %v3158
        %3288 = vst.msk [vmem:[#allocation2 + $0x160] sm:$0xff] %vm3243, %v3159
        %3289 = vst.msk [vmem:[#allocation2 + $0x168] sm:$0xff] %vm3243, %v3160
        %3290 = vst.msk [vmem:[#allocation2 + $0x170] sm:$0xff] %vm3243, %v3161
        %3291 = vst.msk [vmem:[#allocation2 + $0x178] sm:$0xff] %vm3243, %v3162
        %3292 = vst.msk [vmem:[#allocation2 + $0x180] sm:$0xff] %vm3243, %v3163
        %3293 = vst.msk [vmem:[#allocation2 + $0x188] sm:$0xff] %vm3243, %v3164
        %3294 = vst.msk [vmem:[#allocation2 + $0x190] sm:$0xff] %vm3243, %v3165
        %3295 = vst.msk [vmem:[#allocation2 + $0x198] sm:$0xff] %vm3243, %v3166
        %3296 = vst.msk [vmem:[#allocation2 + $0x1a0] sm:$0xff] %vm3243, %v3167
        %3297 = vst.msk [vmem:[#allocation2 + $0x1a8] sm:$0xff] %vm3243, %v3168
        %3298 = vst.msk [vmem:[#allocation2 + $0x1b0] sm:$0xff] %vm3243, %v3169
        %3299 = vst.msk [vmem:[#allocation2 + $0x1b8] sm:$0xff] %vm3243, %v3170
        %3300 = vst.msk [vmem:[#allocation2 + $0x1c0] sm:$0xff] %vm3243, %v3171
        %3301 = vst.msk [vmem:[#allocation2 + $0x1c8] sm:$0xff] %vm3243, %v3172
        %3302 = vst.msk [vmem:[#allocation2 + $0x1d0] sm:$0xff] %vm3243, %v3173
        %3303 = vst.msk [vmem:[#allocation2 + $0x1d8] sm:$0xff] %vm3243, %v3174
        %3304 = vst.msk [vmem:[#allocation2 + $0x1e0] sm:$0xff] %vm3243, %v3175
        %3305 = vst.msk [vmem:[#allocation2 + $0x1e8] sm:$0xff] %vm3243, %v3176
        %3306 = vst.msk [vmem:[#allocation2 + $0x1f0] sm:$0xff] %vm3243, %v3177
        %3307 = vst.msk [vmem:[#allocation2 + $0x1f8] sm:$0xff] %vm3243, %v3178
        %3308 = vst.msk [vmem:[#allocation2 + $0x200] sm:$0xff] %vm3243, %v3179
        %3309 = vst.msk [vmem:[#allocation2 + $0x208] sm:$0xff] %vm3243, %v3180
        %3310 = vst.msk [vmem:[#allocation2 + $0x210] sm:$0xff] %vm3243, %v3181
        %3311 = vst.msk [vmem:[#allocation2 + $0x218] sm:$0xff] %vm3243, %v3182
        %3312 = vst.msk [vmem:[#allocation2 + $0x220] sm:$0xff] %vm3243, %v3183
        %3313 = vst.msk [vmem:[#allocation2 + $0x228] sm:$0xff] %vm3243, %v3184
        %3314 = vst.msk [vmem:[#allocation2 + $0x230] sm:$0xff] %vm3243, %v3185
        %3315 = vst.msk [vmem:[#allocation2 + $0x238] sm:$0xff] %vm3243, %v3186
        %3316 = vst.msk [vmem:[#allocation2 + $0x240] sm:$0xff] %vm3243, %v3187
        %3317 = vst.msk [vmem:[#allocation2 + $0x248] sm:$0xff] %vm3243, %v3188
        %3318 = vst.msk [vmem:[#allocation2 + $0x250] sm:$0xff] %vm3243, %v3189
        %3319 = vst.msk [vmem:[#allocation2 + $0x258] sm:$0xff] %vm3243, %v3190
        %3320 = vst.msk [vmem:[#allocation2 + $0x260] sm:$0xff] %vm3243, %v3191
        %3321 = vst.msk [vmem:[#allocation2 + $0x268] sm:$0xff] %vm3243, %v3192
        %3322 = vst.msk [vmem:[#allocation2 + $0x270] sm:$0xff] %vm3243, %v3193
        %3323 = vst.msk [vmem:[#allocation2 + $0x278] sm:$0xff] %vm3243, %v3194
        %3324 = vst.msk [vmem:[#allocation2 + $0x280] sm:$0xff] %vm3243, %v3195
        %3325 = vst.msk [vmem:[#allocation2 + $0x288] sm:$0xff] %vm3243, %v3196
        %3326 = vst.msk [vmem:[#allocation2 + $0x290] sm:$0xff] %vm3243, %v3197
        %3327 = vst.msk [vmem:[#allocation2 + $0x298] sm:$0xff] %vm3243, %v3198
        %3328 = vst.msk [vmem:[#allocation2 + $0x2a0] sm:$0xff] %vm3243, %v3199
        %3329 = vst.msk [vmem:[#allocation2 + $0x2a8] sm:$0xff] %vm3243, %v3200
        %3330 = vst.msk [vmem:[#allocation2 + $0x2b0] sm:$0xff] %vm3243, %v3201
        %3331 = vst.msk [vmem:[#allocation2 + $0x2b8] sm:$0xff] %vm3243, %v3202
        %3332 = vst.msk [vmem:[#allocation2 + $0x2c0] sm:$0xff] %vm3243, %v3203
        %3333 = vst.msk [vmem:[#allocation2 + $0x2c8] sm:$0xff] %vm3243, %v3204
        %3334 = vst.msk [vmem:[#allocation2 + $0x2d0] sm:$0xff] %vm3243, %v3205
        %3335 = vst.msk [vmem:[#allocation2 + $0x2d8] sm:$0xff] %vm3243, %v3206
        %3336 = vst.msk [vmem:[#allocation2 + $0x2e0] sm:$0xff] %vm3243, %v3207
        %3337 = vst.msk [vmem:[#allocation2 + $0x2e8] sm:$0xff] %vm3243, %v3208
        %3338 = vst.msk [vmem:[#allocation2 + $0x2f0] sm:$0xff] %vm3243, %v3209
        %3339 = vst.msk [vmem:[#allocation2 + $0x2f8] sm:$0xff] %vm3243, %v3210
        %3340 = vst.msk [vmem:[#allocation2 + $0x300] sm:$0xff] %vm3243, %v3211
        %3341 = vst.msk [vmem:[#allocation2 + $0x308] sm:$0xff] %vm3243, %v3212
        %3342 = vst.msk [vmem:[#allocation2 + $0x310] sm:$0xff] %vm3243, %v3213
        %3343 = vst.msk [vmem:[#allocation2 + $0x318] sm:$0xff] %vm3243, %v3214
        %3344 = vst.msk [vmem:[#allocation2 + $0x320] sm:$0xff] %vm3243, %v3215
        %3345 = vst.msk [vmem:[#allocation2 + $0x328] sm:$0xff] %vm3243, %v3216
        %3346 = vst.msk [vmem:[#allocation2 + $0x330] sm:$0xff] %vm3243, %v3217
        %3347 = vst.msk [vmem:[#allocation2 + $0x338] sm:$0xff] %vm3243, %v3218
        %3348 = vst.msk [vmem:[#allocation2 + $0x340] sm:$0xff] %vm3243, %v3219
        %3349 = vst.msk [vmem:[#allocation2 + $0x348] sm:$0xff] %vm3243, %v3220
        %3350 = vst.msk [vmem:[#allocation2 + $0x350] sm:$0xff] %vm3243, %v3221
        %3351 = vst.msk [vmem:[#allocation2 + $0x358] sm:$0xff] %vm3243, %v3222
        %3352 = vst.msk [vmem:[#allocation2 + $0x360] sm:$0xff] %vm3243, %v3223
        %3353 = vst.msk [vmem:[#allocation2 + $0x368] sm:$0xff] %vm3243, %v3224
        %3354 = vst.msk [vmem:[#allocation2 + $0x370] sm:$0xff] %vm3243, %v3225
        %3355 = vst.msk [vmem:[#allocation2 + $0x378] sm:$0xff] %vm3243, %v3226
        %3356 = vst.msk [vmem:[#allocation2 + $0x380] sm:$0xff] %vm3243, %v3227
        %3357 = vst.msk [vmem:[#allocation2 + $0x388] sm:$0xff] %vm3243, %v3228
        %3358 = vst.msk [vmem:[#allocation2 + $0x390] sm:$0xff] %vm3243, %v3229
        %3359 = vst.msk [vmem:[#allocation2 + $0x398] sm:$0xff] %vm3243, %v3230
        %3360 = vst.msk [vmem:[#allocation2 + $0x3a0] sm:$0xff] %vm3243, %v3231
        %3361 = vst.msk [vmem:[#allocation2 + $0x3a8] sm:$0xff] %vm3243, %v3232
        %3362 = vst.msk [vmem:[#allocation2 + $0x3b0] sm:$0xff] %vm3243, %v3233
        %3363 = vst.msk [vmem:[#allocation2 + $0x3b8] sm:$0xff] %vm3243, %v3234
        %3364 = vst.msk [vmem:[#allocation2 + $0x3c0] sm:$0xff] %vm3243, %v3235
        %3365 = vst.msk [vmem:[#allocation2 + $0x3c8] sm:$0xff] %vm3243, %v3236
        %3366 = vst.msk [vmem:[#allocation2 + $0x3d0] sm:$0xff] %vm3243, %v3237
        %3367 = vst.msk [vmem:[#allocation2 + $0x3d8] sm:$0xff] %vm3243, %v3238
        %3368 = vst.msk [vmem:[#allocation2 + $0x3e0] sm:$0xff] %vm3243, %v3239
        %3369 = vst.msk [vmem:[#allocation2 + $0x3e8] sm:$0xff] %vm3243, %v3240
        %3370 = vst.msk [vmem:[#allocation2 + $0x3f0] sm:$0xff] %vm3243, %v3241
        %3371 = vst.msk [vmem:[#allocation2 + $0x3f8] sm:$0xff] %vm3243, %v3242
        %p3372 = scmp.eq.s32.totalorder %s23, 2
        // Predicated region
        $region91: #{tpu_custom_call.1} parent=81 // pred_check
          %p3373 = pneg %p3372
        $region92: #{tpu_custom_call.1} parent=81 // pred_check_branch
          %3375 = sbr.rel (%p3373) target = $region94
        $region93: #{tpu_custom_call.1} parent=81 // pred_region
          %v3376 = vld [vmem:[#allocation2] sm:$0xff]
          %v3377 = vld [vmem:[#allocation2 + $0x8] sm:$0xff]
          %v3378 = vld [vmem:[#allocation2 + $0x10] sm:$0xff]
          %v3379 = vld [vmem:[#allocation2 + $0x18] sm:$0xff]
          %v3380 = vld [vmem:[#allocation2 + $0x20] sm:$0xff]
          %v3381 = vld [vmem:[#allocation2 + $0x28] sm:$0xff]
          %v3382 = vld [vmem:[#allocation2 + $0x30] sm:$0xff]
          %v3383 = vld [vmem:[#allocation2 + $0x38] sm:$0xff]
          %v3384 = vld [vmem:[#allocation2 + $0x40] sm:$0xff]
          %v3385 = vld [vmem:[#allocation2 + $0x48] sm:$0xff]
          %v3386 = vld [vmem:[#allocation2 + $0x50] sm:$0xff]
          %v3387 = vld [vmem:[#allocation2 + $0x58] sm:$0xff]
          %v3388 = vld [vmem:[#allocation2 + $0x60] sm:$0xff]
          %v3389 = vld [vmem:[#allocation2 + $0x68] sm:$0xff]
          %v3390 = vld [vmem:[#allocation2 + $0x70] sm:$0xff]
          %v3391 = vld [vmem:[#allocation2 + $0x78] sm:$0xff]
          %v3392 = vld [vmem:[#allocation2 + $0x80] sm:$0xff]
          %v3393 = vld [vmem:[#allocation2 + $0x88] sm:$0xff]
          %v3394 = vld [vmem:[#allocation2 + $0x90] sm:$0xff]
          %v3395 = vld [vmem:[#allocation2 + $0x98] sm:$0xff]
          %v3396 = vld [vmem:[#allocation2 + $0xa0] sm:$0xff]
          %v3397 = vld [vmem:[#allocation2 + $0xa8] sm:$0xff]
          %v3398 = vld [vmem:[#allocation2 + $0xb0] sm:$0xff]
          %v3399 = vld [vmem:[#allocation2 + $0xb8] sm:$0xff]
          %v3400 = vld [vmem:[#allocation2 + $0xc0] sm:$0xff]
          %v3401 = vld [vmem:[#allocation2 + $0xc8] sm:$0xff]
          %v3402 = vld [vmem:[#allocation2 + $0xd0] sm:$0xff]
          %v3403 = vld [vmem:[#allocation2 + $0xd8] sm:$0xff]
          %v3404 = vld [vmem:[#allocation2 + $0xe0] sm:$0xff]
          %v3405 = vld [vmem:[#allocation2 + $0xe8] sm:$0xff]
          %v3406 = vld [vmem:[#allocation2 + $0xf0] sm:$0xff]
          %v3407 = vld [vmem:[#allocation2 + $0xf8] sm:$0xff]
          %v3408 = vld [vmem:[#allocation2 + $0x100] sm:$0xff]
          %v3409 = vld [vmem:[#allocation2 + $0x108] sm:$0xff]
          %v3410 = vld [vmem:[#allocation2 + $0x110] sm:$0xff]
          %v3411 = vld [vmem:[#allocation2 + $0x118] sm:$0xff]
          %v3412 = vld [vmem:[#allocation2 + $0x120] sm:$0xff]
          %v3413 = vld [vmem:[#allocation2 + $0x128] sm:$0xff]
          %v3414 = vld [vmem:[#allocation2 + $0x130] sm:$0xff]
          %v3415 = vld [vmem:[#allocation2 + $0x138] sm:$0xff]
          %v3416 = vld [vmem:[#allocation2 + $0x140] sm:$0xff]
          %v3417 = vld [vmem:[#allocation2 + $0x148] sm:$0xff]
          %v3418 = vld [vmem:[#allocation2 + $0x150] sm:$0xff]
          %v3419 = vld [vmem:[#allocation2 + $0x158] sm:$0xff]
          %v3420 = vld [vmem:[#allocation2 + $0x160] sm:$0xff]
          %v3421 = vld [vmem:[#allocation2 + $0x168] sm:$0xff]
          %v3422 = vld [vmem:[#allocation2 + $0x170] sm:$0xff]
          %v3423 = vld [vmem:[#allocation2 + $0x178] sm:$0xff]
          %v3424 = vld [vmem:[#allocation2 + $0x180] sm:$0xff]
          %v3425 = vld [vmem:[#allocation2 + $0x188] sm:$0xff]
          %v3426 = vld [vmem:[#allocation2 + $0x190] sm:$0xff]
          %v3427 = vld [vmem:[#allocation2 + $0x198] sm:$0xff]
          %v3428 = vld [vmem:[#allocation2 + $0x1a0] sm:$0xff]
          %v3429 = vld [vmem:[#allocation2 + $0x1a8] sm:$0xff]
          %v3430 = vld [vmem:[#allocation2 + $0x1b0] sm:$0xff]
          %v3431 = vld [vmem:[#allocation2 + $0x1b8] sm:$0xff]
          %v3432 = vld [vmem:[#allocation2 + $0x1c0] sm:$0xff]
          %v3433 = vld [vmem:[#allocation2 + $0x1c8] sm:$0xff]
          %v3434 = vld [vmem:[#allocation2 + $0x1d0] sm:$0xff]
          %v3435 = vld [vmem:[#allocation2 + $0x1d8] sm:$0xff]
          %v3436 = vld [vmem:[#allocation2 + $0x1e0] sm:$0xff]
          %v3437 = vld [vmem:[#allocation2 + $0x1e8] sm:$0xff]
          %v3438 = vld [vmem:[#allocation2 + $0x1f0] sm:$0xff]
          %v3439 = vld [vmem:[#allocation2 + $0x1f8] sm:$0xff]
          %v3440 = vld [vmem:[#allocation2 + $0x200] sm:$0xff]
          %v3441 = vld [vmem:[#allocation2 + $0x208] sm:$0xff]
          %v3442 = vld [vmem:[#allocation2 + $0x210] sm:$0xff]
          %v3443 = vld [vmem:[#allocation2 + $0x218] sm:$0xff]
          %v3444 = vld [vmem:[#allocation2 + $0x220] sm:$0xff]
          %v3445 = vld [vmem:[#allocation2 + $0x228] sm:$0xff]
          %v3446 = vld [vmem:[#allocation2 + $0x230] sm:$0xff]
          %v3447 = vld [vmem:[#allocation2 + $0x238] sm:$0xff]
          %v3448 = vld [vmem:[#allocation2 + $0x240] sm:$0xff]
          %v3449 = vld [vmem:[#allocation2 + $0x248] sm:$0xff]
          %v3450 = vld [vmem:[#allocation2 + $0x250] sm:$0xff]
          %v3451 = vld [vmem:[#allocation2 + $0x258] sm:$0xff]
          %v3452 = vld [vmem:[#allocation2 + $0x260] sm:$0xff]
          %v3453 = vld [vmem:[#allocation2 + $0x268] sm:$0xff]
          %v3454 = vld [vmem:[#allocation2 + $0x270] sm:$0xff]
          %v3455 = vld [vmem:[#allocation2 + $0x278] sm:$0xff]
          %v3456 = vld [vmem:[#allocation2 + $0x280] sm:$0xff]
          %v3457 = vld [vmem:[#allocation2 + $0x288] sm:$0xff]
          %v3458 = vld [vmem:[#allocation2 + $0x290] sm:$0xff]
          %v3459 = vld [vmem:[#allocation2 + $0x298] sm:$0xff]
          %v3460 = vld [vmem:[#allocation2 + $0x2a0] sm:$0xff]
          %v3461 = vld [vmem:[#allocation2 + $0x2a8] sm:$0xff]
          %v3462 = vld [vmem:[#allocation2 + $0x2b0] sm:$0xff]
          %v3463 = vld [vmem:[#allocation2 + $0x2b8] sm:$0xff]
          %v3464 = vld [vmem:[#allocation2 + $0x2c0] sm:$0xff]
          %v3465 = vld [vmem:[#allocation2 + $0x2c8] sm:$0xff]
          %v3466 = vld [vmem:[#allocation2 + $0x2d0] sm:$0xff]
          %v3467 = vld [vmem:[#allocation2 + $0x2d8] sm:$0xff]
          %v3468 = vld [vmem:[#allocation2 + $0x2e0] sm:$0xff]
          %v3469 = vld [vmem:[#allocation2 + $0x2e8] sm:$0xff]
          %v3470 = vld [vmem:[#allocation2 + $0x2f0] sm:$0xff]
          %v3471 = vld [vmem:[#allocation2 + $0x2f8] sm:$0xff]
          %v3472 = vld [vmem:[#allocation2 + $0x300] sm:$0xff]
          %v3473 = vld [vmem:[#allocation2 + $0x308] sm:$0xff]
          %v3474 = vld [vmem:[#allocation2 + $0x310] sm:$0xff]
          %v3475 = vld [vmem:[#allocation2 + $0x318] sm:$0xff]
          %v3476 = vld [vmem:[#allocation2 + $0x320] sm:$0xff]
          %v3477 = vld [vmem:[#allocation2 + $0x328] sm:$0xff]
          %v3478 = vld [vmem:[#allocation2 + $0x330] sm:$0xff]
          %v3479 = vld [vmem:[#allocation2 + $0x338] sm:$0xff]
          %v3480 = vld [vmem:[#allocation2 + $0x340] sm:$0xff]
          %v3481 = vld [vmem:[#allocation2 + $0x348] sm:$0xff]
          %v3482 = vld [vmem:[#allocation2 + $0x350] sm:$0xff]
          %v3483 = vld [vmem:[#allocation2 + $0x358] sm:$0xff]
          %v3484 = vld [vmem:[#allocation2 + $0x360] sm:$0xff]
          %v3485 = vld [vmem:[#allocation2 + $0x368] sm:$0xff]
          %v3486 = vld [vmem:[#allocation2 + $0x370] sm:$0xff]
          %v3487 = vld [vmem:[#allocation2 + $0x378] sm:$0xff]
          %v3488 = vld [vmem:[#allocation2 + $0x380] sm:$0xff]
          %v3489 = vld [vmem:[#allocation2 + $0x388] sm:$0xff]
          %v3490 = vld [vmem:[#allocation2 + $0x390] sm:$0xff]
          %v3491 = vld [vmem:[#allocation2 + $0x398] sm:$0xff]
          %v3492 = vld [vmem:[#allocation2 + $0x3a0] sm:$0xff]
          %v3493 = vld [vmem:[#allocation2 + $0x3a8] sm:$0xff]
          %v3494 = vld [vmem:[#allocation2 + $0x3b0] sm:$0xff]
          %v3495 = vld [vmem:[#allocation2 + $0x3b8] sm:$0xff]
          %v3496 = vld [vmem:[#allocation2 + $0x3c0] sm:$0xff]
          %v3497 = vld [vmem:[#allocation2 + $0x3c8] sm:$0xff]
          %v3498 = vld [vmem:[#allocation2 + $0x3d0] sm:$0xff]
          %v3499 = vld [vmem:[#allocation2 + $0x3d8] sm:$0xff]
          %v3500 = vld [vmem:[#allocation2 + $0x3e0] sm:$0xff]
          %v3501 = vld [vmem:[#allocation2 + $0x3e8] sm:$0xff]
          %v3502 = vld [vmem:[#allocation2 + $0x3f0] sm:$0xff]
          %v3503 = vld [vmem:[#allocation2 + $0x3f8] sm:$0xff]
          %3504 = vst.msk [vmem:[%s333] sm:$0xff] %vm3243, %v3376
          %3505 = vst.msk [vmem:[%s333 + $0x8] sm:$0xff] %vm3243, %v3377
          %3506 = vst.msk [vmem:[%s333 + $0x10] sm:$0xff] %vm3243, %v3378
          %3507 = vst.msk [vmem:[%s333 + $0x18] sm:$0xff] %vm3243, %v3379
          %3508 = vst.msk [vmem:[%s333 + $0x20] sm:$0xff] %vm3243, %v3380
          %3509 = vst.msk [vmem:[%s333 + $0x28] sm:$0xff] %vm3243, %v3381
          %3510 = vst.msk [vmem:[%s333 + $0x30] sm:$0xff] %vm3243, %v3382
          %3511 = vst.msk [vmem:[%s333 + $0x38] sm:$0xff] %vm3243, %v3383
          %3512 = vst.msk [vmem:[%s333 + $0x40] sm:$0xff] %vm3243, %v3384
          %3513 = vst.msk [vmem:[%s333 + $0x48] sm:$0xff] %vm3243, %v3385
          %3514 = vst.msk [vmem:[%s333 + $0x50] sm:$0xff] %vm3243, %v3386
          %3515 = vst.msk [vmem:[%s333 + $0x58] sm:$0xff] %vm3243, %v3387
          %3516 = vst.msk [vmem:[%s333 + $0x60] sm:$0xff] %vm3243, %v3388
          %3517 = vst.msk [vmem:[%s333 + $0x68] sm:$0xff] %vm3243, %v3389
          %3518 = vst.msk [vmem:[%s333 + $0x70] sm:$0xff] %vm3243, %v3390
          %3519 = vst.msk [vmem:[%s333 + $0x78] sm:$0xff] %vm3243, %v3391
          %3520 = vst.msk [vmem:[%s333 + $0x80] sm:$0xff] %vm3243, %v3392
          %3521 = vst.msk [vmem:[%s333 + $0x88] sm:$0xff] %vm3243, %v3393
          %3522 = vst.msk [vmem:[%s333 + $0x90] sm:$0xff] %vm3243, %v3394
          %3523 = vst.msk [vmem:[%s333 + $0x98] sm:$0xff] %vm3243, %v3395
          %3524 = vst.msk [vmem:[%s333 + $0xa0] sm:$0xff] %vm3243, %v3396
          %3525 = vst.msk [vmem:[%s333 + $0xa8] sm:$0xff] %vm3243, %v3397
          %3526 = vst.msk [vmem:[%s333 + $0xb0] sm:$0xff] %vm3243, %v3398
          %3527 = vst.msk [vmem:[%s333 + $0xb8] sm:$0xff] %vm3243, %v3399
          %3528 = vst.msk [vmem:[%s333 + $0xc0] sm:$0xff] %vm3243, %v3400
          %3529 = vst.msk [vmem:[%s333 + $0xc8] sm:$0xff] %vm3243, %v3401
          %3530 = vst.msk [vmem:[%s333 + $0xd0] sm:$0xff] %vm3243, %v3402
          %3531 = vst.msk [vmem:[%s333 + $0xd8] sm:$0xff] %vm3243, %v3403
          %3532 = vst.msk [vmem:[%s333 + $0xe0] sm:$0xff] %vm3243, %v3404
          %3533 = vst.msk [vmem:[%s333 + $0xe8] sm:$0xff] %vm3243, %v3405
          %3534 = vst.msk [vmem:[%s333 + $0xf0] sm:$0xff] %vm3243, %v3406
          %3535 = vst.msk [vmem:[%s333 + $0xf8] sm:$0xff] %vm3243, %v3407
          %3536 = vst.msk [vmem:[%s333 + $0x100] sm:$0xff] %vm3243, %v3408
          %3537 = vst.msk [vmem:[%s333 + $0x108] sm:$0xff] %vm3243, %v3409
          %3538 = vst.msk [vmem:[%s333 + $0x110] sm:$0xff] %vm3243, %v3410
          %3539 = vst.msk [vmem:[%s333 + $0x118] sm:$0xff] %vm3243, %v3411
          %3540 = vst.msk [vmem:[%s333 + $0x120] sm:$0xff] %vm3243, %v3412
          %3541 = vst.msk [vmem:[%s333 + $0x128] sm:$0xff] %vm3243, %v3413
          %3542 = vst.msk [vmem:[%s333 + $0x130] sm:$0xff] %vm3243, %v3414
          %3543 = vst.msk [vmem:[%s333 + $0x138] sm:$0xff] %vm3243, %v3415
          %3544 = vst.msk [vmem:[%s333 + $0x140] sm:$0xff] %vm3243, %v3416
          %3545 = vst.msk [vmem:[%s333 + $0x148] sm:$0xff] %vm3243, %v3417
          %3546 = vst.msk [vmem:[%s333 + $0x150] sm:$0xff] %vm3243, %v3418
          %3547 = vst.msk [vmem:[%s333 + $0x158] sm:$0xff] %vm3243, %v3419
          %3548 = vst.msk [vmem:[%s333 + $0x160] sm:$0xff] %vm3243, %v3420
          %3549 = vst.msk [vmem:[%s333 + $0x168] sm:$0xff] %vm3243, %v3421
          %3550 = vst.msk [vmem:[%s333 + $0x170] sm:$0xff] %vm3243, %v3422
          %3551 = vst.msk [vmem:[%s333 + $0x178] sm:$0xff] %vm3243, %v3423
          %3552 = vst.msk [vmem:[%s333 + $0x180] sm:$0xff] %vm3243, %v3424
          %3553 = vst.msk [vmem:[%s333 + $0x188] sm:$0xff] %vm3243, %v3425
          %3554 = vst.msk [vmem:[%s333 + $0x190] sm:$0xff] %vm3243, %v3426
          %3555 = vst.msk [vmem:[%s333 + $0x198] sm:$0xff] %vm3243, %v3427
          %3556 = vst.msk [vmem:[%s333 + $0x1a0] sm:$0xff] %vm3243, %v3428
          %3557 = vst.msk [vmem:[%s333 + $0x1a8] sm:$0xff] %vm3243, %v3429
          %3558 = vst.msk [vmem:[%s333 + $0x1b0] sm:$0xff] %vm3243, %v3430
          %3559 = vst.msk [vmem:[%s333 + $0x1b8] sm:$0xff] %vm3243, %v3431
          %3560 = vst.msk [vmem:[%s333 + $0x1c0] sm:$0xff] %vm3243, %v3432
          %3561 = vst.msk [vmem:[%s333 + $0x1c8] sm:$0xff] %vm3243, %v3433
          %3562 = vst.msk [vmem:[%s333 + $0x1d0] sm:$0xff] %vm3243, %v3434
          %3563 = vst.msk [vmem:[%s333 + $0x1d8] sm:$0xff] %vm3243, %v3435
          %3564 = vst.msk [vmem:[%s333 + $0x1e0] sm:$0xff] %vm3243, %v3436
          %3565 = vst.msk [vmem:[%s333 + $0x1e8] sm:$0xff] %vm3243, %v3437
          %3566 = vst.msk [vmem:[%s333 + $0x1f0] sm:$0xff] %vm3243, %v3438
          %3567 = vst.msk [vmem:[%s333 + $0x1f8] sm:$0xff] %vm3243, %v3439
          %3568 = vst.msk [vmem:[%s333 + $0x200] sm:$0xff] %vm3243, %v3440
          %3569 = vst.msk [vmem:[%s333 + $0x208] sm:$0xff] %vm3243, %v3441
          %3570 = vst.msk [vmem:[%s333 + $0x210] sm:$0xff] %vm3243, %v3442
          %3571 = vst.msk [vmem:[%s333 + $0x218] sm:$0xff] %vm3243, %v3443
          %3572 = vst.msk [vmem:[%s333 + $0x220] sm:$0xff] %vm3243, %v3444
          %3573 = vst.msk [vmem:[%s333 + $0x228] sm:$0xff] %vm3243, %v3445
          %3574 = vst.msk [vmem:[%s333 + $0x230] sm:$0xff] %vm3243, %v3446
          %3575 = vst.msk [vmem:[%s333 + $0x238] sm:$0xff] %vm3243, %v3447
          %3576 = vst.msk [vmem:[%s333 + $0x240] sm:$0xff] %vm3243, %v3448
          %3577 = vst.msk [vmem:[%s333 + $0x248] sm:$0xff] %vm3243, %v3449
          %3578 = vst.msk [vmem:[%s333 + $0x250] sm:$0xff] %vm3243, %v3450
          %3579 = vst.msk [vmem:[%s333 + $0x258] sm:$0xff] %vm3243, %v3451
          %3580 = vst.msk [vmem:[%s333 + $0x260] sm:$0xff] %vm3243, %v3452
          %3581 = vst.msk [vmem:[%s333 + $0x268] sm:$0xff] %vm3243, %v3453
          %3582 = vst.msk [vmem:[%s333 + $0x270] sm:$0xff] %vm3243, %v3454
          %3583 = vst.msk [vmem:[%s333 + $0x278] sm:$0xff] %vm3243, %v3455
          %3584 = vst.msk [vmem:[%s333 + $0x280] sm:$0xff] %vm3243, %v3456
          %3585 = vst.msk [vmem:[%s333 + $0x288] sm:$0xff] %vm3243, %v3457
          %3586 = vst.msk [vmem:[%s333 + $0x290] sm:$0xff] %vm3243, %v3458
          %3587 = vst.msk [vmem:[%s333 + $0x298] sm:$0xff] %vm3243, %v3459
          %3588 = vst.msk [vmem:[%s333 + $0x2a0] sm:$0xff] %vm3243, %v3460
          %3589 = vst.msk [vmem:[%s333 + $0x2a8] sm:$0xff] %vm3243, %v3461
          %3590 = vst.msk [vmem:[%s333 + $0x2b0] sm:$0xff] %vm3243, %v3462
          %3591 = vst.msk [vmem:[%s333 + $0x2b8] sm:$0xff] %vm3243, %v3463
          %3592 = vst.msk [vmem:[%s333 + $0x2c0] sm:$0xff] %vm3243, %v3464
          %3593 = vst.msk [vmem:[%s333 + $0x2c8] sm:$0xff] %vm3243, %v3465
          %3594 = vst.msk [vmem:[%s333 + $0x2d0] sm:$0xff] %vm3243, %v3466
          %3595 = vst.msk [vmem:[%s333 + $0x2d8] sm:$0xff] %vm3243, %v3467
          %3596 = vst.msk [vmem:[%s333 + $0x2e0] sm:$0xff] %vm3243, %v3468
          %3597 = vst.msk [vmem:[%s333 + $0x2e8] sm:$0xff] %vm3243, %v3469
          %3598 = vst.msk [vmem:[%s333 + $0x2f0] sm:$0xff] %vm3243, %v3470
          %3599 = vst.msk [vmem:[%s333 + $0x2f8] sm:$0xff] %vm3243, %v3471
          %3600 = vst.msk [vmem:[%s333 + $0x300] sm:$0xff] %vm3243, %v3472
          %3601 = vst.msk [vmem:[%s333 + $0x308] sm:$0xff] %vm3243, %v3473
          %3602 = vst.msk [vmem:[%s333 + $0x310] sm:$0xff] %vm3243, %v3474
          %3603 = vst.msk [vmem:[%s333 + $0x318] sm:$0xff] %vm3243, %v3475
          %3604 = vst.msk [vmem:[%s333 + $0x320] sm:$0xff] %vm3243, %v3476
          %3605 = vst.msk [vmem:[%s333 + $0x328] sm:$0xff] %vm3243, %v3477
          %3606 = vst.msk [vmem:[%s333 + $0x330] sm:$0xff] %vm3243, %v3478
          %3607 = vst.msk [vmem:[%s333 + $0x338] sm:$0xff] %vm3243, %v3479
          %3608 = vst.msk [vmem:[%s333 + $0x340] sm:$0xff] %vm3243, %v3480
          %3609 = vst.msk [vmem:[%s333 + $0x348] sm:$0xff] %vm3243, %v3481
          %3610 = vst.msk [vmem:[%s333 + $0x350] sm:$0xff] %vm3243, %v3482
          %3611 = vst.msk [vmem:[%s333 + $0x358] sm:$0xff] %vm3243, %v3483
          %3612 = vst.msk [vmem:[%s333 + $0x360] sm:$0xff] %vm3243, %v3484
          %3613 = vst.msk [vmem:[%s333 + $0x368] sm:$0xff] %vm3243, %v3485
          %3614 = vst.msk [vmem:[%s333 + $0x370] sm:$0xff] %vm3243, %v3486
          %3615 = vst.msk [vmem:[%s333 + $0x378] sm:$0xff] %vm3243, %v3487
          %3616 = vst.msk [vmem:[%s333 + $0x380] sm:$0xff] %vm3243, %v3488
          %3617 = vst.msk [vmem:[%s333 + $0x388] sm:$0xff] %vm3243, %v3489
          %3618 = vst.msk [vmem:[%s333 + $0x390] sm:$0xff] %vm3243, %v3490
          %3619 = vst.msk [vmem:[%s333 + $0x398] sm:$0xff] %vm3243, %v3491
          %3620 = vst.msk [vmem:[%s333 + $0x3a0] sm:$0xff] %vm3243, %v3492
          %3621 = vst.msk [vmem:[%s333 + $0x3a8] sm:$0xff] %vm3243, %v3493
          %3622 = vst.msk [vmem:[%s333 + $0x3b0] sm:$0xff] %vm3243, %v3494
          %3623 = vst.msk [vmem:[%s333 + $0x3b8] sm:$0xff] %vm3243, %v3495
          %3624 = vst.msk [vmem:[%s333 + $0x3c0] sm:$0xff] %vm3243, %v3496
          %3625 = vst.msk [vmem:[%s333 + $0x3c8] sm:$0xff] %vm3243, %v3497
          %3626 = vst.msk [vmem:[%s333 + $0x3d0] sm:$0xff] %vm3243, %v3498
          %3627 = vst.msk [vmem:[%s333 + $0x3d8] sm:$0xff] %vm3243, %v3499
          %3628 = vst.msk [vmem:[%s333 + $0x3e0] sm:$0xff] %vm3243, %v3500
          %3629 = vst.msk [vmem:[%s333 + $0x3e8] sm:$0xff] %vm3243, %v3501
          %3630 = vst.msk [vmem:[%s333 + $0x3f0] sm:$0xff] %vm3243, %v3502
          %3631 = vst.msk [vmem:[%s333 + $0x3f8] sm:$0xff] %vm3243, %v3503
        $region94: #{tpu_custom_call.1} parent=81 // pred_fallthru
          _
        %p3632 = scmp.lt.s32.totalorder %s22, 1
        %s3633 = scalar_select %p3632, %s22, 1
        %s3634 = smul.addr %s3633, 128
        %s3635 = smul.addr %s3634, 8
        %s3636 = scalar_lea.vmem %s7, %s3635
        // Predicated region
        $region95: #{tpu_custom_call.1} parent=81 // pred_check
          %p3637 = pneg %p202
        $region96: #{tpu_custom_call.1} parent=81 // pred_check_branch
          %3639 = sbr.rel (%p3637) target = $region98
        $region97: #{tpu_custom_call.1} parent=81 // pred_region
          _
        $region98: #{tpu_custom_call.1} parent=81 // pred_fallthru
          _
      $region82: #{tpu_custom_call.1} parent=5 // pred_fallthru
        _
      %p3640 = scmp.le.s32.totalorder 2, %s13
      // Predicated region
      $region99: #{tpu_custom_call.1} parent=5 // pred_check
        %p3641 = pneg %p3640
      $region100: #{tpu_custom_call.1} parent=5 // pred_check_branch
        %3643 = sbr.rel (%p3641) target = $region102
      $region101: #{tpu_custom_call.1} parent=5 // pred_region
        %s3644 = ssub.s32 %s13, 2
        // Predicated region
        $region103: #{tpu_custom_call.1} parent=101 // pred_check
          %p3645 = pneg %p208
        $region104: #{tpu_custom_call.1} parent=101 // pred_check_branch
          %3647 = sbr.rel (%p3645) target = $region106
        $region105: #{tpu_custom_call.1} parent=101 // pred_region
          %p3648 = scmp.lt.s32.totalorder %s24, 1
          %s3649 = scalar_select %p3648, %s24, 1
          %s3650 = smul.addr %s3649, 128
          %s3651 = smul.addr %s3650, 8
          %s3652 = scalar_lea.vmem %s7, %s3651
        $region106: #{tpu_custom_call.1} parent=101 // pred_fallthru
          _
      $region102: #{tpu_custom_call.1} parent=5 // pred_fallthru
        _
    $region6: #{tpu_custom_call.1} parent=1 // loop_footer
      %s17 = sadd.s32 1, %s13
    $region7: #{tpu_custom_call.1} parent=1 // loop_footer_branch
      %12 = sbr.rel target = $region3
    $region8: #{tpu_custom_call.1} parent=1 // loop_exit
      _

</llo_original>
